<compile_context>
chip_gen: v7x
topology: tpu7x:2x2x1
jax: 0.10.0
libtpu: 0.0.40
codegen_flags: <defaults>
</compile_context>

<pallas_src>
import jax
import jax.numpy as jnp
from jax.experimental import pallas as pl
from jax.experimental.pallas import tpu as pltpu

CUT_SIZE = 8
CUTN = 42
CUT_POW = 0.5


def _cutout_kernel(wy_ref, x_ref, wxt_ref, o_ref):
    # wy_ref : (cutn*P, H)     bf16  row-pool weights, cutn folded into MXU M
    # x_ref  : (1, H, W)       bf16  one (n, c) image plane (grid step = plane)
    # wxt_ref: (cutn, W, P)    bf16  col-pool weights (transposed) per cutout
    # o_ref  : (1, cutn, P, P) f32   pooled cutouts for this plane
    cutn, w, _ = wxt_ref.shape
    p = wy_ref.shape[0] // cutn

    # Stage 1: row pooling for ALL cutouts at once on the MXU.
    #   t[i*P + p, w] = sum_h wy[i, p, h] * x[h, w]        (M = cutn*P = 336)
    t = jnp.dot(wy_ref[...], x_ref[0], preferred_element_type=jnp.float32)
    # (cutn*P, W) -> (cutn, P, W): inner factor P == 8 == f32 sublane tile, so
    # this is a free view; t stays f32 (no bf16 double rounding / relayout).
    t = t.reshape(cutn, p, w)

    # Stage 2: column pooling, batched over cutouts, contracting only W.
    #   o[i, p, q] = sum_w t[i, p, w] * wx[i, q, w]
    o = jnp.einsum('ipw,iwq->ipq', t, wxt_ref[...].astype(jnp.float32),
                   preferred_element_type=jnp.float32)
    o_ref[0] = o


def _pool_weights(sizes, offsets, side, out_size):
    """Adaptive-avg-pool weight matrices embedded into the full image side.

    W[i, p, h] = 1/(end_p - start_p) if offsets[i] <= h < offsets[i]+sizes[i]
                 and start_p <= (h - offsets[i]) < end_p, else 0,
    with start_p = floor(p*s/P), end_p = ceil((p+1)*s/P)  (PyTorch semantics).
    """
    P = out_size
    p = jnp.arange(P, dtype=jnp.int32)
    s = sizes.astype(jnp.int32)[:, None]                       # (cutn, 1)
    start = (p[None, :] * s) // P                              # (cutn, P)
    end = ((p[None, :] + 1) * s + P - 1) // P                  # (cutn, P)
    h = jnp.arange(side, dtype=jnp.int32)
    j = h[None, None, :] - offsets.astype(jnp.int32)[:, None, None]
    in_bin = (j >= start[:, :, None]) & (j < end[:, :, None])
    denom = (end - start).astype(jnp.float32)[:, :, None]
    return in_bin.astype(jnp.float32) / denom                  # (cutn, P, side)


def make_cutouts(x, key, cut_size=CUT_SIZE, cutn=CUTN, cut_pow=CUT_POW):
    N, C, sideY, sideX = x.shape
    max_size = min(sideX, sideY)
    min_size = min(sideX, sideY, cut_size)

    # Deterministic stand-in for torch.rand / torch.randint (tiny glue).
    k_size, k_ox, k_oy = jax.random.split(key, 3)
    r = jax.random.uniform(k_size, (cutn,), dtype=jnp.float32)
    sizes = jnp.floor(r ** cut_pow * (max_size - min_size) + min_size).astype(jnp.int32)
    ux = jax.random.uniform(k_ox, (cutn,), dtype=jnp.float32)
    uy = jax.random.uniform(k_oy, (cutn,), dtype=jnp.float32)
    offx = jnp.floor(ux * (sideX - sizes + 1).astype(jnp.float32)).astype(jnp.int32)
    offy = jnp.floor(uy * (sideY - sizes + 1).astype(jnp.float32)).astype(jnp.int32)

    P = cut_size
    NC = N * C
    wy = _pool_weights(sizes, offy, sideY, P)                   # (cutn, P, H) f32
    wx = _pool_weights(sizes, offx, sideX, P)                   # (cutn, P, W) f32

    # ---- compact kernel operands (bf16 for the MXU; no dense kron B) ----
    wy_flat = wy.reshape(cutn * P, sideY).astype(jnp.bfloat16)  # (cutn*P, H)
    wxt = wx.transpose(0, 2, 1).astype(jnp.bfloat16)            # (cutn, W, P)
    x3 = x.reshape(NC, sideY, sideX).astype(jnp.bfloat16)       # single cast, no transpose

    flops = 2 * NC * cutn * P * sideY * sideX + 2 * NC * cutn * P * P * sideX
    bytes_accessed = (wy_flat.size + x3.size + wxt.size) * 2 + NC * cutn * P * P * 4

    out_slab = pl.pallas_call(
        _cutout_kernel,
        out_shape=jax.ShapeDtypeStruct((NC, cutn, P, P), jnp.float32),
        grid_spec=pltpu.PrefetchScalarGridSpec(
            num_scalar_prefetch=0,
            grid=(NC,),
            in_specs=[
                pl.BlockSpec((cutn * P, sideY), lambda i: (0, 0)),     # fetched once
                pl.BlockSpec((1, sideY, sideX), lambda i: (i, 0, 0)),  # pipelined per plane
                pl.BlockSpec((cutn, sideX, P), lambda i: (0, 0, 0)),   # fetched once
            ],
            out_specs=pl.BlockSpec((1, cutn, P, P), lambda i: (i, 0, 0, 0)),
        ),
        compiler_params=pltpu.CompilerParams(
            dimension_semantics=("parallel",),
            vmem_limit_bytes=32 * 1024 * 1024),
        cost_estimate=pl.CostEstimate(flops=flops, transcendentals=0,
                                      bytes_accessed=bytes_accessed),
    )(wy_flat, x3, wxt)

    # (NC, cutn, P, P) -> torch.cat layout: cutout i occupies rows [i*N, (i+1)*N).
    out = out_slab.reshape(N, C, cutn, P, P)
    out = out.transpose(2, 0, 1, 3, 4).reshape(cutn * N, C, P, P)
    return out, (wy, wx)


def _reference(x, wy, wx, N, C, P):
    # Pure-JAX reference of the kernel math (same bf16-rounded inputs, f32 math).
    cutn = wy.shape[0]
    H, W = x.shape[2], x.shape[3]
    wy_b = wy.astype(jnp.bfloat16).astype(jnp.float32)
    wx_b = wx.astype(jnp.bfloat16).astype(jnp.float32)
    x_b = x.reshape(N * C, H, W).astype(jnp.bfloat16).astype(jnp.float32)
    out = jnp.einsum('iph,nhw,iqw->inpq', wy_b, x_b, wx_b,
                     precision=jax.lax.Precision.HIGHEST)
    return out.reshape(cutn, N, C, P, P).reshape(cutn * N, C, P, P)


if __name__ == "__main__":
    key = jax.random.PRNGKey(0)
    k_x, k_cut = jax.random.split(key)
    N, C, H, W = 2, 4, 16, 16
    x = jax.random.normal(k_x, (N, C, H, W), dtype=jnp.float32)

    result, (wy, wx) = jax.jit(make_cutouts)(x, k_cut)
    result = jax.block_until_ready(result)

    assert result.shape == (CUTN * N, C, CUT_SIZE, CUT_SIZE), result.shape

    ref = _reference(x, wy, wx, N, C, CUT_SIZE)
    max_err = float(jnp.max(jnp.abs(result - ref)))
    assert jnp.allclose(result, ref, atol=1e-2, rtol=1e-2), f"mismatch, max_err={max_err}"

    print("KERNEL_OK")
</pallas_src>

<mosaic_0001>
module attributes {stable_mosaic.version = 11 : i64} {
  func.func @_cutout_kernel(%arg0: i32, %arg1: memref<336x16xbf16, #tpu.memory_space<vmem>>, %arg2: memref<1x16x16xbf16, #tpu.memory_space<vmem>>, %arg3: memref<42x16x8xbf16, #tpu.memory_space<vmem>>, %arg4: memref<1x42x8x8xf32, #tpu.memory_space<vmem>>) attributes {dimension_semantics = [#tpu.dimension_semantics<parallel>], iteration_bounds = array<i64: 8>, scalar_prefetch = 0 : i64, scratch_operands = 0 : i64, tpu.core_type = #tpu.core_type<tc>, window_params = [{pipeline_mode = #tpu.pipeline_mode<synchronous>, transform_indices = @transform_0, window_bounds = array<i64: 336, 16>}, {transform_indices = @transform_1, window_bounds = array<i64: 1, 16, 16>}, {pipeline_mode = #tpu.pipeline_mode<synchronous>, transform_indices = @transform_2, window_bounds = array<i64: 42, 16, 8>}, {transform_indices = @transform_3, window_bounds = array<i64: 1, 42, 8, 8>}]} {
    %c0 = arith.constant 0 : index
    %c0_0 = arith.constant 0 : index
    %0 = vector.load %arg1[%c0, %c0_0] : memref<336x16xbf16, #tpu.memory_space<vmem>>, vector<336x16xbf16>
    %c0_1 = arith.constant 0 : index
    %c0_2 = arith.constant 0 : index
    %c0_3 = arith.constant 0 : index
    %1 = vector.load %arg2[%c0_1, %c0_2, %c0_3] : memref<1x16x16xbf16, #tpu.memory_space<vmem>>, vector<1x16x16xbf16>
    %2 = vector.shape_cast %1 : vector<1x16x16xbf16> to vector<16x16xbf16>
    %cst = arith.constant dense<0.000000e+00> : vector<336x16xf32>
    %3 = tpu.matmul %0, %2, %cst {dimension_numbers = #tpu.dot_dimension_numbers<[1], [0], [0], [1], [0, 0, 1, 1], [], []>} : vector<336x16xbf16>, vector<16x16xbf16>, vector<336x16xf32> -> vector<336x16xf32>
    %4 = vector.shape_cast %3 : vector<336x16xf32> to vector<42x8x16xf32>
    %c0_4 = arith.constant 0 : index
    %c0_5 = arith.constant 0 : index
    %c0_6 = arith.constant 0 : index
    %5 = vector.load %arg3[%c0_4, %c0_5, %c0_6] : memref<42x16x8xbf16, #tpu.memory_space<vmem>>, vector<42x16x8xbf16>
    %6 = arith.extf %5 : vector<42x16x8xbf16> to vector<42x16x8xf32>
    "tpu.trace_start"() <{level = 10 : i32, message = "ipw,iwq->ipq"}> : () -> ()
    %cst_7 = arith.constant dense<0.000000e+00> : vector<42x8x8xf32>
    %7 = tpu.matmul %4, %6, %cst_7 {dimension_numbers = #tpu.dot_dimension_numbers<[2], [1], [1], [2], [0, 0, 0, 1, 1, 2], [0], [0]>} : vector<42x8x16xf32>, vector<42x16x8xf32>, vector<42x8x8xf32> -> vector<42x8x8xf32>
    "tpu.trace_stop"() : () -> ()
    %c0_8 = arith.constant 0 : index
    %c0_9 = arith.constant 0 : index
    %c0_10 = arith.constant 0 : index
    %c0_11 = arith.constant 0 : index
    %8 = vector.load %arg4[%c0_8, %c0_9, %c0_10, %c0_11] : memref<1x42x8x8xf32, #tpu.memory_space<vmem>>, vector<1x42x8x8xf32>
    %9 = vector.shape_cast %8 : vector<1x42x8x8xf32> to vector<42x8x8xf32>
    %10 = vector.shape_cast %7 : vector<42x8x8xf32> to vector<1x42x8x8xf32>
    tpu.vector_store %arg4[%c0_8, %c0_9, %c0_10, %c0_11], %10 {strides = array<i32>} : memref<1x42x8x8xf32, #tpu.memory_space<vmem>>, vector<1x42x8x8xf32>,
    return
  }
  func.func @transform_0(%arg0: i32) -> (i32, i32) {
    %c0_i32 = arith.constant 0 : i32
    %c0_i32_0 = arith.constant 0 : i32
    %c0_i32_1 = arith.constant 0 : i32
    return %c0_i32, %c0_i32_0 : i32, i32
  }
  func.func @transform_1(%arg0: i32) -> (i32, i32, i32) {
    %c0_i32 = arith.constant 0 : i32
    %c0_i32_0 = arith.constant 0 : i32
    %c0_i32_1 = arith.constant 0 : i32
    return %arg0, %c0_i32, %c0_i32_0 : i32, i32, i32
  }
  func.func @transform_2(%arg0: i32) -> (i32, i32, i32) {
    %c0_i32 = arith.constant 0 : i32
    %c0_i32_0 = arith.constant 0 : i32
    %c0_i32_1 = arith.constant 0 : i32
    %c0_i32_2 = arith.constant 0 : i32
    return %c0_i32, %c0_i32_0, %c0_i32_1 : i32, i32, i32
  }
  func.func @transform_3(%arg0: i32) -> (i32, i32, i32, i32) {
    %c0_i32 = arith.constant 0 : i32
    %c0_i32_0 = arith.constant 0 : i32
    %c0_i32_1 = arith.constant 0 : i32
    %c0_i32_2 = arith.constant 0 : i32
    return %arg0, %c0_i32, %c0_i32_0, %c0_i32_1 : i32, i32, i32, i32
  }
}

</mosaic_0001>

<llo_original>
// kernel: make_cutouts.3
$region0: #{make_cutouts.3}
  #allocation0 [shape = 'u32[]', space=smem, size = 0x4, offset = 0x4, fixed_abs, tag = 'smem constant byte address 0x4 - core index']
  #allocation1 [shape = 'u32[144,128]{1,0:T(1,128)}', space=vmem, size = 0x12000, scoped, tag = 'internal scratch']
  %s0 = inlined_call_operand.vmem [shape: bf16[336,16], index: 0, kind: input, shape index: {}]
  %s1 = inlined_call_operand.vmem [shape: bf16[8,16,16], index: 1, kind: input, shape index: {}]
  %s2 = inlined_call_operand.vmem [shape: bf16[42,16,8], index: 2, kind: input, shape index: {}]
  %s3 = inlined_call_operand.vmem [shape: f32[8,42,8,8], index: 3, kind: output, shape index: {}]
  %s4 = sld [smem:[#allocation0]]
  $region45: #{make_cutouts.3} parent=0
    _
  %s6 = ssub.s32 1, %s4
  %s7 = scalar_select 0, %s6, %s4
  loop: start=0, step=1, limit=10
  $region2: #{make_cutouts.3} parent=0 // loop_pre_header
    _
  $region3: #{make_cutouts.3} parent=0 // loop_header
    %s9 = sphi 0, %s13
    %p10 = scmp.ge.s32.totalorder %s9, 10
    %s17 = sphi 0, %s17
    %s19 = sphi 0, %s17
    %s20 = sphi 0, %s19
    %s34 = sphi 0, %s20
    %s40 = sphi 0, %s42
    %s43 = sphi 0, %s40
    %s44 = sphi 0, %s43
    %s60 = sphi 0, %s44
    %s64 = sphi 0, %s64
    %s66 = sphi 0, %s64
    %s67 = sphi 0, %s66
    %s81 = sphi 0, %s67
    %s87 = sphi 0, %s89
    %s90 = sphi 0, %s87
    %s91 = sphi 0, %s90
    %s107 = sphi 0, %s91
  $region4: #{make_cutouts.3} parent=0 // loop_header_branch
    %12 = sbr.rel (%p10) target = $region8
  $region5: #{make_cutouts.3} parent=0 // loop_body
    %s14 = ssub.s32 %s9, 1
    %s15 = ssub.s32 %s9, 2
    %s16 = sadd.s32 %s9, 1
    %s18 = sadd.s32 %s17, 1
    %p21 = scmp.eq.s32.totalorder %s9, 7
    %p22 = scmp.ne.s32.totalorder %s17, %s19
    %p23 = scmp.eq.s32.totalorder %s9, 0
    %p24 = por %p22, %p23
    %p25 = scmp.ne.s32.totalorder %s17, %s19
    %p26 = scmp.eq.s32.totalorder %s14, 7
    %p27 = por %p25, %p26
    %p28 = scmp.ne.s32.totalorder %s19, %s20
    %p29 = scmp.eq.s32.totalorder %s14, 0
    %p30 = por %p28, %p29
    %p31 = scmp.ne.s32.totalorder %s19, %s20
    %p32 = scmp.eq.s32.totalorder %s15, 7
    %p33 = por %p31, %p32
    %p35 = scmp.ne.s32.totalorder %s20, %s34
    %p36 = scmp.eq.s32.totalorder %s15, 0
    %p37 = por %p35, %p36
    %s38 = ssub.s32 %s9, %s16
    %p39 = scmp.eq.s32.totalorder %s38, 0
    %s41 = sadd.s32 %s40, 1
    %s42 = scalar_select %p39, %s40, %s41
    %p45 = pneg %p39
    %p46 = scmp.eq.s32.totalorder %s9, 7
    %p47 = por %p45, %p46
    %p48 = scmp.ne.s32.totalorder %s40, %s43
    %p49 = scmp.eq.s32.totalorder %s9, 0
    %p50 = por %p48, %p49
    %p51 = scmp.ne.s32.totalorder %s40, %s43
    %p52 = scmp.eq.s32.totalorder %s14, 7
    %p53 = por %p51, %p52
    %p54 = scmp.ne.s32.totalorder %s43, %s44
    %p55 = scmp.eq.s32.totalorder %s14, 0
    %p56 = por %p54, %p55
    %p57 = scmp.ne.s32.totalorder %s43, %s44
    %p58 = scmp.eq.s32.totalorder %s15, 7
    %p59 = por %p57, %p58
    %p61 = scmp.ne.s32.totalorder %s44, %s60
    %p62 = scmp.eq.s32.totalorder %s15, 0
    %p63 = por %p61, %p62
    %s65 = sadd.s32 %s64, 1
    %p68 = scmp.eq.s32.totalorder %s9, 7
    %p69 = scmp.ne.s32.totalorder %s64, %s66
    %p70 = scmp.eq.s32.totalorder %s9, 0
    %p71 = por %p69, %p70
    %p72 = scmp.ne.s32.totalorder %s64, %s66
    %p73 = scmp.eq.s32.totalorder %s14, 7
    %p74 = por %p72, %p73
    %p75 = scmp.ne.s32.totalorder %s66, %s67
    %p76 = scmp.eq.s32.totalorder %s14, 0
    %p77 = por %p75, %p76
    %p78 = scmp.ne.s32.totalorder %s66, %s67
    %p79 = scmp.eq.s32.totalorder %s15, 7
    %p80 = por %p78, %p79
    %p82 = scmp.ne.s32.totalorder %s67, %s81
    %p83 = scmp.eq.s32.totalorder %s15, 0
    %p84 = por %p82, %p83
    %s85 = ssub.s32 %s9, %s16
    %p86 = scmp.eq.s32.totalorder %s85, 0
    %s88 = sadd.s32 %s87, 1
    %s89 = scalar_select %p86, %s87, %s88
    %p92 = pneg %p86
    %p93 = scmp.eq.s32.totalorder %s9, 7
    %p94 = por %p92, %p93
    %p95 = scmp.ne.s32.totalorder %s87, %s90
    %p96 = scmp.eq.s32.totalorder %s9, 0
    %p97 = por %p95, %p96
    %p98 = scmp.ne.s32.totalorder %s87, %s90
    %p99 = scmp.eq.s32.totalorder %s14, 7
    %p100 = por %p98, %p99
    %p101 = scmp.ne.s32.totalorder %s90, %s91
    %p102 = scmp.eq.s32.totalorder %s14, 0
    %p103 = por %p101, %p102
    %p104 = scmp.ne.s32.totalorder %s90, %s91
    %p105 = scmp.eq.s32.totalorder %s15, 7
    %p106 = por %p104, %p105
    %p108 = scmp.ne.s32.totalorder %s91, %s107
    %p109 = scmp.eq.s32.totalorder %s15, 0
    %p110 = por %p108, %p109
    %p111 = scmp.le.s32.totalorder 1, %s9
    %p112 = scmp.lt.s32.totalorder %s9, 9
    %p113 = pnand %p111, %p112
    %p114 = pneg %p113
    // Predicated region
    $region9: #{make_cutouts.3} parent=5 // pred_check
      _
    $region10: #{make_cutouts.3} parent=5 // pred_check_branch
      %116 = sbr.rel (%p113) target = $region12
    $region11: #{make_cutouts.3} parent=5 // pred_region
      %s117 = ssub.s32 %s9, 1
      // Predicated region
      $region13: #{make_cutouts.3} parent=11 // pred_check
        %p118 = pneg %p30
      $region14: #{make_cutouts.3} parent=11 // pred_check_branch
        %120 = sbr.rel (%p118) target = $region16
      $region15: #{make_cutouts.3} parent=11 // pred_region
        _
      $region16: #{make_cutouts.3} parent=11 // pred_fallthru
        _
      // Predicated region
      $region17: #{make_cutouts.3} parent=11 // pred_check
        %p121 = pneg %p77
      $region18: #{make_cutouts.3} parent=11 // pred_check_branch
        %123 = sbr.rel (%p121) target = $region20
      $region19: #{make_cutouts.3} parent=11 // pred_region
        _
      $region20: #{make_cutouts.3} parent=11 // pred_fallthru
        _
    $region12: #{make_cutouts.3} parent=5 // pred_fallthru
      _
    %p124 = scmp.lt.s32.totalorder %s9, 8
    // Predicated region
    $region21: #{make_cutouts.3} parent=5 // pred_check
      %p125 = pneg %p124
    $region22: #{make_cutouts.3} parent=5 // pred_check_branch
      %127 = sbr.rel (%p125) target = $region24
    $region23: #{make_cutouts.3} parent=5 // pred_region
      // Predicated region
      $region25: #{make_cutouts.3} parent=23 // pred_check
        %p128 = pneg %p50
      $region26: #{make_cutouts.3} parent=23 // pred_check_branch
        %130 = sbr.rel (%p128) target = $region28
      $region27: #{make_cutouts.3} parent=23 // pred_region
        %p131 = scmp.lt.s32.totalorder %s9, 7
        %s132 = scalar_select %p131, %s9, 7
        %s133 = smul.addr %s132, 2
        %s134 = smul.addr %s133, 4
        %s135 = scalar_lea.vmem %s1, %s134
      $region28: #{make_cutouts.3} parent=23 // pred_fallthru
        _
    $region24: #{make_cutouts.3} parent=5 // pred_fallthru
      _
    %p136 = scmp.le.s32.totalorder 1, %s9
    %p137 = scmp.lt.s32.totalorder %s9, 9
    %p138 = pnand %p136, %p137
    %p139 = pneg %p138
    // Predicated region
    $region29: #{make_cutouts.3} parent=5 // pred_check
      _
    $region30: #{make_cutouts.3} parent=5 // pred_check_branch
      %141 = sbr.rel (%p138) target = $region32
    $region31: #{make_cutouts.3} parent=5 // pred_region
      %s142 = ssub.s32 %s9, 1
      %p143 = pneg %p30
      %p144 = pneg %p27
      %p145 = scmp.lt.s32.totalorder %s14, 7
      %s146 = scalar_select %p145, %s14, 7
      %s147 = smul.addr %s146, 2
      %s148 = smul.addr %s147, 4
      %s149 = scalar_lea.vmem %s1, %s148
      %p150 = pneg %p56
      %p151 = pneg %p53
      %p152 = pneg %p77
      %p153 = pneg %p74
      %p154 = pneg %p103
      %p155 = pneg %p100
      %p156 = scmp.lt.s32.totalorder %s14, 7
      %s157 = scalar_select %p156, %s14, 7
      %s158 = smul.addr %s157, 42
      %s159 = smul.addr %s158, 8
      %s160 = scalar_lea.vmem %s3, %s159
      %p161 = scmp.lt.s32.totalorder %s14, 7
      %s162 = scalar_select %p161, %s14, 7
      %s163 = smul.addr %s162, 2
      %s164 = smul.addr %s163, 4
      %s165 = scalar_lea.vmem %s1, %s164
      %p166 = scmp.lt.s32.totalorder %s14, 7
      %s167 = scalar_select %p166, %s14, 7
      %s168 = smul.addr %s167, 42
      %s169 = smul.addr %s168, 8
      %s170 = scalar_lea.vmem %s3, %s169
      %v172 = vld [vmem:[%s0] sm:$0xf]
      %v173 = vld [vmem:[%s0 + $0x4] sm:$0xf]
      %v174 = vld [vmem:[%s0 + $0x8] sm:$0xf]
      %v175 = vld [vmem:[%s0 + $0xc] sm:$0xf]
      %v176 = vld [vmem:[%s0 + $0x10] sm:$0xf]
      %v177 = vld [vmem:[%s0 + $0x14] sm:$0xf]
      %v178 = vld [vmem:[%s0 + $0x18] sm:$0xf]
      %v179 = vld [vmem:[%s0 + $0x1c] sm:$0xf]
      %v180 = vld [vmem:[%s0 + $0x20] sm:$0xf]
      %v181 = vld [vmem:[%s0 + $0x24] sm:$0xf]
      %v182 = vld [vmem:[%s0 + $0x28] sm:$0xf]
      %v183 = vld [vmem:[%s0 + $0x2c] sm:$0xf]
      %v184 = vld [vmem:[%s0 + $0x30] sm:$0xf]
      %v185 = vld [vmem:[%s0 + $0x34] sm:$0xf]
      %v186 = vld [vmem:[%s0 + $0x38] sm:$0xf]
      %v187 = vld [vmem:[%s0 + $0x3c] sm:$0xf]
      %v188 = vld [vmem:[%s0 + $0x40] sm:$0xf]
      %v189 = vld [vmem:[%s0 + $0x44] sm:$0xf]
      %v190 = vld [vmem:[%s0 + $0x48] sm:$0xf]
      %v191 = vld [vmem:[%s0 + $0x4c] sm:$0xf]
      %v192 = vld [vmem:[%s0 + $0x50] sm:$0xf]
      %v193 = vld [vmem:[%s0 + $0x54] sm:$0xf]
      %v194 = vld [vmem:[%s0 + $0x58] sm:$0xf]
      %v195 = vld [vmem:[%s0 + $0x5c] sm:$0xf]
      %v196 = vld [vmem:[%s0 + $0x60] sm:$0xf]
      %v197 = vld [vmem:[%s0 + $0x64] sm:$0xf]
      %v198 = vld [vmem:[%s0 + $0x68] sm:$0xf]
      %v199 = vld [vmem:[%s0 + $0x6c] sm:$0xf]
      %v200 = vld [vmem:[%s0 + $0x70] sm:$0xf]
      %v201 = vld [vmem:[%s0 + $0x74] sm:$0xf]
      %v202 = vld [vmem:[%s0 + $0x78] sm:$0xf]
      %v203 = vld [vmem:[%s0 + $0x7c] sm:$0xf]
      %v204 = vld [vmem:[%s0 + $0x80] sm:$0xf]
      %v205 = vld [vmem:[%s0 + $0x84] sm:$0xf]
      %v206 = vld [vmem:[%s0 + $0x88] sm:$0xf]
      %v207 = vld [vmem:[%s0 + $0x8c] sm:$0xf]
      %v208 = vld [vmem:[%s0 + $0x90] sm:$0xf]
      %v209 = vld [vmem:[%s0 + $0x94] sm:$0xf]
      %v210 = vld [vmem:[%s0 + $0x98] sm:$0xf]
      %v211 = vld [vmem:[%s0 + $0x9c] sm:$0xf]
      %v212 = vld [vmem:[%s0 + $0xa0] sm:$0xf]
      %v213 = vld [vmem:[%s0 + $0xa4] sm:$0xf]
      %v214 = vld [vmem:[%s165] sm:$0xf]
      %v215 = vld [vmem:[%s165 + $0x4] sm:$0xf]
      %v258 = vunpack.c.l.b16 %v172
      %v259 = vunpack.c.l.b16 %v173
      %v260 = vunpack.c.l.b16 %v174
      %v261 = vunpack.c.l.b16 %v175
      %v262 = vunpack.c.l.b16 %v176
      %v263 = vunpack.c.l.b16 %v177
      %v264 = vunpack.c.l.b16 %v178
      %v265 = vunpack.c.l.b16 %v179
      %v266 = vunpack.c.l.b16 %v180
      %v267 = vunpack.c.l.b16 %v181
      %v268 = vunpack.c.l.b16 %v182
      %v269 = vunpack.c.l.b16 %v183
      %v270 = vunpack.c.l.b16 %v184
      %v271 = vunpack.c.l.b16 %v185
      %v272 = vunpack.c.l.b16 %v186
      %v273 = vunpack.c.l.b16 %v187
      %v274 = vunpack.c.l.b16 %v188
      %v275 = vunpack.c.l.b16 %v189
      %v276 = vunpack.c.l.b16 %v190
      %v277 = vunpack.c.l.b16 %v191
      %v278 = vunpack.c.l.b16 %v192
      %v279 = vunpack.c.l.b16 %v193
      %v280 = vunpack.c.l.b16 %v194
      %v281 = vunpack.c.l.b16 %v195
      %v282 = vunpack.c.l.b16 %v196
      %v283 = vunpack.c.l.b16 %v197
      %v284 = vunpack.c.l.b16 %v198
      %v285 = vunpack.c.l.b16 %v199
      %v286 = vunpack.c.l.b16 %v200
      %v287 = vunpack.c.l.b16 %v201
      %v288 = vunpack.c.l.b16 %v202
      %v289 = vunpack.c.l.b16 %v203
      %v290 = vunpack.c.l.b16 %v204
      %v291 = vunpack.c.l.b16 %v205
      %v292 = vunpack.c.l.b16 %v206
      %v293 = vunpack.c.l.b16 %v207
      %v294 = vunpack.c.l.b16 %v208
      %v295 = vunpack.c.l.b16 %v209
      %v296 = vunpack.c.l.b16 %v210
      %v297 = vunpack.c.l.b16 %v211
      %v298 = vunpack.c.l.b16 %v212
      %v299 = vunpack.c.l.b16 %v213
      %v300 = vpack.c.b16 %v259, %v258
      %v301 = vpack.c.b16 %v261, %v260
      %v302 = vpack.c.b16 %v263, %v262
      %v303 = vpack.c.b16 %v265, %v264
      %v304 = vpack.c.b16 %v267, %v266
      %v305 = vpack.c.b16 %v269, %v268
      %v306 = vpack.c.b16 %v271, %v270
      %v307 = vpack.c.b16 %v273, %v272
      %v308 = vpack.c.b16 %v275, %v274
      %v309 = vpack.c.b16 %v277, %v276
      %v310 = vpack.c.b16 %v279, %v278
      %v311 = vpack.c.b16 %v281, %v280
      %v312 = vpack.c.b16 %v283, %v282
      %v313 = vpack.c.b16 %v285, %v284
      %v314 = vpack.c.b16 %v287, %v286
      %v315 = vpack.c.b16 %v289, %v288
      %v316 = vpack.c.b16 %v291, %v290
      %v317 = vpack.c.b16 %v293, %v292
      %v318 = vpack.c.b16 %v295, %v294
      %v319 = vpack.c.b16 %v297, %v296
      %v320 = vpack.c.b16 %v299, %v298
      %v323 = vunpack.c.l.b16 %v214
      %v324 = vunpack.c.l.b16 %v215
      %v325 = vpack.c.b16 %v324, %v323
      %vm327 = vcmask 130048
      %v329 = vsel %vm327, %v300, 0
      %v332 = vsel %vm327, %v301, 0
      %v335 = vsel %vm327, %v302, 0
      %v338 = vsel %vm327, %v303, 0
      %v341 = vsel %vm327, %v304, 0
      %v344 = vsel %vm327, %v305, 0
      %v347 = vsel %vm327, %v306, 0
      %v350 = vsel %vm327, %v307, 0
      %v353 = vsel %vm327, %v308, 0
      %v356 = vsel %vm327, %v309, 0
      %v359 = vsel %vm327, %v310, 0
      %v362 = vsel %vm327, %v311, 0
      %v365 = vsel %vm327, %v312, 0
      %v368 = vsel %vm327, %v313, 0
      %v371 = vsel %vm327, %v314, 0
      %v374 = vsel %vm327, %v315, 0
      %v377 = vsel %vm327, %v316, 0
      %v380 = vsel %vm327, %v317, 0
      %v383 = vsel %vm327, %v318, 0
      %v386 = vsel %vm327, %v319, 0
      %v389 = vsel %vm327, %v320, 0
      %391 = vmatprep.subr.bf16.mxu0 0
      %392 = vmatpush1.bf16.msra.mxu0 %v325
      %393 = vmatprep.subr.bf16.mxu0 0
      %394 = vmatpush1.bf16.msra.mxu0 0
      %395 = vmatprep.subr.bf16.mxu0 0
      %396 = vmatpush1.bf16.msra.mxu0 0
      %397 = vmatprep.subr.bf16.mxu0 0
      %398 = vmatpush1.bf16.msra.mxu0 0
      %399 = vmatprep.subr.bf16.mxu0 0
      %400 = vmatpush1.bf16.msra.mxu0 0
      %401 = vmatprep.subr.bf16.mxu0 0
      %402 = vmatpush1.bf16.msra.mxu0 0
      %403 = vmatprep.subr.bf16.mxu0 0
      %404 = vmatpush1.bf16.msra.mxu0 0
      %405 = vmatprep.subr.bf16.mxu0 0
      %406 = vmatpush1.bf16.msra.mxu0 0
      %407 = vmatprep.subr.bf16.mxu0 0
      %408 = vmatpush1.bf16.msra.mxu0 0
      %409 = vmatprep.subr.bf16.mxu0 0
      %410 = vmatpush1.bf16.msra.mxu0 0
      %411 = vmatprep.subr.bf16.mxu0 0
      %412 = vmatpush1.bf16.msra.mxu0 0
      %413 = vmatprep.subr.bf16.mxu0 0
      %414 = vmatpush1.bf16.msra.mxu0 0
      %415 = vmatprep.subr.bf16.mxu0 0
      %416 = vmatpush1.bf16.msra.mxu0 0
      %417 = vmatprep.subr.bf16.mxu0 0
      %418 = vmatpush1.bf16.msra.mxu0 0
      %419 = vmatprep.subr.bf16.mxu0 0
      %420 = vmatpush1.bf16.msra.mxu0 0
      %421 = vmatprep.subr.bf16.mxu0 0
      %422 = vmatpush1.bf16.msra.mxu0 0
      %423 = vmatprep.mubr.bf16.mxu0 0
      %424 = vmatmul.mubr.bf16.gmra.mrb[0].mxu0 %v329
      %v425 = vpop.f32.mrb[0].mxu0
      %v426 = vadd.f32 0.0, %v425
      %v427 = vpop.f32.mrb[0].mxu0
      %v428 = vpop.f32.mrb[0].mxu0
      %v429 = vadd.f32 0.0, %v428
      %v430 = vpop.f32.mrb[0].mxu0
      %431 = vmatprep.mubr.bf16.mxu0 0
      %432 = vmatmul.mubr.bf16.gmra.mrb[0].mxu0 %v332
      %v433 = vpop.f32.mrb[0].mxu0
      %v434 = vadd.f32 0.0, %v433
      %v435 = vpop.f32.mrb[0].mxu0
      %v436 = vpop.f32.mrb[0].mxu0
      %v437 = vadd.f32 0.0, %v436
      %v438 = vpop.f32.mrb[0].mxu0
      %439 = vmatprep.mubr.bf16.mxu0 0
      %440 = vmatmul.mubr.bf16.gmra.mrb[0].mxu0 %v335
      %v441 = vpop.f32.mrb[0].mxu0
      %v442 = vadd.f32 0.0, %v441
      %v443 = vpop.f32.mrb[0].mxu0
      %v444 = vpop.f32.mrb[0].mxu0
      %v445 = vadd.f32 0.0, %v444
      %v446 = vpop.f32.mrb[0].mxu0
      %447 = vmatprep.mubr.bf16.mxu0 0
      %448 = vmatmul.mubr.bf16.gmra.mrb[0].mxu0 %v338
      %v449 = vpop.f32.mrb[0].mxu0
      %v450 = vadd.f32 0.0, %v449
      %v451 = vpop.f32.mrb[0].mxu0
      %v452 = vpop.f32.mrb[0].mxu0
      %v453 = vadd.f32 0.0, %v452
      %v454 = vpop.f32.mrb[0].mxu0
      %455 = vmatprep.mubr.bf16.mxu0 0
      %456 = vmatmul.mubr.bf16.gmra.mrb[0].mxu0 %v341
      %v457 = vpop.f32.mrb[0].mxu0
      %v458 = vadd.f32 0.0, %v457
      %v459 = vpop.f32.mrb[0].mxu0
      %v460 = vpop.f32.mrb[0].mxu0
      %v461 = vadd.f32 0.0, %v460
      %v462 = vpop.f32.mrb[0].mxu0
      %463 = vmatprep.mubr.bf16.mxu0 0
      %464 = vmatmul.mubr.bf16.gmra.mrb[0].mxu0 %v344
      %v465 = vpop.f32.mrb[0].mxu0
      %v466 = vadd.f32 0.0, %v465
      %v467 = vpop.f32.mrb[0].mxu0
      %v468 = vpop.f32.mrb[0].mxu0
      %v469 = vadd.f32 0.0, %v468
      %v470 = vpop.f32.mrb[0].mxu0
      %471 = vmatprep.mubr.bf16.mxu0 0
      %472 = vmatmul.mubr.bf16.gmra.mrb[0].mxu0 %v347
      %v473 = vpop.f32.mrb[0].mxu0
      %v474 = vadd.f32 0.0, %v473
      %v475 = vpop.f32.mrb[0].mxu0
      %v476 = vpop.f32.mrb[0].mxu0
      %v477 = vadd.f32 0.0, %v476
      %v478 = vpop.f32.mrb[0].mxu0
      %479 = vmatprep.mubr.bf16.mxu0 0
      %480 = vmatmul.mubr.bf16.gmra.mrb[0].mxu0 %v350
      %v481 = vpop.f32.mrb[0].mxu0
      %v482 = vadd.f32 0.0, %v481
      %v483 = vpop.f32.mrb[0].mxu0
      %v484 = vpop.f32.mrb[0].mxu0
      %v485 = vadd.f32 0.0, %v484
      %v486 = vpop.f32.mrb[0].mxu0
      %487 = vmatprep.mubr.bf16.mxu0 0
      %488 = vmatmul.mubr.bf16.gmra.mrb[0].mxu0 %v353
      %v489 = vpop.f32.mrb[0].mxu0
      %v490 = vadd.f32 0.0, %v489
      %v491 = vpop.f32.mrb[0].mxu0
      %v492 = vpop.f32.mrb[0].mxu0
      %v493 = vadd.f32 0.0, %v492
      %v494 = vpop.f32.mrb[0].mxu0
      %495 = vmatprep.mubr.bf16.mxu0 0
      %496 = vmatmul.mubr.bf16.gmra.mrb[0].mxu0 %v356
      %v497 = vpop.f32.mrb[0].mxu0
      %v498 = vadd.f32 0.0, %v497
      %v499 = vpop.f32.mrb[0].mxu0
      %v500 = vpop.f32.mrb[0].mxu0
      %v501 = vadd.f32 0.0, %v500
      %v502 = vpop.f32.mrb[0].mxu0
      %503 = vmatprep.mubr.bf16.mxu0 0
      %504 = vmatmul.mubr.bf16.gmra.mrb[0].mxu0 %v359
      %v505 = vpop.f32.mrb[0].mxu0
      %v506 = vadd.f32 0.0, %v505
      %v507 = vpop.f32.mrb[0].mxu0
      %v508 = vpop.f32.mrb[0].mxu0
      %v509 = vadd.f32 0.0, %v508
      %v510 = vpop.f32.mrb[0].mxu0
      %511 = vmatprep.mubr.bf16.mxu0 0
      %512 = vmatmul.mubr.bf16.gmra.mrb[0].mxu0 %v362
      %v513 = vpop.f32.mrb[0].mxu0
      %v514 = vadd.f32 0.0, %v513
      %v515 = vpop.f32.mrb[0].mxu0
      %v516 = vpop.f32.mrb[0].mxu0
      %v517 = vadd.f32 0.0, %v516
      %v518 = vpop.f32.mrb[0].mxu0
      %519 = vmatprep.mubr.bf16.mxu0 0
      %520 = vmatmul.mubr.bf16.gmra.mrb[0].mxu0 %v365
      %v521 = vpop.f32.mrb[0].mxu0
      %v522 = vadd.f32 0.0, %v521
      %v523 = vpop.f32.mrb[0].mxu0
      %v524 = vpop.f32.mrb[0].mxu0
      %v525 = vadd.f32 0.0, %v524
      %v526 = vpop.f32.mrb[0].mxu0
      %527 = vmatprep.mubr.bf16.mxu0 0
      %528 = vmatmul.mubr.bf16.gmra.mrb[0].mxu0 %v368
      %v529 = vpop.f32.mrb[0].mxu0
      %v530 = vadd.f32 0.0, %v529
      %v531 = vpop.f32.mrb[0].mxu0
      %v532 = vpop.f32.mrb[0].mxu0
      %v533 = vadd.f32 0.0, %v532
      %v534 = vpop.f32.mrb[0].mxu0
      %535 = vmatprep.mubr.bf16.mxu0 0
      %536 = vmatmul.mubr.bf16.gmra.mrb[0].mxu0 %v371
      %v537 = vpop.f32.mrb[0].mxu0
      %v538 = vadd.f32 0.0, %v537
      %v539 = vpop.f32.mrb[0].mxu0
      %v540 = vpop.f32.mrb[0].mxu0
      %v541 = vadd.f32 0.0, %v540
      %v542 = vpop.f32.mrb[0].mxu0
      %543 = vmatprep.mubr.bf16.mxu0 0
      %544 = vmatmul.mubr.bf16.gmra.mrb[0].mxu0 %v374
      %v545 = vpop.f32.mrb[0].mxu0
      %v546 = vadd.f32 0.0, %v545
      %v547 = vpop.f32.mrb[0].mxu0
      %v548 = vpop.f32.mrb[0].mxu0
      %v549 = vadd.f32 0.0, %v548
      %v550 = vpop.f32.mrb[0].mxu0
      %551 = vmatprep.mubr.bf16.mxu0 0
      %552 = vmatmul.mubr.bf16.gmra.mrb[0].mxu0 %v377
      %v553 = vpop.f32.mrb[0].mxu0
      %v554 = vadd.f32 0.0, %v553
      %v555 = vpop.f32.mrb[0].mxu0
      %v556 = vpop.f32.mrb[0].mxu0
      %v557 = vadd.f32 0.0, %v556
      %v558 = vpop.f32.mrb[0].mxu0
      %559 = vmatprep.mubr.bf16.mxu0 0
      %560 = vmatmul.mubr.bf16.gmra.mrb[0].mxu0 %v380
      %v561 = vpop.f32.mrb[0].mxu0
      %v562 = vadd.f32 0.0, %v561
      %v563 = vpop.f32.mrb[0].mxu0
      %v564 = vpop.f32.mrb[0].mxu0
      %v565 = vadd.f32 0.0, %v564
      %v566 = vpop.f32.mrb[0].mxu0
      %567 = vmatprep.mubr.bf16.mxu0 0
      %568 = vmatmul.mubr.bf16.gmra.mrb[0].mxu0 %v383
      %v569 = vpop.f32.mrb[0].mxu0
      %v570 = vadd.f32 0.0, %v569
      %v571 = vpop.f32.mrb[0].mxu0
      %v572 = vpop.f32.mrb[0].mxu0
      %v573 = vadd.f32 0.0, %v572
      %v574 = vpop.f32.mrb[0].mxu0
      %575 = vmatprep.mubr.bf16.mxu0 0
      %576 = vmatmul.mubr.bf16.gmra.mrb[0].mxu0 %v386
      %v577 = vpop.f32.mrb[0].mxu0
      %v578 = vadd.f32 0.0, %v577
      %v579 = vpop.f32.mrb[0].mxu0
      %v580 = vpop.f32.mrb[0].mxu0
      %v581 = vadd.f32 0.0, %v580
      %v582 = vpop.f32.mrb[0].mxu0
      %583 = vmatprep.mubr.bf16.mxu0 0
      %584 = vmatmul.mubr.bf16.gmra.mrb[0].mxu0 %v389
      %v585 = vpop.f32.mrb[0].mxu0
      %v586 = vadd.f32 0.0, %v585
      %v587 = vpop.f32.mrb[0].mxu0
      %v588 = vpop.f32.mrb[0].mxu0
      %v589 = vadd.f32 0.0, %v588
      %v590 = vpop.f32.mrb[0].mxu0
      %591 = vdwg.mxu0
      %v592 = vld [vmem:[%s2] sm:$0xf]
      %v593 = vld [vmem:[%s2 + $0x4] sm:$0xf]
      %v594 = vld [vmem:[%s2 + $0x8] sm:$0xf]
      %v595 = vld [vmem:[%s2 + $0xc] sm:$0xf]
      %v596 = vld [vmem:[%s2 + $0x10] sm:$0xf]
      %v597 = vld [vmem:[%s2 + $0x14] sm:$0xf]
      %v598 = vld [vmem:[%s2 + $0x18] sm:$0xf]
      %v599 = vld [vmem:[%s2 + $0x1c] sm:$0xf]
      %v600 = vld [vmem:[%s2 + $0x20] sm:$0xf]
      %v601 = vld [vmem:[%s2 + $0x24] sm:$0xf]
      %v602 = vld [vmem:[%s2 + $0x28] sm:$0xf]
      %v603 = vld [vmem:[%s2 + $0x2c] sm:$0xf]
      %v604 = vld [vmem:[%s2 + $0x30] sm:$0xf]
      %v605 = vld [vmem:[%s2 + $0x34] sm:$0xf]
      %v606 = vld [vmem:[%s2 + $0x38] sm:$0xf]
      %v607 = vld [vmem:[%s2 + $0x3c] sm:$0xf]
      %v608 = vld [vmem:[%s2 + $0x40] sm:$0xf]
      %v609 = vld [vmem:[%s2 + $0x44] sm:$0xf]
      %v610 = vld [vmem:[%s2 + $0x48] sm:$0xf]
      %v611 = vld [vmem:[%s2 + $0x4c] sm:$0xf]
      %v612 = vld [vmem:[%s2 + $0x50] sm:$0xf]
      %v613 = vld [vmem:[%s2 + $0x54] sm:$0xf]
      %v614 = vld [vmem:[%s2 + $0x58] sm:$0xf]
      %v615 = vld [vmem:[%s2 + $0x5c] sm:$0xf]
      %v616 = vld [vmem:[%s2 + $0x60] sm:$0xf]
      %v617 = vld [vmem:[%s2 + $0x64] sm:$0xf]
      %v618 = vld [vmem:[%s2 + $0x68] sm:$0xf]
      %v619 = vld [vmem:[%s2 + $0x6c] sm:$0xf]
      %v620 = vld [vmem:[%s2 + $0x70] sm:$0xf]
      %v621 = vld [vmem:[%s2 + $0x74] sm:$0xf]
      %v622 = vld [vmem:[%s2 + $0x78] sm:$0xf]
      %v623 = vld [vmem:[%s2 + $0x7c] sm:$0xf]
      %v624 = vld [vmem:[%s2 + $0x80] sm:$0xf]
      %v625 = vld [vmem:[%s2 + $0x84] sm:$0xf]
      %v626 = vld [vmem:[%s2 + $0x88] sm:$0xf]
      %v627 = vld [vmem:[%s2 + $0x8c] sm:$0xf]
      %v628 = vld [vmem:[%s2 + $0x90] sm:$0xf]
      %v629 = vld [vmem:[%s2 + $0x94] sm:$0xf]
      %v630 = vld [vmem:[%s2 + $0x98] sm:$0xf]
      %v631 = vld [vmem:[%s2 + $0x9c] sm:$0xf]
      %v632 = vld [vmem:[%s2 + $0xa0] sm:$0xf]
      %v633 = vld [vmem:[%s2 + $0xa4] sm:$0xf]
      %v634 = vld [vmem:[%s2 + $0xa8] sm:$0xf]
      %v635 = vld [vmem:[%s2 + $0xac] sm:$0xf]
      %v636 = vld [vmem:[%s2 + $0xb0] sm:$0xf]
      %v637 = vld [vmem:[%s2 + $0xb4] sm:$0xf]
      %v638 = vld [vmem:[%s2 + $0xb8] sm:$0xf]
      %v639 = vld [vmem:[%s2 + $0xbc] sm:$0xf]
      %v640 = vld [vmem:[%s2 + $0xc0] sm:$0xf]
      %v641 = vld [vmem:[%s2 + $0xc4] sm:$0xf]
      %v642 = vld [vmem:[%s2 + $0xc8] sm:$0xf]
      %v643 = vld [vmem:[%s2 + $0xcc] sm:$0xf]
      %v644 = vld [vmem:[%s2 + $0xd0] sm:$0xf]
      %v645 = vld [vmem:[%s2 + $0xd4] sm:$0xf]
      %v646 = vld [vmem:[%s2 + $0xd8] sm:$0xf]
      %v647 = vld [vmem:[%s2 + $0xdc] sm:$0xf]
      %v648 = vld [vmem:[%s2 + $0xe0] sm:$0xf]
      %v649 = vld [vmem:[%s2 + $0xe4] sm:$0xf]
      %v650 = vld [vmem:[%s2 + $0xe8] sm:$0xf]
      %v651 = vld [vmem:[%s2 + $0xec] sm:$0xf]
      %v652 = vld [vmem:[%s2 + $0xf0] sm:$0xf]
      %v653 = vld [vmem:[%s2 + $0xf4] sm:$0xf]
      %v654 = vld [vmem:[%s2 + $0xf8] sm:$0xf]
      %v655 = vld [vmem:[%s2 + $0xfc] sm:$0xf]
      %v656 = vld [vmem:[%s2 + $0x100] sm:$0xf]
      %v657 = vld [vmem:[%s2 + $0x104] sm:$0xf]
      %v658 = vld [vmem:[%s2 + $0x108] sm:$0xf]
      %v659 = vld [vmem:[%s2 + $0x10c] sm:$0xf]
      %v660 = vld [vmem:[%s2 + $0x110] sm:$0xf]
      %v661 = vld [vmem:[%s2 + $0x114] sm:$0xf]
      %v662 = vld [vmem:[%s2 + $0x118] sm:$0xf]
      %v663 = vld [vmem:[%s2 + $0x11c] sm:$0xf]
      %v664 = vld [vmem:[%s2 + $0x120] sm:$0xf]
      %v665 = vld [vmem:[%s2 + $0x124] sm:$0xf]
      %v666 = vld [vmem:[%s2 + $0x128] sm:$0xf]
      %v667 = vld [vmem:[%s2 + $0x12c] sm:$0xf]
      %v668 = vld [vmem:[%s2 + $0x130] sm:$0xf]
      %v669 = vld [vmem:[%s2 + $0x134] sm:$0xf]
      %v670 = vld [vmem:[%s2 + $0x138] sm:$0xf]
      %v671 = vld [vmem:[%s2 + $0x13c] sm:$0xf]
      %v672 = vld [vmem:[%s2 + $0x140] sm:$0xf]
      %v673 = vld [vmem:[%s2 + $0x144] sm:$0xf]
      %v674 = vld [vmem:[%s2 + $0x148] sm:$0xf]
      %v675 = vld [vmem:[%s2 + $0x14c] sm:$0xf]
      %v676 = vunpack.c.l.bf16 %v592
      %v677 = vunpack.c.l.bf16 %v593
      %v678 = vunpack.c.l.bf16 %v594
      %v679 = vunpack.c.l.bf16 %v595
      %v680 = vunpack.c.l.bf16 %v596
      %v681 = vunpack.c.l.bf16 %v597
      %v682 = vunpack.c.l.bf16 %v598
      %v683 = vunpack.c.l.bf16 %v599
      %v684 = vunpack.c.l.bf16 %v600
      %v685 = vunpack.c.l.bf16 %v601
      %v686 = vunpack.c.l.bf16 %v602
      %v687 = vunpack.c.l.bf16 %v603
      %v688 = vunpack.c.l.bf16 %v604
      %v689 = vunpack.c.l.bf16 %v605
      %v690 = vunpack.c.l.bf16 %v606
      %v691 = vunpack.c.l.bf16 %v607
      %v692 = vunpack.c.l.bf16 %v608
      %v693 = vunpack.c.l.bf16 %v609
      %v694 = vunpack.c.l.bf16 %v610
      %v695 = vunpack.c.l.bf16 %v611
      %v696 = vunpack.c.l.bf16 %v612
      %v697 = vunpack.c.l.bf16 %v613
      %v698 = vunpack.c.l.bf16 %v614
      %v699 = vunpack.c.l.bf16 %v615
      %v700 = vunpack.c.l.bf16 %v616
      %v701 = vunpack.c.l.bf16 %v617
      %v702 = vunpack.c.l.bf16 %v618
      %v703 = vunpack.c.l.bf16 %v619
      %v704 = vunpack.c.l.bf16 %v620
      %v705 = vunpack.c.l.bf16 %v621
      %v706 = vunpack.c.l.bf16 %v622
      %v707 = vunpack.c.l.bf16 %v623
      %v708 = vunpack.c.l.bf16 %v624
      %v709 = vunpack.c.l.bf16 %v625
      %v710 = vunpack.c.l.bf16 %v626
      %v711 = vunpack.c.l.bf16 %v627
      %v712 = vunpack.c.l.bf16 %v628
      %v713 = vunpack.c.l.bf16 %v629
      %v714 = vunpack.c.l.bf16 %v630
      %v715 = vunpack.c.l.bf16 %v631
      %v716 = vunpack.c.l.bf16 %v632
      %v717 = vunpack.c.l.bf16 %v633
      %v718 = vunpack.c.l.bf16 %v634
      %v719 = vunpack.c.l.bf16 %v635
      %v720 = vunpack.c.l.bf16 %v636
      %v721 = vunpack.c.l.bf16 %v637
      %v722 = vunpack.c.l.bf16 %v638
      %v723 = vunpack.c.l.bf16 %v639
      %v724 = vunpack.c.l.bf16 %v640
      %v725 = vunpack.c.l.bf16 %v641
      %v726 = vunpack.c.l.bf16 %v642
      %v727 = vunpack.c.l.bf16 %v643
      %v728 = vunpack.c.l.bf16 %v644
      %v729 = vunpack.c.l.bf16 %v645
      %v730 = vunpack.c.l.bf16 %v646
      %v731 = vunpack.c.l.bf16 %v647
      %v732 = vunpack.c.l.bf16 %v648
      %v733 = vunpack.c.l.bf16 %v649
      %v734 = vunpack.c.l.bf16 %v650
      %v735 = vunpack.c.l.bf16 %v651
      %v736 = vunpack.c.l.bf16 %v652
      %v737 = vunpack.c.l.bf16 %v653
      %v738 = vunpack.c.l.bf16 %v654
      %v739 = vunpack.c.l.bf16 %v655
      %v740 = vunpack.c.l.bf16 %v656
      %v741 = vunpack.c.l.bf16 %v657
      %v742 = vunpack.c.l.bf16 %v658
      %v743 = vunpack.c.l.bf16 %v659
      %v744 = vunpack.c.l.bf16 %v660
      %v745 = vunpack.c.l.bf16 %v661
      %v746 = vunpack.c.l.bf16 %v662
      %v747 = vunpack.c.l.bf16 %v663
      %v748 = vunpack.c.l.bf16 %v664
      %v749 = vunpack.c.l.bf16 %v665
      %v750 = vunpack.c.l.bf16 %v666
      %v751 = vunpack.c.l.bf16 %v667
      %v752 = vunpack.c.l.bf16 %v668
      %v753 = vunpack.c.l.bf16 %v669
      %v754 = vunpack.c.l.bf16 %v670
      %v755 = vunpack.c.l.bf16 %v671
      %v756 = vunpack.c.l.bf16 %v672
      %v757 = vunpack.c.l.bf16 %v673
      %v758 = vunpack.c.l.bf16 %v674
      %v759 = vunpack.c.l.bf16 %v675
      %v761 = vsel %vm327, %v426, 0
      %763 = vmatprep.subr.mxu0 0.0
      %764 = vmatpush1.msra.mxu0 %v676
      %765 = vmatprep.subr.mxu0 0.0
      %766 = vmatpush1.msra.mxu0 %v677
      %767 = vmatprep.subr.mxu0 0.0
      %768 = vmatpush1.msra.mxu0 0.0
      %769 = vmatprep.subr.mxu0 0.0
      %770 = vmatpush1.msra.mxu0 0.0
      %771 = vmatprep.subr.mxu0 0.0
      %772 = vmatpush1.msra.mxu0 0.0
      %773 = vmatprep.subr.mxu0 0.0
      %774 = vmatpush1.msra.mxu0 0.0
      %775 = vmatprep.subr.mxu0 0.0
      %776 = vmatpush1.msra.mxu0 0.0
      %777 = vmatprep.subr.mxu0 0.0
      %778 = vmatpush1.msra.mxu0 0.0
      %779 = vmatprep.subr.mxu0 0.0
      %780 = vmatpush1.msra.mxu0 0.0
      %781 = vmatprep.subr.mxu0 0.0
      %782 = vmatpush1.msra.mxu0 0.0
      %783 = vmatprep.subr.mxu0 0.0
      %784 = vmatpush1.msra.mxu0 0.0
      %785 = vmatprep.subr.mxu0 0.0
      %786 = vmatpush1.msra.mxu0 0.0
      %787 = vmatprep.subr.mxu0 0.0
      %788 = vmatpush1.msra.mxu0 0.0
      %789 = vmatprep.subr.mxu0 0.0
      %790 = vmatpush1.msra.mxu0 0.0
      %791 = vmatprep.subr.mxu0 0.0
      %792 = vmatpush1.msra.mxu0 0.0
      %793 = vmatprep.subr.mxu0 0.0
      %794 = vmatpush1.msra.mxu0 0.0
      %795 = vmatprep.subr.mxu0 0.0
      %796 = vmatpush1.msra.mxu0 0.0
      %797 = vmatprep.subr.mxu0 0.0
      %798 = vmatpush1.msra.mxu0 0.0
      %799 = vmatprep.subr.mxu0 0.0
      %800 = vmatpush1.msra.mxu0 0.0
      %801 = vmatprep.subr.mxu0 0.0
      %802 = vmatpush1.msra.mxu0 0.0
      %803 = vmatprep.subr.mxu0 0.0
      %804 = vmatpush1.msra.mxu0 0.0
      %805 = vmatprep.subr.mxu0 0.0
      %806 = vmatpush1.msra.mxu0 0.0
      %807 = vmatprep.subr.mxu0 0.0
      %808 = vmatpush1.msra.mxu0 0.0
      %809 = vmatprep.subr.mxu0 0.0
      %810 = vmatpush1.msra.mxu0 0.0
      %811 = vmatprep.subr.mxu0 0.0
      %812 = vmatpush1.msra.mxu0 0.0
      %813 = vmatprep.subr.mxu0 0.0
      %814 = vmatpush1.msra.mxu0 0.0
      %815 = vmatprep.subr.mxu0 0.0
      %816 = vmatpush1.msra.mxu0 0.0
      %817 = vmatprep.subr.mxu0 0.0
      %818 = vmatpush1.msra.mxu0 0.0
      %819 = vmatprep.subr.mxu0 0.0
      %820 = vmatpush1.msra.mxu0 0.0
      %821 = vmatprep.subr.mxu0 0.0
      %822 = vmatpush1.msra.mxu0 0.0
      %823 = vmatprep.subr.mxu0 0.0
      %824 = vmatpush1.msra.mxu0 0.0
      %825 = vmatprep.subr.mxu0 0.0
      %826 = vmatpush1.msra.mxu0 0.0
      %827 = vmatprep.mubr.f32.mxu0 0.0
      %828 = vmatmul.mubr.f32.gmra.mrb[0].mxu0 %v761
      %v829 = vpop.f32.mrb[0].mxu0
      %v830 = vadd.f32 0.0, %v829
      %v831 = vpop.f32.mrb[0].mxu0
      %832 = vdwg.mxu0
      %v834 = vsel %vm327, %v429, 0
      %836 = vmatprep.subr.mxu0 0.0
      %837 = vmatpush1.msra.mxu0 %v678
      %838 = vmatprep.subr.mxu0 0.0
      %839 = vmatpush1.msra.mxu0 %v679
      %840 = vmatprep.subr.mxu0 0.0
      %841 = vmatpush1.msra.mxu0 0.0
      %842 = vmatprep.subr.mxu0 0.0
      %843 = vmatpush1.msra.mxu0 0.0
      %844 = vmatprep.subr.mxu0 0.0
      %845 = vmatpush1.msra.mxu0 0.0
      %846 = vmatprep.subr.mxu0 0.0
      %847 = vmatpush1.msra.mxu0 0.0
      %848 = vmatprep.subr.mxu0 0.0
      %849 = vmatpush1.msra.mxu0 0.0
      %850 = vmatprep.subr.mxu0 0.0
      %851 = vmatpush1.msra.mxu0 0.0
      %852 = vmatprep.subr.mxu0 0.0
      %853 = vmatpush1.msra.mxu0 0.0
      %854 = vmatprep.subr.mxu0 0.0
      %855 = vmatpush1.msra.mxu0 0.0
      %856 = vmatprep.subr.mxu0 0.0
      %857 = vmatpush1.msra.mxu0 0.0
      %858 = vmatprep.subr.mxu0 0.0
      %859 = vmatpush1.msra.mxu0 0.0
      %860 = vmatprep.subr.mxu0 0.0
      %861 = vmatpush1.msra.mxu0 0.0
      %862 = vmatprep.subr.mxu0 0.0
      %863 = vmatpush1.msra.mxu0 0.0
      %864 = vmatprep.subr.mxu0 0.0
      %865 = vmatpush1.msra.mxu0 0.0
      %866 = vmatprep.subr.mxu0 0.0
      %867 = vmatpush1.msra.mxu0 0.0
      %868 = vmatprep.subr.mxu0 0.0
      %869 = vmatpush1.msra.mxu0 0.0
      %870 = vmatprep.subr.mxu0 0.0
      %871 = vmatpush1.msra.mxu0 0.0
      %872 = vmatprep.subr.mxu0 0.0
      %873 = vmatpush1.msra.mxu0 0.0
      %874 = vmatprep.subr.mxu0 0.0
      %875 = vmatpush1.msra.mxu0 0.0
      %876 = vmatprep.subr.mxu0 0.0
      %877 = vmatpush1.msra.mxu0 0.0
      %878 = vmatprep.subr.mxu0 0.0
      %879 = vmatpush1.msra.mxu0 0.0
      %880 = vmatprep.subr.mxu0 0.0
      %881 = vmatpush1.msra.mxu0 0.0
      %882 = vmatprep.subr.mxu0 0.0
      %883 = vmatpush1.msra.mxu0 0.0
      %884 = vmatprep.subr.mxu0 0.0
      %885 = vmatpush1.msra.mxu0 0.0
      %886 = vmatprep.subr.mxu0 0.0
      %887 = vmatpush1.msra.mxu0 0.0
      %888 = vmatprep.subr.mxu0 0.0
      %889 = vmatpush1.msra.mxu0 0.0
      %890 = vmatprep.subr.mxu0 0.0
      %891 = vmatpush1.msra.mxu0 0.0
      %892 = vmatprep.subr.mxu0 0.0
      %893 = vmatpush1.msra.mxu0 0.0
      %894 = vmatprep.subr.mxu0 0.0
      %895 = vmatpush1.msra.mxu0 0.0
      %896 = vmatprep.subr.mxu0 0.0
      %897 = vmatpush1.msra.mxu0 0.0
      %898 = vmatprep.subr.mxu0 0.0
      %899 = vmatpush1.msra.mxu0 0.0
      %900 = vmatprep.mubr.f32.mxu0 0.0
      %901 = vmatmul.mubr.f32.gmra.mrb[0].mxu0 %v834
      %v902 = vpop.f32.mrb[0].mxu0
      %v903 = vadd.f32 0.0, %v902
      %v904 = vpop.f32.mrb[0].mxu0
      %905 = vdwg.mxu0
      %v907 = vsel %vm327, %v434, 0
      %909 = vmatprep.subr.mxu0 0.0
      %910 = vmatpush1.msra.mxu0 %v680
      %911 = vmatprep.subr.mxu0 0.0
      %912 = vmatpush1.msra.mxu0 %v681
      %913 = vmatprep.subr.mxu0 0.0
      %914 = vmatpush1.msra.mxu0 0.0
      %915 = vmatprep.subr.mxu0 0.0
      %916 = vmatpush1.msra.mxu0 0.0
      %917 = vmatprep.subr.mxu0 0.0
      %918 = vmatpush1.msra.mxu0 0.0
      %919 = vmatprep.subr.mxu0 0.0
      %920 = vmatpush1.msra.mxu0 0.0
      %921 = vmatprep.subr.mxu0 0.0
      %922 = vmatpush1.msra.mxu0 0.0
      %923 = vmatprep.subr.mxu0 0.0
      %924 = vmatpush1.msra.mxu0 0.0
      %925 = vmatprep.subr.mxu0 0.0
      %926 = vmatpush1.msra.mxu0 0.0
      %927 = vmatprep.subr.mxu0 0.0
      %928 = vmatpush1.msra.mxu0 0.0
      %929 = vmatprep.subr.mxu0 0.0
      %930 = vmatpush1.msra.mxu0 0.0
      %931 = vmatprep.subr.mxu0 0.0
      %932 = vmatpush1.msra.mxu0 0.0
      %933 = vmatprep.subr.mxu0 0.0
      %934 = vmatpush1.msra.mxu0 0.0
      %935 = vmatprep.subr.mxu0 0.0
      %936 = vmatpush1.msra.mxu0 0.0
      %937 = vmatprep.subr.mxu0 0.0
      %938 = vmatpush1.msra.mxu0 0.0
      %939 = vmatprep.subr.mxu0 0.0
      %940 = vmatpush1.msra.mxu0 0.0
      %941 = vmatprep.subr.mxu0 0.0
      %942 = vmatpush1.msra.mxu0 0.0
      %943 = vmatprep.subr.mxu0 0.0
      %944 = vmatpush1.msra.mxu0 0.0
      %945 = vmatprep.subr.mxu0 0.0
      %946 = vmatpush1.msra.mxu0 0.0
      %947 = vmatprep.subr.mxu0 0.0
      %948 = vmatpush1.msra.mxu0 0.0
      %949 = vmatprep.subr.mxu0 0.0
      %950 = vmatpush1.msra.mxu0 0.0
      %951 = vmatprep.subr.mxu0 0.0
      %952 = vmatpush1.msra.mxu0 0.0
      %953 = vmatprep.subr.mxu0 0.0
      %954 = vmatpush1.msra.mxu0 0.0
      %955 = vmatprep.subr.mxu0 0.0
      %956 = vmatpush1.msra.mxu0 0.0
      %957 = vmatprep.subr.mxu0 0.0
      %958 = vmatpush1.msra.mxu0 0.0
      %959 = vmatprep.subr.mxu0 0.0
      %960 = vmatpush1.msra.mxu0 0.0
      %961 = vmatprep.subr.mxu0 0.0
      %962 = vmatpush1.msra.mxu0 0.0
      %963 = vmatprep.subr.mxu0 0.0
      %964 = vmatpush1.msra.mxu0 0.0
      %965 = vmatprep.subr.mxu0 0.0
      %966 = vmatpush1.msra.mxu0 0.0
      %967 = vmatprep.subr.mxu0 0.0
      %968 = vmatpush1.msra.mxu0 0.0
      %969 = vmatprep.subr.mxu0 0.0
      %970 = vmatpush1.msra.mxu0 0.0
      %971 = vmatprep.subr.mxu0 0.0
      %972 = vmatpush1.msra.mxu0 0.0
      %973 = vmatprep.mubr.f32.mxu0 0.0
      %974 = vmatmul.mubr.f32.gmra.mrb[0].mxu0 %v907
      %v975 = vpop.f32.mrb[0].mxu0
      %v976 = vadd.f32 0.0, %v975
      %v977 = vpop.f32.mrb[0].mxu0
      %978 = vdwg.mxu0
      %v980 = vsel %vm327, %v437, 0
      %982 = vmatprep.subr.mxu0 0.0
      %983 = vmatpush1.msra.mxu0 %v682
      %984 = vmatprep.subr.mxu0 0.0
      %985 = vmatpush1.msra.mxu0 %v683
      %986 = vmatprep.subr.mxu0 0.0
      %987 = vmatpush1.msra.mxu0 0.0
      %988 = vmatprep.subr.mxu0 0.0
      %989 = vmatpush1.msra.mxu0 0.0
      %990 = vmatprep.subr.mxu0 0.0
      %991 = vmatpush1.msra.mxu0 0.0
      %992 = vmatprep.subr.mxu0 0.0
      %993 = vmatpush1.msra.mxu0 0.0
      %994 = vmatprep.subr.mxu0 0.0
      %995 = vmatpush1.msra.mxu0 0.0
      %996 = vmatprep.subr.mxu0 0.0
      %997 = vmatpush1.msra.mxu0 0.0
      %998 = vmatprep.subr.mxu0 0.0
      %999 = vmatpush1.msra.mxu0 0.0
      %1000 = vmatprep.subr.mxu0 0.0
      %1001 = vmatpush1.msra.mxu0 0.0
      %1002 = vmatprep.subr.mxu0 0.0
      %1003 = vmatpush1.msra.mxu0 0.0
      %1004 = vmatprep.subr.mxu0 0.0
      %1005 = vmatpush1.msra.mxu0 0.0
      %1006 = vmatprep.subr.mxu0 0.0
      %1007 = vmatpush1.msra.mxu0 0.0
      %1008 = vmatprep.subr.mxu0 0.0
      %1009 = vmatpush1.msra.mxu0 0.0
      %1010 = vmatprep.subr.mxu0 0.0
      %1011 = vmatpush1.msra.mxu0 0.0
      %1012 = vmatprep.subr.mxu0 0.0
      %1013 = vmatpush1.msra.mxu0 0.0
      %1014 = vmatprep.subr.mxu0 0.0
      %1015 = vmatpush1.msra.mxu0 0.0
      %1016 = vmatprep.subr.mxu0 0.0
      %1017 = vmatpush1.msra.mxu0 0.0
      %1018 = vmatprep.subr.mxu0 0.0
      %1019 = vmatpush1.msra.mxu0 0.0
      %1020 = vmatprep.subr.mxu0 0.0
      %1021 = vmatpush1.msra.mxu0 0.0
      %1022 = vmatprep.subr.mxu0 0.0
      %1023 = vmatpush1.msra.mxu0 0.0
      %1024 = vmatprep.subr.mxu0 0.0
      %1025 = vmatpush1.msra.mxu0 0.0
      %1026 = vmatprep.subr.mxu0 0.0
      %1027 = vmatpush1.msra.mxu0 0.0
      %1028 = vmatprep.subr.mxu0 0.0
      %1029 = vmatpush1.msra.mxu0 0.0
      %1030 = vmatprep.subr.mxu0 0.0
      %1031 = vmatpush1.msra.mxu0 0.0
      %1032 = vmatprep.subr.mxu0 0.0
      %1033 = vmatpush1.msra.mxu0 0.0
      %1034 = vmatprep.subr.mxu0 0.0
      %1035 = vmatpush1.msra.mxu0 0.0
      %1036 = vmatprep.subr.mxu0 0.0
      %1037 = vmatpush1.msra.mxu0 0.0
      %1038 = vmatprep.subr.mxu0 0.0
      %1039 = vmatpush1.msra.mxu0 0.0
      %1040 = vmatprep.subr.mxu0 0.0
      %1041 = vmatpush1.msra.mxu0 0.0
      %1042 = vmatprep.subr.mxu0 0.0
      %1043 = vmatpush1.msra.mxu0 0.0
      %1044 = vmatprep.subr.mxu0 0.0
      %1045 = vmatpush1.msra.mxu0 0.0
      %1046 = vmatprep.mubr.f32.mxu0 0.0
      %1047 = vmatmul.mubr.f32.gmra.mrb[0].mxu0 %v980
      %v1048 = vpop.f32.mrb[0].mxu0
      %v1049 = vadd.f32 0.0, %v1048
      %v1050 = vpop.f32.mrb[0].mxu0
      %1051 = vdwg.mxu0
      %v1053 = vsel %vm327, %v442, 0
      %1055 = vmatprep.subr.mxu0 0.0
      %1056 = vmatpush1.msra.mxu0 %v684
      %1057 = vmatprep.subr.mxu0 0.0
      %1058 = vmatpush1.msra.mxu0 %v685
      %1059 = vmatprep.subr.mxu0 0.0
      %1060 = vmatpush1.msra.mxu0 0.0
      %1061 = vmatprep.subr.mxu0 0.0
      %1062 = vmatpush1.msra.mxu0 0.0
      %1063 = vmatprep.subr.mxu0 0.0
      %1064 = vmatpush1.msra.mxu0 0.0
      %1065 = vmatprep.subr.mxu0 0.0
      %1066 = vmatpush1.msra.mxu0 0.0
      %1067 = vmatprep.subr.mxu0 0.0
      %1068 = vmatpush1.msra.mxu0 0.0
      %1069 = vmatprep.subr.mxu0 0.0
      %1070 = vmatpush1.msra.mxu0 0.0
      %1071 = vmatprep.subr.mxu0 0.0
      %1072 = vmatpush1.msra.mxu0 0.0
      %1073 = vmatprep.subr.mxu0 0.0
      %1074 = vmatpush1.msra.mxu0 0.0
      %1075 = vmatprep.subr.mxu0 0.0
      %1076 = vmatpush1.msra.mxu0 0.0
      %1077 = vmatprep.subr.mxu0 0.0
      %1078 = vmatpush1.msra.mxu0 0.0
      %1079 = vmatprep.subr.mxu0 0.0
      %1080 = vmatpush1.msra.mxu0 0.0
      %1081 = vmatprep.subr.mxu0 0.0
      %1082 = vmatpush1.msra.mxu0 0.0
      %1083 = vmatprep.subr.mxu0 0.0
      %1084 = vmatpush1.msra.mxu0 0.0
      %1085 = vmatprep.subr.mxu0 0.0
      %1086 = vmatpush1.msra.mxu0 0.0
      %1087 = vmatprep.subr.mxu0 0.0
      %1088 = vmatpush1.msra.mxu0 0.0
      %1089 = vmatprep.subr.mxu0 0.0
      %1090 = vmatpush1.msra.mxu0 0.0
      %1091 = vmatprep.subr.mxu0 0.0
      %1092 = vmatpush1.msra.mxu0 0.0
      %1093 = vmatprep.subr.mxu0 0.0
      %1094 = vmatpush1.msra.mxu0 0.0
      %1095 = vmatprep.subr.mxu0 0.0
      %1096 = vmatpush1.msra.mxu0 0.0
      %1097 = vmatprep.subr.mxu0 0.0
      %1098 = vmatpush1.msra.mxu0 0.0
      %1099 = vmatprep.subr.mxu0 0.0
      %1100 = vmatpush1.msra.mxu0 0.0
      %1101 = vmatprep.subr.mxu0 0.0
      %1102 = vmatpush1.msra.mxu0 0.0
      %1103 = vmatprep.subr.mxu0 0.0
      %1104 = vmatpush1.msra.mxu0 0.0
      %1105 = vmatprep.subr.mxu0 0.0
      %1106 = vmatpush1.msra.mxu0 0.0
      %1107 = vmatprep.subr.mxu0 0.0
      %1108 = vmatpush1.msra.mxu0 0.0
      %1109 = vmatprep.subr.mxu0 0.0
      %1110 = vmatpush1.msra.mxu0 0.0
      %1111 = vmatprep.subr.mxu0 0.0
      %1112 = vmatpush1.msra.mxu0 0.0
      %1113 = vmatprep.subr.mxu0 0.0
      %1114 = vmatpush1.msra.mxu0 0.0
      %1115 = vmatprep.subr.mxu0 0.0
      %1116 = vmatpush1.msra.mxu0 0.0
      %1117 = vmatprep.subr.mxu0 0.0
      %1118 = vmatpush1.msra.mxu0 0.0
      %1119 = vmatprep.mubr.f32.mxu0 0.0
      %1120 = vmatmul.mubr.f32.gmra.mrb[0].mxu0 %v1053
      %v1121 = vpop.f32.mrb[0].mxu0
      %v1122 = vadd.f32 0.0, %v1121
      %v1123 = vpop.f32.mrb[0].mxu0
      %1124 = vdwg.mxu0
      %v1126 = vsel %vm327, %v445, 0
      %1128 = vmatprep.subr.mxu0 0.0
      %1129 = vmatpush1.msra.mxu0 %v686
      %1130 = vmatprep.subr.mxu0 0.0
      %1131 = vmatpush1.msra.mxu0 %v687
      %1132 = vmatprep.subr.mxu0 0.0
      %1133 = vmatpush1.msra.mxu0 0.0
      %1134 = vmatprep.subr.mxu0 0.0
      %1135 = vmatpush1.msra.mxu0 0.0
      %1136 = vmatprep.subr.mxu0 0.0
      %1137 = vmatpush1.msra.mxu0 0.0
      %1138 = vmatprep.subr.mxu0 0.0
      %1139 = vmatpush1.msra.mxu0 0.0
      %1140 = vmatprep.subr.mxu0 0.0
      %1141 = vmatpush1.msra.mxu0 0.0
      %1142 = vmatprep.subr.mxu0 0.0
      %1143 = vmatpush1.msra.mxu0 0.0
      %1144 = vmatprep.subr.mxu0 0.0
      %1145 = vmatpush1.msra.mxu0 0.0
      %1146 = vmatprep.subr.mxu0 0.0
      %1147 = vmatpush1.msra.mxu0 0.0
      %1148 = vmatprep.subr.mxu0 0.0
      %1149 = vmatpush1.msra.mxu0 0.0
      %1150 = vmatprep.subr.mxu0 0.0
      %1151 = vmatpush1.msra.mxu0 0.0
      %1152 = vmatprep.subr.mxu0 0.0
      %1153 = vmatpush1.msra.mxu0 0.0
      %1154 = vmatprep.subr.mxu0 0.0
      %1155 = vmatpush1.msra.mxu0 0.0
      %1156 = vmatprep.subr.mxu0 0.0
      %1157 = vmatpush1.msra.mxu0 0.0
      %1158 = vmatprep.subr.mxu0 0.0
      %1159 = vmatpush1.msra.mxu0 0.0
      %1160 = vmatprep.subr.mxu0 0.0
      %1161 = vmatpush1.msra.mxu0 0.0
      %1162 = vmatprep.subr.mxu0 0.0
      %1163 = vmatpush1.msra.mxu0 0.0
      %1164 = vmatprep.subr.mxu0 0.0
      %1165 = vmatpush1.msra.mxu0 0.0
      %1166 = vmatprep.subr.mxu0 0.0
      %1167 = vmatpush1.msra.mxu0 0.0
      %1168 = vmatprep.subr.mxu0 0.0
      %1169 = vmatpush1.msra.mxu0 0.0
      %1170 = vmatprep.subr.mxu0 0.0
      %1171 = vmatpush1.msra.mxu0 0.0
      %1172 = vmatprep.subr.mxu0 0.0
      %1173 = vmatpush1.msra.mxu0 0.0
      %1174 = vmatprep.subr.mxu0 0.0
      %1175 = vmatpush1.msra.mxu0 0.0
      %1176 = vmatprep.subr.mxu0 0.0
      %1177 = vmatpush1.msra.mxu0 0.0
      %1178 = vmatprep.subr.mxu0 0.0
      %1179 = vmatpush1.msra.mxu0 0.0
      %1180 = vmatprep.subr.mxu0 0.0
      %1181 = vmatpush1.msra.mxu0 0.0
      %1182 = vmatprep.subr.mxu0 0.0
      %1183 = vmatpush1.msra.mxu0 0.0
      %1184 = vmatprep.subr.mxu0 0.0
      %1185 = vmatpush1.msra.mxu0 0.0
      %1186 = vmatprep.subr.mxu0 0.0
      %1187 = vmatpush1.msra.mxu0 0.0
      %1188 = vmatprep.subr.mxu0 0.0
      %1189 = vmatpush1.msra.mxu0 0.0
      %1190 = vmatprep.subr.mxu0 0.0
      %1191 = vmatpush1.msra.mxu0 0.0
      %1192 = vmatprep.mubr.f32.mxu0 0.0
      %1193 = vmatmul.mubr.f32.gmra.mrb[0].mxu0 %v1126
      %v1194 = vpop.f32.mrb[0].mxu0
      %v1195 = vadd.f32 0.0, %v1194
      %v1196 = vpop.f32.mrb[0].mxu0
      %1197 = vdwg.mxu0
      %v1199 = vsel %vm327, %v450, 0
      %1201 = vmatprep.subr.mxu0 0.0
      %1202 = vmatpush1.msra.mxu0 %v688
      %1203 = vmatprep.subr.mxu0 0.0
      %1204 = vmatpush1.msra.mxu0 %v689
      %1205 = vmatprep.subr.mxu0 0.0
      %1206 = vmatpush1.msra.mxu0 0.0
      %1207 = vmatprep.subr.mxu0 0.0
      %1208 = vmatpush1.msra.mxu0 0.0
      %1209 = vmatprep.subr.mxu0 0.0
      %1210 = vmatpush1.msra.mxu0 0.0
      %1211 = vmatprep.subr.mxu0 0.0
      %1212 = vmatpush1.msra.mxu0 0.0
      %1213 = vmatprep.subr.mxu0 0.0
      %1214 = vmatpush1.msra.mxu0 0.0
      %1215 = vmatprep.subr.mxu0 0.0
      %1216 = vmatpush1.msra.mxu0 0.0
      %1217 = vmatprep.subr.mxu0 0.0
      %1218 = vmatpush1.msra.mxu0 0.0
      %1219 = vmatprep.subr.mxu0 0.0
      %1220 = vmatpush1.msra.mxu0 0.0
      %1221 = vmatprep.subr.mxu0 0.0
      %1222 = vmatpush1.msra.mxu0 0.0
      %1223 = vmatprep.subr.mxu0 0.0
      %1224 = vmatpush1.msra.mxu0 0.0
      %1225 = vmatprep.subr.mxu0 0.0
      %1226 = vmatpush1.msra.mxu0 0.0
      %1227 = vmatprep.subr.mxu0 0.0
      %1228 = vmatpush1.msra.mxu0 0.0
      %1229 = vmatprep.subr.mxu0 0.0
      %1230 = vmatpush1.msra.mxu0 0.0
      %1231 = vmatprep.subr.mxu0 0.0
      %1232 = vmatpush1.msra.mxu0 0.0
      %1233 = vmatprep.subr.mxu0 0.0
      %1234 = vmatpush1.msra.mxu0 0.0
      %1235 = vmatprep.subr.mxu0 0.0
      %1236 = vmatpush1.msra.mxu0 0.0
      %1237 = vmatprep.subr.mxu0 0.0
      %1238 = vmatpush1.msra.mxu0 0.0
      %1239 = vmatprep.subr.mxu0 0.0
      %1240 = vmatpush1.msra.mxu0 0.0
      %1241 = vmatprep.subr.mxu0 0.0
      %1242 = vmatpush1.msra.mxu0 0.0
      %1243 = vmatprep.subr.mxu0 0.0
      %1244 = vmatpush1.msra.mxu0 0.0
      %1245 = vmatprep.subr.mxu0 0.0
      %1246 = vmatpush1.msra.mxu0 0.0
      %1247 = vmatprep.subr.mxu0 0.0
      %1248 = vmatpush1.msra.mxu0 0.0
      %1249 = vmatprep.subr.mxu0 0.0
      %1250 = vmatpush1.msra.mxu0 0.0
      %1251 = vmatprep.subr.mxu0 0.0
      %1252 = vmatpush1.msra.mxu0 0.0
      %1253 = vmatprep.subr.mxu0 0.0
      %1254 = vmatpush1.msra.mxu0 0.0
      %1255 = vmatprep.subr.mxu0 0.0
      %1256 = vmatpush1.msra.mxu0 0.0
      %1257 = vmatprep.subr.mxu0 0.0
      %1258 = vmatpush1.msra.mxu0 0.0
      %1259 = vmatprep.subr.mxu0 0.0
      %1260 = vmatpush1.msra.mxu0 0.0
      %1261 = vmatprep.subr.mxu0 0.0
      %1262 = vmatpush1.msra.mxu0 0.0
      %1263 = vmatprep.subr.mxu0 0.0
      %1264 = vmatpush1.msra.mxu0 0.0
      %1265 = vmatprep.mubr.f32.mxu0 0.0
      %1266 = vmatmul.mubr.f32.gmra.mrb[0].mxu0 %v1199
      %v1267 = vpop.f32.mrb[0].mxu0
      %v1268 = vadd.f32 0.0, %v1267
      %v1269 = vpop.f32.mrb[0].mxu0
      %1270 = vdwg.mxu0
      %v1272 = vsel %vm327, %v453, 0
      %1274 = vmatprep.subr.mxu0 0.0
      %1275 = vmatpush1.msra.mxu0 %v690
      %1276 = vmatprep.subr.mxu0 0.0
      %1277 = vmatpush1.msra.mxu0 %v691
      %1278 = vmatprep.subr.mxu0 0.0
      %1279 = vmatpush1.msra.mxu0 0.0
      %1280 = vmatprep.subr.mxu0 0.0
      %1281 = vmatpush1.msra.mxu0 0.0
      %1282 = vmatprep.subr.mxu0 0.0
      %1283 = vmatpush1.msra.mxu0 0.0
      %1284 = vmatprep.subr.mxu0 0.0
      %1285 = vmatpush1.msra.mxu0 0.0
      %1286 = vmatprep.subr.mxu0 0.0
      %1287 = vmatpush1.msra.mxu0 0.0
      %1288 = vmatprep.subr.mxu0 0.0
      %1289 = vmatpush1.msra.mxu0 0.0
      %1290 = vmatprep.subr.mxu0 0.0
      %1291 = vmatpush1.msra.mxu0 0.0
      %1292 = vmatprep.subr.mxu0 0.0
      %1293 = vmatpush1.msra.mxu0 0.0
      %1294 = vmatprep.subr.mxu0 0.0
      %1295 = vmatpush1.msra.mxu0 0.0
      %1296 = vmatprep.subr.mxu0 0.0
      %1297 = vmatpush1.msra.mxu0 0.0
      %1298 = vmatprep.subr.mxu0 0.0
      %1299 = vmatpush1.msra.mxu0 0.0
      %1300 = vmatprep.subr.mxu0 0.0
      %1301 = vmatpush1.msra.mxu0 0.0
      %1302 = vmatprep.subr.mxu0 0.0
      %1303 = vmatpush1.msra.mxu0 0.0
      %1304 = vmatprep.subr.mxu0 0.0
      %1305 = vmatpush1.msra.mxu0 0.0
      %1306 = vmatprep.subr.mxu0 0.0
      %1307 = vmatpush1.msra.mxu0 0.0
      %1308 = vmatprep.subr.mxu0 0.0
      %1309 = vmatpush1.msra.mxu0 0.0
      %1310 = vmatprep.subr.mxu0 0.0
      %1311 = vmatpush1.msra.mxu0 0.0
      %1312 = vmatprep.subr.mxu0 0.0
      %1313 = vmatpush1.msra.mxu0 0.0
      %1314 = vmatprep.subr.mxu0 0.0
      %1315 = vmatpush1.msra.mxu0 0.0
      %1316 = vmatprep.subr.mxu0 0.0
      %1317 = vmatpush1.msra.mxu0 0.0
      %1318 = vmatprep.subr.mxu0 0.0
      %1319 = vmatpush1.msra.mxu0 0.0
      %1320 = vmatprep.subr.mxu0 0.0
      %1321 = vmatpush1.msra.mxu0 0.0
      %1322 = vmatprep.subr.mxu0 0.0
      %1323 = vmatpush1.msra.mxu0 0.0
      %1324 = vmatprep.subr.mxu0 0.0
      %1325 = vmatpush1.msra.mxu0 0.0
      %1326 = vmatprep.subr.mxu0 0.0
      %1327 = vmatpush1.msra.mxu0 0.0
      %1328 = vmatprep.subr.mxu0 0.0
      %1329 = vmatpush1.msra.mxu0 0.0
      %1330 = vmatprep.subr.mxu0 0.0
      %1331 = vmatpush1.msra.mxu0 0.0
      %1332 = vmatprep.subr.mxu0 0.0
      %1333 = vmatpush1.msra.mxu0 0.0
      %1334 = vmatprep.subr.mxu0 0.0
      %1335 = vmatpush1.msra.mxu0 0.0
      %1336 = vmatprep.subr.mxu0 0.0
      %1337 = vmatpush1.msra.mxu0 0.0
      %1338 = vmatprep.mubr.f32.mxu0 0.0
      %1339 = vmatmul.mubr.f32.gmra.mrb[0].mxu0 %v1272
      %v1340 = vpop.f32.mrb[0].mxu0
      %v1341 = vadd.f32 0.0, %v1340
      %v1342 = vpop.f32.mrb[0].mxu0
      %1343 = vdwg.mxu0
      %v1345 = vsel %vm327, %v458, 0
      %1347 = vmatprep.subr.mxu0 0.0
      %1348 = vmatpush1.msra.mxu0 %v692
      %1349 = vmatprep.subr.mxu0 0.0
      %1350 = vmatpush1.msra.mxu0 %v693
      %1351 = vmatprep.subr.mxu0 0.0
      %1352 = vmatpush1.msra.mxu0 0.0
      %1353 = vmatprep.subr.mxu0 0.0
      %1354 = vmatpush1.msra.mxu0 0.0
      %1355 = vmatprep.subr.mxu0 0.0
      %1356 = vmatpush1.msra.mxu0 0.0
      %1357 = vmatprep.subr.mxu0 0.0
      %1358 = vmatpush1.msra.mxu0 0.0
      %1359 = vmatprep.subr.mxu0 0.0
      %1360 = vmatpush1.msra.mxu0 0.0
      %1361 = vmatprep.subr.mxu0 0.0
      %1362 = vmatpush1.msra.mxu0 0.0
      %1363 = vmatprep.subr.mxu0 0.0
      %1364 = vmatpush1.msra.mxu0 0.0
      %1365 = vmatprep.subr.mxu0 0.0
      %1366 = vmatpush1.msra.mxu0 0.0
      %1367 = vmatprep.subr.mxu0 0.0
      %1368 = vmatpush1.msra.mxu0 0.0
      %1369 = vmatprep.subr.mxu0 0.0
      %1370 = vmatpush1.msra.mxu0 0.0
      %1371 = vmatprep.subr.mxu0 0.0
      %1372 = vmatpush1.msra.mxu0 0.0
      %1373 = vmatprep.subr.mxu0 0.0
      %1374 = vmatpush1.msra.mxu0 0.0
      %1375 = vmatprep.subr.mxu0 0.0
      %1376 = vmatpush1.msra.mxu0 0.0
      %1377 = vmatprep.subr.mxu0 0.0
      %1378 = vmatpush1.msra.mxu0 0.0
      %1379 = vmatprep.subr.mxu0 0.0
      %1380 = vmatpush1.msra.mxu0 0.0
      %1381 = vmatprep.subr.mxu0 0.0
      %1382 = vmatpush1.msra.mxu0 0.0
      %1383 = vmatprep.subr.mxu0 0.0
      %1384 = vmatpush1.msra.mxu0 0.0
      %1385 = vmatprep.subr.mxu0 0.0
      %1386 = vmatpush1.msra.mxu0 0.0
      %1387 = vmatprep.subr.mxu0 0.0
      %1388 = vmatpush1.msra.mxu0 0.0
      %1389 = vmatprep.subr.mxu0 0.0
      %1390 = vmatpush1.msra.mxu0 0.0
      %1391 = vmatprep.subr.mxu0 0.0
      %1392 = vmatpush1.msra.mxu0 0.0
      %1393 = vmatprep.subr.mxu0 0.0
      %1394 = vmatpush1.msra.mxu0 0.0
      %1395 = vmatprep.subr.mxu0 0.0
      %1396 = vmatpush1.msra.mxu0 0.0
      %1397 = vmatprep.subr.mxu0 0.0
      %1398 = vmatpush1.msra.mxu0 0.0
      %1399 = vmatprep.subr.mxu0 0.0
      %1400 = vmatpush1.msra.mxu0 0.0
      %1401 = vmatprep.subr.mxu0 0.0
      %1402 = vmatpush1.msra.mxu0 0.0
      %1403 = vmatprep.subr.mxu0 0.0
      %1404 = vmatpush1.msra.mxu0 0.0
      %1405 = vmatprep.subr.mxu0 0.0
      %1406 = vmatpush1.msra.mxu0 0.0
      %1407 = vmatprep.subr.mxu0 0.0
      %1408 = vmatpush1.msra.mxu0 0.0
      %1409 = vmatprep.subr.mxu0 0.0
      %1410 = vmatpush1.msra.mxu0 0.0
      %1411 = vmatprep.mubr.f32.mxu0 0.0
      %1412 = vmatmul.mubr.f32.gmra.mrb[0].mxu0 %v1345
      %v1413 = vpop.f32.mrb[0].mxu0
      %v1414 = vadd.f32 0.0, %v1413
      %v1415 = vpop.f32.mrb[0].mxu0
      %1416 = vdwg.mxu0
      %v1418 = vsel %vm327, %v461, 0
      %1420 = vmatprep.subr.mxu0 0.0
      %1421 = vmatpush1.msra.mxu0 %v694
      %1422 = vmatprep.subr.mxu0 0.0
      %1423 = vmatpush1.msra.mxu0 %v695
      %1424 = vmatprep.subr.mxu0 0.0
      %1425 = vmatpush1.msra.mxu0 0.0
      %1426 = vmatprep.subr.mxu0 0.0
      %1427 = vmatpush1.msra.mxu0 0.0
      %1428 = vmatprep.subr.mxu0 0.0
      %1429 = vmatpush1.msra.mxu0 0.0
      %1430 = vmatprep.subr.mxu0 0.0
      %1431 = vmatpush1.msra.mxu0 0.0
      %1432 = vmatprep.subr.mxu0 0.0
      %1433 = vmatpush1.msra.mxu0 0.0
      %1434 = vmatprep.subr.mxu0 0.0
      %1435 = vmatpush1.msra.mxu0 0.0
      %1436 = vmatprep.subr.mxu0 0.0
      %1437 = vmatpush1.msra.mxu0 0.0
      %1438 = vmatprep.subr.mxu0 0.0
      %1439 = vmatpush1.msra.mxu0 0.0
      %1440 = vmatprep.subr.mxu0 0.0
      %1441 = vmatpush1.msra.mxu0 0.0
      %1442 = vmatprep.subr.mxu0 0.0
      %1443 = vmatpush1.msra.mxu0 0.0
      %1444 = vmatprep.subr.mxu0 0.0
      %1445 = vmatpush1.msra.mxu0 0.0
      %1446 = vmatprep.subr.mxu0 0.0
      %1447 = vmatpush1.msra.mxu0 0.0
      %1448 = vmatprep.subr.mxu0 0.0
      %1449 = vmatpush1.msra.mxu0 0.0
      %1450 = vmatprep.subr.mxu0 0.0
      %1451 = vmatpush1.msra.mxu0 0.0
      %1452 = vmatprep.subr.mxu0 0.0
      %1453 = vmatpush1.msra.mxu0 0.0
      %1454 = vmatprep.subr.mxu0 0.0
      %1455 = vmatpush1.msra.mxu0 0.0
      %1456 = vmatprep.subr.mxu0 0.0
      %1457 = vmatpush1.msra.mxu0 0.0
      %1458 = vmatprep.subr.mxu0 0.0
      %1459 = vmatpush1.msra.mxu0 0.0
      %1460 = vmatprep.subr.mxu0 0.0
      %1461 = vmatpush1.msra.mxu0 0.0
      %1462 = vmatprep.subr.mxu0 0.0
      %1463 = vmatpush1.msra.mxu0 0.0
      %1464 = vmatprep.subr.mxu0 0.0
      %1465 = vmatpush1.msra.mxu0 0.0
      %1466 = vmatprep.subr.mxu0 0.0
      %1467 = vmatpush1.msra.mxu0 0.0
      %1468 = vmatprep.subr.mxu0 0.0
      %1469 = vmatpush1.msra.mxu0 0.0
      %1470 = vmatprep.subr.mxu0 0.0
      %1471 = vmatpush1.msra.mxu0 0.0
      %1472 = vmatprep.subr.mxu0 0.0
      %1473 = vmatpush1.msra.mxu0 0.0
      %1474 = vmatprep.subr.mxu0 0.0
      %1475 = vmatpush1.msra.mxu0 0.0
      %1476 = vmatprep.subr.mxu0 0.0
      %1477 = vmatpush1.msra.mxu0 0.0
      %1478 = vmatprep.subr.mxu0 0.0
      %1479 = vmatpush1.msra.mxu0 0.0
      %1480 = vmatprep.subr.mxu0 0.0
      %1481 = vmatpush1.msra.mxu0 0.0
      %1482 = vmatprep.subr.mxu0 0.0
      %1483 = vmatpush1.msra.mxu0 0.0
      %1484 = vmatprep.mubr.f32.mxu0 0.0
      %1485 = vmatmul.mubr.f32.gmra.mrb[0].mxu0 %v1418
      %v1486 = vpop.f32.mrb[0].mxu0
      %v1487 = vadd.f32 0.0, %v1486
      %v1488 = vpop.f32.mrb[0].mxu0
      %1489 = vdwg.mxu0
      %v1491 = vsel %vm327, %v466, 0
      %1493 = vmatprep.subr.mxu0 0.0
      %1494 = vmatpush1.msra.mxu0 %v696
      %1495 = vmatprep.subr.mxu0 0.0
      %1496 = vmatpush1.msra.mxu0 %v697
      %1497 = vmatprep.subr.mxu0 0.0
      %1498 = vmatpush1.msra.mxu0 0.0
      %1499 = vmatprep.subr.mxu0 0.0
      %1500 = vmatpush1.msra.mxu0 0.0
      %1501 = vmatprep.subr.mxu0 0.0
      %1502 = vmatpush1.msra.mxu0 0.0
      %1503 = vmatprep.subr.mxu0 0.0
      %1504 = vmatpush1.msra.mxu0 0.0
      %1505 = vmatprep.subr.mxu0 0.0
      %1506 = vmatpush1.msra.mxu0 0.0
      %1507 = vmatprep.subr.mxu0 0.0
      %1508 = vmatpush1.msra.mxu0 0.0
      %1509 = vmatprep.subr.mxu0 0.0
      %1510 = vmatpush1.msra.mxu0 0.0
      %1511 = vmatprep.subr.mxu0 0.0
      %1512 = vmatpush1.msra.mxu0 0.0
      %1513 = vmatprep.subr.mxu0 0.0
      %1514 = vmatpush1.msra.mxu0 0.0
      %1515 = vmatprep.subr.mxu0 0.0
      %1516 = vmatpush1.msra.mxu0 0.0
      %1517 = vmatprep.subr.mxu0 0.0
      %1518 = vmatpush1.msra.mxu0 0.0
      %1519 = vmatprep.subr.mxu0 0.0
      %1520 = vmatpush1.msra.mxu0 0.0
      %1521 = vmatprep.subr.mxu0 0.0
      %1522 = vmatpush1.msra.mxu0 0.0
      %1523 = vmatprep.subr.mxu0 0.0
      %1524 = vmatpush1.msra.mxu0 0.0
      %1525 = vmatprep.subr.mxu0 0.0
      %1526 = vmatpush1.msra.mxu0 0.0
      %1527 = vmatprep.subr.mxu0 0.0
      %1528 = vmatpush1.msra.mxu0 0.0
      %1529 = vmatprep.subr.mxu0 0.0
      %1530 = vmatpush1.msra.mxu0 0.0
      %1531 = vmatprep.subr.mxu0 0.0
      %1532 = vmatpush1.msra.mxu0 0.0
      %1533 = vmatprep.subr.mxu0 0.0
      %1534 = vmatpush1.msra.mxu0 0.0
      %1535 = vmatprep.subr.mxu0 0.0
      %1536 = vmatpush1.msra.mxu0 0.0
      %1537 = vmatprep.subr.mxu0 0.0
      %1538 = vmatpush1.msra.mxu0 0.0
      %1539 = vmatprep.subr.mxu0 0.0
      %1540 = vmatpush1.msra.mxu0 0.0
      %1541 = vmatprep.subr.mxu0 0.0
      %1542 = vmatpush1.msra.mxu0 0.0
      %1543 = vmatprep.subr.mxu0 0.0
      %1544 = vmatpush1.msra.mxu0 0.0
      %1545 = vmatprep.subr.mxu0 0.0
      %1546 = vmatpush1.msra.mxu0 0.0
      %1547 = vmatprep.subr.mxu0 0.0
      %1548 = vmatpush1.msra.mxu0 0.0
      %1549 = vmatprep.subr.mxu0 0.0
      %1550 = vmatpush1.msra.mxu0 0.0
      %1551 = vmatprep.subr.mxu0 0.0
      %1552 = vmatpush1.msra.mxu0 0.0
      %1553 = vmatprep.subr.mxu0 0.0
      %1554 = vmatpush1.msra.mxu0 0.0
      %1555 = vmatprep.subr.mxu0 0.0
      %1556 = vmatpush1.msra.mxu0 0.0
      %1557 = vmatprep.mubr.f32.mxu0 0.0
      %1558 = vmatmul.mubr.f32.gmra.mrb[0].mxu0 %v1491
      %v1559 = vpop.f32.mrb[0].mxu0
      %v1560 = vadd.f32 0.0, %v1559
      %v1561 = vpop.f32.mrb[0].mxu0
      %1562 = vdwg.mxu0
      %v1564 = vsel %vm327, %v469, 0
      %1566 = vmatprep.subr.mxu0 0.0
      %1567 = vmatpush1.msra.mxu0 %v698
      %1568 = vmatprep.subr.mxu0 0.0
      %1569 = vmatpush1.msra.mxu0 %v699
      %1570 = vmatprep.subr.mxu0 0.0
      %1571 = vmatpush1.msra.mxu0 0.0
      %1572 = vmatprep.subr.mxu0 0.0
      %1573 = vmatpush1.msra.mxu0 0.0
      %1574 = vmatprep.subr.mxu0 0.0
      %1575 = vmatpush1.msra.mxu0 0.0
      %1576 = vmatprep.subr.mxu0 0.0
      %1577 = vmatpush1.msra.mxu0 0.0
      %1578 = vmatprep.subr.mxu0 0.0
      %1579 = vmatpush1.msra.mxu0 0.0
      %1580 = vmatprep.subr.mxu0 0.0
      %1581 = vmatpush1.msra.mxu0 0.0
      %1582 = vmatprep.subr.mxu0 0.0
      %1583 = vmatpush1.msra.mxu0 0.0
      %1584 = vmatprep.subr.mxu0 0.0
      %1585 = vmatpush1.msra.mxu0 0.0
      %1586 = vmatprep.subr.mxu0 0.0
      %1587 = vmatpush1.msra.mxu0 0.0
      %1588 = vmatprep.subr.mxu0 0.0
      %1589 = vmatpush1.msra.mxu0 0.0
      %1590 = vmatprep.subr.mxu0 0.0
      %1591 = vmatpush1.msra.mxu0 0.0
      %1592 = vmatprep.subr.mxu0 0.0
      %1593 = vmatpush1.msra.mxu0 0.0
      %1594 = vmatprep.subr.mxu0 0.0
      %1595 = vmatpush1.msra.mxu0 0.0
      %1596 = vmatprep.subr.mxu0 0.0
      %1597 = vmatpush1.msra.mxu0 0.0
      %1598 = vmatprep.subr.mxu0 0.0
      %1599 = vmatpush1.msra.mxu0 0.0
      %1600 = vmatprep.subr.mxu0 0.0
      %1601 = vmatpush1.msra.mxu0 0.0
      %1602 = vmatprep.subr.mxu0 0.0
      %1603 = vmatpush1.msra.mxu0 0.0
      %1604 = vmatprep.subr.mxu0 0.0
      %1605 = vmatpush1.msra.mxu0 0.0
      %1606 = vmatprep.subr.mxu0 0.0
      %1607 = vmatpush1.msra.mxu0 0.0
      %1608 = vmatprep.subr.mxu0 0.0
      %1609 = vmatpush1.msra.mxu0 0.0
      %1610 = vmatprep.subr.mxu0 0.0
      %1611 = vmatpush1.msra.mxu0 0.0
      %1612 = vmatprep.subr.mxu0 0.0
      %1613 = vmatpush1.msra.mxu0 0.0
      %1614 = vmatprep.subr.mxu0 0.0
      %1615 = vmatpush1.msra.mxu0 0.0
      %1616 = vmatprep.subr.mxu0 0.0
      %1617 = vmatpush1.msra.mxu0 0.0
      %1618 = vmatprep.subr.mxu0 0.0
      %1619 = vmatpush1.msra.mxu0 0.0
      %1620 = vmatprep.subr.mxu0 0.0
      %1621 = vmatpush1.msra.mxu0 0.0
      %1622 = vmatprep.subr.mxu0 0.0
      %1623 = vmatpush1.msra.mxu0 0.0
      %1624 = vmatprep.subr.mxu0 0.0
      %1625 = vmatpush1.msra.mxu0 0.0
      %1626 = vmatprep.subr.mxu0 0.0
      %1627 = vmatpush1.msra.mxu0 0.0
      %1628 = vmatprep.subr.mxu0 0.0
      %1629 = vmatpush1.msra.mxu0 0.0
      %1630 = vmatprep.mubr.f32.mxu0 0.0
      %1631 = vmatmul.mubr.f32.gmra.mrb[0].mxu0 %v1564
      %v1632 = vpop.f32.mrb[0].mxu0
      %v1633 = vadd.f32 0.0, %v1632
      %v1634 = vpop.f32.mrb[0].mxu0
      %1635 = vdwg.mxu0
      %v1637 = vsel %vm327, %v474, 0
      %1639 = vmatprep.subr.mxu0 0.0
      %1640 = vmatpush1.msra.mxu0 %v700
      %1641 = vmatprep.subr.mxu0 0.0
      %1642 = vmatpush1.msra.mxu0 %v701
      %1643 = vmatprep.subr.mxu0 0.0
      %1644 = vmatpush1.msra.mxu0 0.0
      %1645 = vmatprep.subr.mxu0 0.0
      %1646 = vmatpush1.msra.mxu0 0.0
      %1647 = vmatprep.subr.mxu0 0.0
      %1648 = vmatpush1.msra.mxu0 0.0
      %1649 = vmatprep.subr.mxu0 0.0
      %1650 = vmatpush1.msra.mxu0 0.0
      %1651 = vmatprep.subr.mxu0 0.0
      %1652 = vmatpush1.msra.mxu0 0.0
      %1653 = vmatprep.subr.mxu0 0.0
      %1654 = vmatpush1.msra.mxu0 0.0
      %1655 = vmatprep.subr.mxu0 0.0
      %1656 = vmatpush1.msra.mxu0 0.0
      %1657 = vmatprep.subr.mxu0 0.0
      %1658 = vmatpush1.msra.mxu0 0.0
      %1659 = vmatprep.subr.mxu0 0.0
      %1660 = vmatpush1.msra.mxu0 0.0
      %1661 = vmatprep.subr.mxu0 0.0
      %1662 = vmatpush1.msra.mxu0 0.0
      %1663 = vmatprep.subr.mxu0 0.0
      %1664 = vmatpush1.msra.mxu0 0.0
      %1665 = vmatprep.subr.mxu0 0.0
      %1666 = vmatpush1.msra.mxu0 0.0
      %1667 = vmatprep.subr.mxu0 0.0
      %1668 = vmatpush1.msra.mxu0 0.0
      %1669 = vmatprep.subr.mxu0 0.0
      %1670 = vmatpush1.msra.mxu0 0.0
      %1671 = vmatprep.subr.mxu0 0.0
      %1672 = vmatpush1.msra.mxu0 0.0
      %1673 = vmatprep.subr.mxu0 0.0
      %1674 = vmatpush1.msra.mxu0 0.0
      %1675 = vmatprep.subr.mxu0 0.0
      %1676 = vmatpush1.msra.mxu0 0.0
      %1677 = vmatprep.subr.mxu0 0.0
      %1678 = vmatpush1.msra.mxu0 0.0
      %1679 = vmatprep.subr.mxu0 0.0
      %1680 = vmatpush1.msra.mxu0 0.0
      %1681 = vmatprep.subr.mxu0 0.0
      %1682 = vmatpush1.msra.mxu0 0.0
      %1683 = vmatprep.subr.mxu0 0.0
      %1684 = vmatpush1.msra.mxu0 0.0
      %1685 = vmatprep.subr.mxu0 0.0
      %1686 = vmatpush1.msra.mxu0 0.0
      %1687 = vmatprep.subr.mxu0 0.0
      %1688 = vmatpush1.msra.mxu0 0.0
      %1689 = vmatprep.subr.mxu0 0.0
      %1690 = vmatpush1.msra.mxu0 0.0
      %1691 = vmatprep.subr.mxu0 0.0
      %1692 = vmatpush1.msra.mxu0 0.0
      %1693 = vmatprep.subr.mxu0 0.0
      %1694 = vmatpush1.msra.mxu0 0.0
      %1695 = vmatprep.subr.mxu0 0.0
      %1696 = vmatpush1.msra.mxu0 0.0
      %1697 = vmatprep.subr.mxu0 0.0
      %1698 = vmatpush1.msra.mxu0 0.0
      %1699 = vmatprep.subr.mxu0 0.0
      %1700 = vmatpush1.msra.mxu0 0.0
      %1701 = vmatprep.subr.mxu0 0.0
      %1702 = vmatpush1.msra.mxu0 0.0
      %1703 = vmatprep.mubr.f32.mxu0 0.0
      %1704 = vmatmul.mubr.f32.gmra.mrb[0].mxu0 %v1637
      %v1705 = vpop.f32.mrb[0].mxu0
      %v1706 = vadd.f32 0.0, %v1705
      %v1707 = vpop.f32.mrb[0].mxu0
      %1708 = vdwg.mxu0
      %v1710 = vsel %vm327, %v477, 0
      %1712 = vmatprep.subr.mxu0 0.0
      %1713 = vmatpush1.msra.mxu0 %v702
      %1714 = vmatprep.subr.mxu0 0.0
      %1715 = vmatpush1.msra.mxu0 %v703
      %1716 = vmatprep.subr.mxu0 0.0
      %1717 = vmatpush1.msra.mxu0 0.0
      %1718 = vmatprep.subr.mxu0 0.0
      %1719 = vmatpush1.msra.mxu0 0.0
      %1720 = vmatprep.subr.mxu0 0.0
      %1721 = vmatpush1.msra.mxu0 0.0
      %1722 = vmatprep.subr.mxu0 0.0
      %1723 = vmatpush1.msra.mxu0 0.0
      %1724 = vmatprep.subr.mxu0 0.0
      %1725 = vmatpush1.msra.mxu0 0.0
      %1726 = vmatprep.subr.mxu0 0.0
      %1727 = vmatpush1.msra.mxu0 0.0
      %1728 = vmatprep.subr.mxu0 0.0
      %1729 = vmatpush1.msra.mxu0 0.0
      %1730 = vmatprep.subr.mxu0 0.0
      %1731 = vmatpush1.msra.mxu0 0.0
      %1732 = vmatprep.subr.mxu0 0.0
      %1733 = vmatpush1.msra.mxu0 0.0
      %1734 = vmatprep.subr.mxu0 0.0
      %1735 = vmatpush1.msra.mxu0 0.0
      %1736 = vmatprep.subr.mxu0 0.0
      %1737 = vmatpush1.msra.mxu0 0.0
      %1738 = vmatprep.subr.mxu0 0.0
      %1739 = vmatpush1.msra.mxu0 0.0
      %1740 = vmatprep.subr.mxu0 0.0
      %1741 = vmatpush1.msra.mxu0 0.0
      %1742 = vmatprep.subr.mxu0 0.0
      %1743 = vmatpush1.msra.mxu0 0.0
      %1744 = vmatprep.subr.mxu0 0.0
      %1745 = vmatpush1.msra.mxu0 0.0
      %1746 = vmatprep.subr.mxu0 0.0
      %1747 = vmatpush1.msra.mxu0 0.0
      %1748 = vmatprep.subr.mxu0 0.0
      %1749 = vmatpush1.msra.mxu0 0.0
      %1750 = vmatprep.subr.mxu0 0.0
      %1751 = vmatpush1.msra.mxu0 0.0
      %1752 = vmatprep.subr.mxu0 0.0
      %1753 = vmatpush1.msra.mxu0 0.0
      %1754 = vmatprep.subr.mxu0 0.0
      %1755 = vmatpush1.msra.mxu0 0.0
      %1756 = vmatprep.subr.mxu0 0.0
      %1757 = vmatpush1.msra.mxu0 0.0
      %1758 = vmatprep.subr.mxu0 0.0
      %1759 = vmatpush1.msra.mxu0 0.0
      %1760 = vmatprep.subr.mxu0 0.0
      %1761 = vmatpush1.msra.mxu0 0.0
      %1762 = vmatprep.subr.mxu0 0.0
      %1763 = vmatpush1.msra.mxu0 0.0
      %1764 = vmatprep.subr.mxu0 0.0
      %1765 = vmatpush1.msra.mxu0 0.0
      %1766 = vmatprep.subr.mxu0 0.0
      %1767 = vmatpush1.msra.mxu0 0.0
      %1768 = vmatprep.subr.mxu0 0.0
      %1769 = vmatpush1.msra.mxu0 0.0
      %1770 = vmatprep.subr.mxu0 0.0
      %1771 = vmatpush1.msra.mxu0 0.0
      %1772 = vmatprep.subr.mxu0 0.0
      %1773 = vmatpush1.msra.mxu0 0.0
      %1774 = vmatprep.subr.mxu0 0.0
      %1775 = vmatpush1.msra.mxu0 0.0
      %1776 = vmatprep.mubr.f32.mxu0 0.0
      %1777 = vmatmul.mubr.f32.gmra.mrb[0].mxu0 %v1710
      %v1778 = vpop.f32.mrb[0].mxu0
      %v1779 = vadd.f32 0.0, %v1778
      %v1780 = vpop.f32.mrb[0].mxu0
      %1781 = vdwg.mxu0
      %v1783 = vsel %vm327, %v482, 0
      %1785 = vmatprep.subr.mxu0 0.0
      %1786 = vmatpush1.msra.mxu0 %v704
      %1787 = vmatprep.subr.mxu0 0.0
      %1788 = vmatpush1.msra.mxu0 %v705
      %1789 = vmatprep.subr.mxu0 0.0
      %1790 = vmatpush1.msra.mxu0 0.0
      %1791 = vmatprep.subr.mxu0 0.0
      %1792 = vmatpush1.msra.mxu0 0.0
      %1793 = vmatprep.subr.mxu0 0.0
      %1794 = vmatpush1.msra.mxu0 0.0
      %1795 = vmatprep.subr.mxu0 0.0
      %1796 = vmatpush1.msra.mxu0 0.0
      %1797 = vmatprep.subr.mxu0 0.0
      %1798 = vmatpush1.msra.mxu0 0.0
      %1799 = vmatprep.subr.mxu0 0.0
      %1800 = vmatpush1.msra.mxu0 0.0
      %1801 = vmatprep.subr.mxu0 0.0
      %1802 = vmatpush1.msra.mxu0 0.0
      %1803 = vmatprep.subr.mxu0 0.0
      %1804 = vmatpush1.msra.mxu0 0.0
      %1805 = vmatprep.subr.mxu0 0.0
      %1806 = vmatpush1.msra.mxu0 0.0
      %1807 = vmatprep.subr.mxu0 0.0
      %1808 = vmatpush1.msra.mxu0 0.0
      %1809 = vmatprep.subr.mxu0 0.0
      %1810 = vmatpush1.msra.mxu0 0.0
      %1811 = vmatprep.subr.mxu0 0.0
      %1812 = vmatpush1.msra.mxu0 0.0
      %1813 = vmatprep.subr.mxu0 0.0
      %1814 = vmatpush1.msra.mxu0 0.0
      %1815 = vmatprep.subr.mxu0 0.0
      %1816 = vmatpush1.msra.mxu0 0.0
      %1817 = vmatprep.subr.mxu0 0.0
      %1818 = vmatpush1.msra.mxu0 0.0
      %1819 = vmatprep.subr.mxu0 0.0
      %1820 = vmatpush1.msra.mxu0 0.0
      %1821 = vmatprep.subr.mxu0 0.0
      %1822 = vmatpush1.msra.mxu0 0.0
      %1823 = vmatprep.subr.mxu0 0.0
      %1824 = vmatpush1.msra.mxu0 0.0
      %1825 = vmatprep.subr.mxu0 0.0
      %1826 = vmatpush1.msra.mxu0 0.0
      %1827 = vmatprep.subr.mxu0 0.0
      %1828 = vmatpush1.msra.mxu0 0.0
      %1829 = vmatprep.subr.mxu0 0.0
      %1830 = vmatpush1.msra.mxu0 0.0
      %1831 = vmatprep.subr.mxu0 0.0
      %1832 = vmatpush1.msra.mxu0 0.0
      %1833 = vmatprep.subr.mxu0 0.0
      %1834 = vmatpush1.msra.mxu0 0.0
      %1835 = vmatprep.subr.mxu0 0.0
      %1836 = vmatpush1.msra.mxu0 0.0
      %1837 = vmatprep.subr.mxu0 0.0
      %1838 = vmatpush1.msra.mxu0 0.0
      %1839 = vmatprep.subr.mxu0 0.0
      %1840 = vmatpush1.msra.mxu0 0.0
      %1841 = vmatprep.subr.mxu0 0.0
      %1842 = vmatpush1.msra.mxu0 0.0
      %1843 = vmatprep.subr.mxu0 0.0
      %1844 = vmatpush1.msra.mxu0 0.0
      %1845 = vmatprep.subr.mxu0 0.0
      %1846 = vmatpush1.msra.mxu0 0.0
      %1847 = vmatprep.subr.mxu0 0.0
      %1848 = vmatpush1.msra.mxu0 0.0
      %1849 = vmatprep.mubr.f32.mxu0 0.0
      %1850 = vmatmul.mubr.f32.gmra.mrb[0].mxu0 %v1783
      %v1851 = vpop.f32.mrb[0].mxu0
      %v1852 = vadd.f32 0.0, %v1851
      %v1853 = vpop.f32.mrb[0].mxu0
      %1854 = vdwg.mxu0
      %v1856 = vsel %vm327, %v485, 0
      %1858 = vmatprep.subr.mxu0 0.0
      %1859 = vmatpush1.msra.mxu0 %v706
      %1860 = vmatprep.subr.mxu0 0.0
      %1861 = vmatpush1.msra.mxu0 %v707
      %1862 = vmatprep.subr.mxu0 0.0
      %1863 = vmatpush1.msra.mxu0 0.0
      %1864 = vmatprep.subr.mxu0 0.0
      %1865 = vmatpush1.msra.mxu0 0.0
      %1866 = vmatprep.subr.mxu0 0.0
      %1867 = vmatpush1.msra.mxu0 0.0
      %1868 = vmatprep.subr.mxu0 0.0
      %1869 = vmatpush1.msra.mxu0 0.0
      %1870 = vmatprep.subr.mxu0 0.0
      %1871 = vmatpush1.msra.mxu0 0.0
      %1872 = vmatprep.subr.mxu0 0.0
      %1873 = vmatpush1.msra.mxu0 0.0
      %1874 = vmatprep.subr.mxu0 0.0
      %1875 = vmatpush1.msra.mxu0 0.0
      %1876 = vmatprep.subr.mxu0 0.0
      %1877 = vmatpush1.msra.mxu0 0.0
      %1878 = vmatprep.subr.mxu0 0.0
      %1879 = vmatpush1.msra.mxu0 0.0
      %1880 = vmatprep.subr.mxu0 0.0
      %1881 = vmatpush1.msra.mxu0 0.0
      %1882 = vmatprep.subr.mxu0 0.0
      %1883 = vmatpush1.msra.mxu0 0.0
      %1884 = vmatprep.subr.mxu0 0.0
      %1885 = vmatpush1.msra.mxu0 0.0
      %1886 = vmatprep.subr.mxu0 0.0
      %1887 = vmatpush1.msra.mxu0 0.0
      %1888 = vmatprep.subr.mxu0 0.0
      %1889 = vmatpush1.msra.mxu0 0.0
      %1890 = vmatprep.subr.mxu0 0.0
      %1891 = vmatpush1.msra.mxu0 0.0
      %1892 = vmatprep.subr.mxu0 0.0
      %1893 = vmatpush1.msra.mxu0 0.0
      %1894 = vmatprep.subr.mxu0 0.0
      %1895 = vmatpush1.msra.mxu0 0.0
      %1896 = vmatprep.subr.mxu0 0.0
      %1897 = vmatpush1.msra.mxu0 0.0
      %1898 = vmatprep.subr.mxu0 0.0
      %1899 = vmatpush1.msra.mxu0 0.0
      %1900 = vmatprep.subr.mxu0 0.0
      %1901 = vmatpush1.msra.mxu0 0.0
      %1902 = vmatprep.subr.mxu0 0.0
      %1903 = vmatpush1.msra.mxu0 0.0
      %1904 = vmatprep.subr.mxu0 0.0
      %1905 = vmatpush1.msra.mxu0 0.0
      %1906 = vmatprep.subr.mxu0 0.0
      %1907 = vmatpush1.msra.mxu0 0.0
      %1908 = vmatprep.subr.mxu0 0.0
      %1909 = vmatpush1.msra.mxu0 0.0
      %1910 = vmatprep.subr.mxu0 0.0
      %1911 = vmatpush1.msra.mxu0 0.0
      %1912 = vmatprep.subr.mxu0 0.0
      %1913 = vmatpush1.msra.mxu0 0.0
      %1914 = vmatprep.subr.mxu0 0.0
      %1915 = vmatpush1.msra.mxu0 0.0
      %1916 = vmatprep.subr.mxu0 0.0
      %1917 = vmatpush1.msra.mxu0 0.0
      %1918 = vmatprep.subr.mxu0 0.0
      %1919 = vmatpush1.msra.mxu0 0.0
      %1920 = vmatprep.subr.mxu0 0.0
      %1921 = vmatpush1.msra.mxu0 0.0
      %1922 = vmatprep.mubr.f32.mxu0 0.0
      %1923 = vmatmul.mubr.f32.gmra.mrb[0].mxu0 %v1856
      %v1924 = vpop.f32.mrb[0].mxu0
      %v1925 = vadd.f32 0.0, %v1924
      %v1926 = vpop.f32.mrb[0].mxu0
      %1927 = vdwg.mxu0
      %v1929 = vsel %vm327, %v490, 0
      %1931 = vmatprep.subr.mxu0 0.0
      %1932 = vmatpush1.msra.mxu0 %v708
      %1933 = vmatprep.subr.mxu0 0.0
      %1934 = vmatpush1.msra.mxu0 %v709
      %1935 = vmatprep.subr.mxu0 0.0
      %1936 = vmatpush1.msra.mxu0 0.0
      %1937 = vmatprep.subr.mxu0 0.0
      %1938 = vmatpush1.msra.mxu0 0.0
      %1939 = vmatprep.subr.mxu0 0.0
      %1940 = vmatpush1.msra.mxu0 0.0
      %1941 = vmatprep.subr.mxu0 0.0
      %1942 = vmatpush1.msra.mxu0 0.0
      %1943 = vmatprep.subr.mxu0 0.0
      %1944 = vmatpush1.msra.mxu0 0.0
      %1945 = vmatprep.subr.mxu0 0.0
      %1946 = vmatpush1.msra.mxu0 0.0
      %1947 = vmatprep.subr.mxu0 0.0
      %1948 = vmatpush1.msra.mxu0 0.0
      %1949 = vmatprep.subr.mxu0 0.0
      %1950 = vmatpush1.msra.mxu0 0.0
      %1951 = vmatprep.subr.mxu0 0.0
      %1952 = vmatpush1.msra.mxu0 0.0
      %1953 = vmatprep.subr.mxu0 0.0
      %1954 = vmatpush1.msra.mxu0 0.0
      %1955 = vmatprep.subr.mxu0 0.0
      %1956 = vmatpush1.msra.mxu0 0.0
      %1957 = vmatprep.subr.mxu0 0.0
      %1958 = vmatpush1.msra.mxu0 0.0
      %1959 = vmatprep.subr.mxu0 0.0
      %1960 = vmatpush1.msra.mxu0 0.0
      %1961 = vmatprep.subr.mxu0 0.0
      %1962 = vmatpush1.msra.mxu0 0.0
      %1963 = vmatprep.subr.mxu0 0.0
      %1964 = vmatpush1.msra.mxu0 0.0
      %1965 = vmatprep.subr.mxu0 0.0
      %1966 = vmatpush1.msra.mxu0 0.0
      %1967 = vmatprep.subr.mxu0 0.0
      %1968 = vmatpush1.msra.mxu0 0.0
      %1969 = vmatprep.subr.mxu0 0.0
      %1970 = vmatpush1.msra.mxu0 0.0
      %1971 = vmatprep.subr.mxu0 0.0
      %1972 = vmatpush1.msra.mxu0 0.0
      %1973 = vmatprep.subr.mxu0 0.0
      %1974 = vmatpush1.msra.mxu0 0.0
      %1975 = vmatprep.subr.mxu0 0.0
      %1976 = vmatpush1.msra.mxu0 0.0
      %1977 = vmatprep.subr.mxu0 0.0
      %1978 = vmatpush1.msra.mxu0 0.0
      %1979 = vmatprep.subr.mxu0 0.0
      %1980 = vmatpush1.msra.mxu0 0.0
      %1981 = vmatprep.subr.mxu0 0.0
      %1982 = vmatpush1.msra.mxu0 0.0
      %1983 = vmatprep.subr.mxu0 0.0
      %1984 = vmatpush1.msra.mxu0 0.0
      %1985 = vmatprep.subr.mxu0 0.0
      %1986 = vmatpush1.msra.mxu0 0.0
      %1987 = vmatprep.subr.mxu0 0.0
      %1988 = vmatpush1.msra.mxu0 0.0
      %1989 = vmatprep.subr.mxu0 0.0
      %1990 = vmatpush1.msra.mxu0 0.0
      %1991 = vmatprep.subr.mxu0 0.0
      %1992 = vmatpush1.msra.mxu0 0.0
      %1993 = vmatprep.subr.mxu0 0.0
      %1994 = vmatpush1.msra.mxu0 0.0
      %1995 = vmatprep.mubr.f32.mxu0 0.0
      %1996 = vmatmul.mubr.f32.gmra.mrb[0].mxu0 %v1929
      %v1997 = vpop.f32.mrb[0].mxu0
      %v1998 = vadd.f32 0.0, %v1997
      %v1999 = vpop.f32.mrb[0].mxu0
      %2000 = vdwg.mxu0
      %v2002 = vsel %vm327, %v493, 0
      %2004 = vmatprep.subr.mxu0 0.0
      %2005 = vmatpush1.msra.mxu0 %v710
      %2006 = vmatprep.subr.mxu0 0.0
      %2007 = vmatpush1.msra.mxu0 %v711
      %2008 = vmatprep.subr.mxu0 0.0
      %2009 = vmatpush1.msra.mxu0 0.0
      %2010 = vmatprep.subr.mxu0 0.0
      %2011 = vmatpush1.msra.mxu0 0.0
      %2012 = vmatprep.subr.mxu0 0.0
      %2013 = vmatpush1.msra.mxu0 0.0
      %2014 = vmatprep.subr.mxu0 0.0
      %2015 = vmatpush1.msra.mxu0 0.0
      %2016 = vmatprep.subr.mxu0 0.0
      %2017 = vmatpush1.msra.mxu0 0.0
      %2018 = vmatprep.subr.mxu0 0.0
      %2019 = vmatpush1.msra.mxu0 0.0
      %2020 = vmatprep.subr.mxu0 0.0
      %2021 = vmatpush1.msra.mxu0 0.0
      %2022 = vmatprep.subr.mxu0 0.0
      %2023 = vmatpush1.msra.mxu0 0.0
      %2024 = vmatprep.subr.mxu0 0.0
      %2025 = vmatpush1.msra.mxu0 0.0
      %2026 = vmatprep.subr.mxu0 0.0
      %2027 = vmatpush1.msra.mxu0 0.0
      %2028 = vmatprep.subr.mxu0 0.0
      %2029 = vmatpush1.msra.mxu0 0.0
      %2030 = vmatprep.subr.mxu0 0.0
      %2031 = vmatpush1.msra.mxu0 0.0
      %2032 = vmatprep.subr.mxu0 0.0
      %2033 = vmatpush1.msra.mxu0 0.0
      %2034 = vmatprep.subr.mxu0 0.0
      %2035 = vmatpush1.msra.mxu0 0.0
      %2036 = vmatprep.subr.mxu0 0.0
      %2037 = vmatpush1.msra.mxu0 0.0
      %2038 = vmatprep.subr.mxu0 0.0
      %2039 = vmatpush1.msra.mxu0 0.0
      %2040 = vmatprep.subr.mxu0 0.0
      %2041 = vmatpush1.msra.mxu0 0.0
      %2042 = vmatprep.subr.mxu0 0.0
      %2043 = vmatpush1.msra.mxu0 0.0
      %2044 = vmatprep.subr.mxu0 0.0
      %2045 = vmatpush1.msra.mxu0 0.0
      %2046 = vmatprep.subr.mxu0 0.0
      %2047 = vmatpush1.msra.mxu0 0.0
      %2048 = vmatprep.subr.mxu0 0.0
      %2049 = vmatpush1.msra.mxu0 0.0
      %2050 = vmatprep.subr.mxu0 0.0
      %2051 = vmatpush1.msra.mxu0 0.0
      %2052 = vmatprep.subr.mxu0 0.0
      %2053 = vmatpush1.msra.mxu0 0.0
      %2054 = vmatprep.subr.mxu0 0.0
      %2055 = vmatpush1.msra.mxu0 0.0
      %2056 = vmatprep.subr.mxu0 0.0
      %2057 = vmatpush1.msra.mxu0 0.0
      %2058 = vmatprep.subr.mxu0 0.0
      %2059 = vmatpush1.msra.mxu0 0.0
      %2060 = vmatprep.subr.mxu0 0.0
      %2061 = vmatpush1.msra.mxu0 0.0
      %2062 = vmatprep.subr.mxu0 0.0
      %2063 = vmatpush1.msra.mxu0 0.0
      %2064 = vmatprep.subr.mxu0 0.0
      %2065 = vmatpush1.msra.mxu0 0.0
      %2066 = vmatprep.subr.mxu0 0.0
      %2067 = vmatpush1.msra.mxu0 0.0
      %2068 = vmatprep.mubr.f32.mxu0 0.0
      %2069 = vmatmul.mubr.f32.gmra.mrb[0].mxu0 %v2002
      %v2070 = vpop.f32.mrb[0].mxu0
      %v2071 = vadd.f32 0.0, %v2070
      %v2072 = vpop.f32.mrb[0].mxu0
      %2073 = vdwg.mxu0
      %v2075 = vsel %vm327, %v498, 0
      %2077 = vmatprep.subr.mxu0 0.0
      %2078 = vmatpush1.msra.mxu0 %v712
      %2079 = vmatprep.subr.mxu0 0.0
      %2080 = vmatpush1.msra.mxu0 %v713
      %2081 = vmatprep.subr.mxu0 0.0
      %2082 = vmatpush1.msra.mxu0 0.0
      %2083 = vmatprep.subr.mxu0 0.0
      %2084 = vmatpush1.msra.mxu0 0.0
      %2085 = vmatprep.subr.mxu0 0.0
      %2086 = vmatpush1.msra.mxu0 0.0
      %2087 = vmatprep.subr.mxu0 0.0
      %2088 = vmatpush1.msra.mxu0 0.0
      %2089 = vmatprep.subr.mxu0 0.0
      %2090 = vmatpush1.msra.mxu0 0.0
      %2091 = vmatprep.subr.mxu0 0.0
      %2092 = vmatpush1.msra.mxu0 0.0
      %2093 = vmatprep.subr.mxu0 0.0
      %2094 = vmatpush1.msra.mxu0 0.0
      %2095 = vmatprep.subr.mxu0 0.0
      %2096 = vmatpush1.msra.mxu0 0.0
      %2097 = vmatprep.subr.mxu0 0.0
      %2098 = vmatpush1.msra.mxu0 0.0
      %2099 = vmatprep.subr.mxu0 0.0
      %2100 = vmatpush1.msra.mxu0 0.0
      %2101 = vmatprep.subr.mxu0 0.0
      %2102 = vmatpush1.msra.mxu0 0.0
      %2103 = vmatprep.subr.mxu0 0.0
      %2104 = vmatpush1.msra.mxu0 0.0
      %2105 = vmatprep.subr.mxu0 0.0
      %2106 = vmatpush1.msra.mxu0 0.0
      %2107 = vmatprep.subr.mxu0 0.0
      %2108 = vmatpush1.msra.mxu0 0.0
      %2109 = vmatprep.subr.mxu0 0.0
      %2110 = vmatpush1.msra.mxu0 0.0
      %2111 = vmatprep.subr.mxu0 0.0
      %2112 = vmatpush1.msra.mxu0 0.0
      %2113 = vmatprep.subr.mxu0 0.0
      %2114 = vmatpush1.msra.mxu0 0.0
      %2115 = vmatprep.subr.mxu0 0.0
      %2116 = vmatpush1.msra.mxu0 0.0
      %2117 = vmatprep.subr.mxu0 0.0
      %2118 = vmatpush1.msra.mxu0 0.0
      %2119 = vmatprep.subr.mxu0 0.0
      %2120 = vmatpush1.msra.mxu0 0.0
      %2121 = vmatprep.subr.mxu0 0.0
      %2122 = vmatpush1.msra.mxu0 0.0
      %2123 = vmatprep.subr.mxu0 0.0
      %2124 = vmatpush1.msra.mxu0 0.0
      %2125 = vmatprep.subr.mxu0 0.0
      %2126 = vmatpush1.msra.mxu0 0.0
      %2127 = vmatprep.subr.mxu0 0.0
      %2128 = vmatpush1.msra.mxu0 0.0
      %2129 = vmatprep.subr.mxu0 0.0
      %2130 = vmatpush1.msra.mxu0 0.0
      %2131 = vmatprep.subr.mxu0 0.0
      %2132 = vmatpush1.msra.mxu0 0.0
      %2133 = vmatprep.subr.mxu0 0.0
      %2134 = vmatpush1.msra.mxu0 0.0
      %2135 = vmatprep.subr.mxu0 0.0
      %2136 = vmatpush1.msra.mxu0 0.0
      %2137 = vmatprep.subr.mxu0 0.0
      %2138 = vmatpush1.msra.mxu0 0.0
      %2139 = vmatprep.subr.mxu0 0.0
      %2140 = vmatpush1.msra.mxu0 0.0
      %2141 = vmatprep.mubr.f32.mxu0 0.0
      %2142 = vmatmul.mubr.f32.gmra.mrb[0].mxu0 %v2075
      %v2143 = vpop.f32.mrb[0].mxu0
      %v2144 = vadd.f32 0.0, %v2143
      %v2145 = vpop.f32.mrb[0].mxu0
      %2146 = vdwg.mxu0
      %v2148 = vsel %vm327, %v501, 0
      %2150 = vmatprep.subr.mxu0 0.0
      %2151 = vmatpush1.msra.mxu0 %v714
      %2152 = vmatprep.subr.mxu0 0.0
      %2153 = vmatpush1.msra.mxu0 %v715
      %2154 = vmatprep.subr.mxu0 0.0
      %2155 = vmatpush1.msra.mxu0 0.0
      %2156 = vmatprep.subr.mxu0 0.0
      %2157 = vmatpush1.msra.mxu0 0.0
      %2158 = vmatprep.subr.mxu0 0.0
      %2159 = vmatpush1.msra.mxu0 0.0
      %2160 = vmatprep.subr.mxu0 0.0
      %2161 = vmatpush1.msra.mxu0 0.0
      %2162 = vmatprep.subr.mxu0 0.0
      %2163 = vmatpush1.msra.mxu0 0.0
      %2164 = vmatprep.subr.mxu0 0.0
      %2165 = vmatpush1.msra.mxu0 0.0
      %2166 = vmatprep.subr.mxu0 0.0
      %2167 = vmatpush1.msra.mxu0 0.0
      %2168 = vmatprep.subr.mxu0 0.0
      %2169 = vmatpush1.msra.mxu0 0.0
      %2170 = vmatprep.subr.mxu0 0.0
      %2171 = vmatpush1.msra.mxu0 0.0
      %2172 = vmatprep.subr.mxu0 0.0
      %2173 = vmatpush1.msra.mxu0 0.0
      %2174 = vmatprep.subr.mxu0 0.0
      %2175 = vmatpush1.msra.mxu0 0.0
      %2176 = vmatprep.subr.mxu0 0.0
      %2177 = vmatpush1.msra.mxu0 0.0
      %2178 = vmatprep.subr.mxu0 0.0
      %2179 = vmatpush1.msra.mxu0 0.0
      %2180 = vmatprep.subr.mxu0 0.0
      %2181 = vmatpush1.msra.mxu0 0.0
      %2182 = vmatprep.subr.mxu0 0.0
      %2183 = vmatpush1.msra.mxu0 0.0
      %2184 = vmatprep.subr.mxu0 0.0
      %2185 = vmatpush1.msra.mxu0 0.0
      %2186 = vmatprep.subr.mxu0 0.0
      %2187 = vmatpush1.msra.mxu0 0.0
      %2188 = vmatprep.subr.mxu0 0.0
      %2189 = vmatpush1.msra.mxu0 0.0
      %2190 = vmatprep.subr.mxu0 0.0
      %2191 = vmatpush1.msra.mxu0 0.0
      %2192 = vmatprep.subr.mxu0 0.0
      %2193 = vmatpush1.msra.mxu0 0.0
      %2194 = vmatprep.subr.mxu0 0.0
      %2195 = vmatpush1.msra.mxu0 0.0
      %2196 = vmatprep.subr.mxu0 0.0
      %2197 = vmatpush1.msra.mxu0 0.0
      %2198 = vmatprep.subr.mxu0 0.0
      %2199 = vmatpush1.msra.mxu0 0.0
      %2200 = vmatprep.subr.mxu0 0.0
      %2201 = vmatpush1.msra.mxu0 0.0
      %2202 = vmatprep.subr.mxu0 0.0
      %2203 = vmatpush1.msra.mxu0 0.0
      %2204 = vmatprep.subr.mxu0 0.0
      %2205 = vmatpush1.msra.mxu0 0.0
      %2206 = vmatprep.subr.mxu0 0.0
      %2207 = vmatpush1.msra.mxu0 0.0
      %2208 = vmatprep.subr.mxu0 0.0
      %2209 = vmatpush1.msra.mxu0 0.0
      %2210 = vmatprep.subr.mxu0 0.0
      %2211 = vmatpush1.msra.mxu0 0.0
      %2212 = vmatprep.subr.mxu0 0.0
      %2213 = vmatpush1.msra.mxu0 0.0
      %2214 = vmatprep.mubr.f32.mxu0 0.0
      %2215 = vmatmul.mubr.f32.gmra.mrb[0].mxu0 %v2148
      %v2216 = vpop.f32.mrb[0].mxu0
      %v2217 = vadd.f32 0.0, %v2216
      %v2218 = vpop.f32.mrb[0].mxu0
      %2219 = vdwg.mxu0
      %v2221 = vsel %vm327, %v506, 0
      %2223 = vmatprep.subr.mxu0 0.0
      %2224 = vmatpush1.msra.mxu0 %v716
      %2225 = vmatprep.subr.mxu0 0.0
      %2226 = vmatpush1.msra.mxu0 %v717
      %2227 = vmatprep.subr.mxu0 0.0
      %2228 = vmatpush1.msra.mxu0 0.0
      %2229 = vmatprep.subr.mxu0 0.0
      %2230 = vmatpush1.msra.mxu0 0.0
      %2231 = vmatprep.subr.mxu0 0.0
      %2232 = vmatpush1.msra.mxu0 0.0
      %2233 = vmatprep.subr.mxu0 0.0
      %2234 = vmatpush1.msra.mxu0 0.0
      %2235 = vmatprep.subr.mxu0 0.0
      %2236 = vmatpush1.msra.mxu0 0.0
      %2237 = vmatprep.subr.mxu0 0.0
      %2238 = vmatpush1.msra.mxu0 0.0
      %2239 = vmatprep.subr.mxu0 0.0
      %2240 = vmatpush1.msra.mxu0 0.0
      %2241 = vmatprep.subr.mxu0 0.0
      %2242 = vmatpush1.msra.mxu0 0.0
      %2243 = vmatprep.subr.mxu0 0.0
      %2244 = vmatpush1.msra.mxu0 0.0
      %2245 = vmatprep.subr.mxu0 0.0
      %2246 = vmatpush1.msra.mxu0 0.0
      %2247 = vmatprep.subr.mxu0 0.0
      %2248 = vmatpush1.msra.mxu0 0.0
      %2249 = vmatprep.subr.mxu0 0.0
      %2250 = vmatpush1.msra.mxu0 0.0
      %2251 = vmatprep.subr.mxu0 0.0
      %2252 = vmatpush1.msra.mxu0 0.0
      %2253 = vmatprep.subr.mxu0 0.0
      %2254 = vmatpush1.msra.mxu0 0.0
      %2255 = vmatprep.subr.mxu0 0.0
      %2256 = vmatpush1.msra.mxu0 0.0
      %2257 = vmatprep.subr.mxu0 0.0
      %2258 = vmatpush1.msra.mxu0 0.0
      %2259 = vmatprep.subr.mxu0 0.0
      %2260 = vmatpush1.msra.mxu0 0.0
      %2261 = vmatprep.subr.mxu0 0.0
      %2262 = vmatpush1.msra.mxu0 0.0
      %2263 = vmatprep.subr.mxu0 0.0
      %2264 = vmatpush1.msra.mxu0 0.0
      %2265 = vmatprep.subr.mxu0 0.0
      %2266 = vmatpush1.msra.mxu0 0.0
      %2267 = vmatprep.subr.mxu0 0.0
      %2268 = vmatpush1.msra.mxu0 0.0
      %2269 = vmatprep.subr.mxu0 0.0
      %2270 = vmatpush1.msra.mxu0 0.0
      %2271 = vmatprep.subr.mxu0 0.0
      %2272 = vmatpush1.msra.mxu0 0.0
      %2273 = vmatprep.subr.mxu0 0.0
      %2274 = vmatpush1.msra.mxu0 0.0
      %2275 = vmatprep.subr.mxu0 0.0
      %2276 = vmatpush1.msra.mxu0 0.0
      %2277 = vmatprep.subr.mxu0 0.0
      %2278 = vmatpush1.msra.mxu0 0.0
      %2279 = vmatprep.subr.mxu0 0.0
      %2280 = vmatpush1.msra.mxu0 0.0
      %2281 = vmatprep.subr.mxu0 0.0
      %2282 = vmatpush1.msra.mxu0 0.0
      %2283 = vmatprep.subr.mxu0 0.0
      %2284 = vmatpush1.msra.mxu0 0.0
      %2285 = vmatprep.subr.mxu0 0.0
      %2286 = vmatpush1.msra.mxu0 0.0
      %2287 = vmatprep.mubr.f32.mxu0 0.0
      %2288 = vmatmul.mubr.f32.gmra.mrb[0].mxu0 %v2221
      %v2289 = vpop.f32.mrb[0].mxu0
      %v2290 = vadd.f32 0.0, %v2289
      %v2291 = vpop.f32.mrb[0].mxu0
      %2292 = vdwg.mxu0
      %v2294 = vsel %vm327, %v509, 0
      %2296 = vmatprep.subr.mxu0 0.0
      %2297 = vmatpush1.msra.mxu0 %v718
      %2298 = vmatprep.subr.mxu0 0.0
      %2299 = vmatpush1.msra.mxu0 %v719
      %2300 = vmatprep.subr.mxu0 0.0
      %2301 = vmatpush1.msra.mxu0 0.0
      %2302 = vmatprep.subr.mxu0 0.0
      %2303 = vmatpush1.msra.mxu0 0.0
      %2304 = vmatprep.subr.mxu0 0.0
      %2305 = vmatpush1.msra.mxu0 0.0
      %2306 = vmatprep.subr.mxu0 0.0
      %2307 = vmatpush1.msra.mxu0 0.0
      %2308 = vmatprep.subr.mxu0 0.0
      %2309 = vmatpush1.msra.mxu0 0.0
      %2310 = vmatprep.subr.mxu0 0.0
      %2311 = vmatpush1.msra.mxu0 0.0
      %2312 = vmatprep.subr.mxu0 0.0
      %2313 = vmatpush1.msra.mxu0 0.0
      %2314 = vmatprep.subr.mxu0 0.0
      %2315 = vmatpush1.msra.mxu0 0.0
      %2316 = vmatprep.subr.mxu0 0.0
      %2317 = vmatpush1.msra.mxu0 0.0
      %2318 = vmatprep.subr.mxu0 0.0
      %2319 = vmatpush1.msra.mxu0 0.0
      %2320 = vmatprep.subr.mxu0 0.0
      %2321 = vmatpush1.msra.mxu0 0.0
      %2322 = vmatprep.subr.mxu0 0.0
      %2323 = vmatpush1.msra.mxu0 0.0
      %2324 = vmatprep.subr.mxu0 0.0
      %2325 = vmatpush1.msra.mxu0 0.0
      %2326 = vmatprep.subr.mxu0 0.0
      %2327 = vmatpush1.msra.mxu0 0.0
      %2328 = vmatprep.subr.mxu0 0.0
      %2329 = vmatpush1.msra.mxu0 0.0
      %2330 = vmatprep.subr.mxu0 0.0
      %2331 = vmatpush1.msra.mxu0 0.0
      %2332 = vmatprep.subr.mxu0 0.0
      %2333 = vmatpush1.msra.mxu0 0.0
      %2334 = vmatprep.subr.mxu0 0.0
      %2335 = vmatpush1.msra.mxu0 0.0
      %2336 = vmatprep.subr.mxu0 0.0
      %2337 = vmatpush1.msra.mxu0 0.0
      %2338 = vmatprep.subr.mxu0 0.0
      %2339 = vmatpush1.msra.mxu0 0.0
      %2340 = vmatprep.subr.mxu0 0.0
      %2341 = vmatpush1.msra.mxu0 0.0
      %2342 = vmatprep.subr.mxu0 0.0
      %2343 = vmatpush1.msra.mxu0 0.0
      %2344 = vmatprep.subr.mxu0 0.0
      %2345 = vmatpush1.msra.mxu0 0.0
      %2346 = vmatprep.subr.mxu0 0.0
      %2347 = vmatpush1.msra.mxu0 0.0
      %2348 = vmatprep.subr.mxu0 0.0
      %2349 = vmatpush1.msra.mxu0 0.0
      %2350 = vmatprep.subr.mxu0 0.0
      %2351 = vmatpush1.msra.mxu0 0.0
      %2352 = vmatprep.subr.mxu0 0.0
      %2353 = vmatpush1.msra.mxu0 0.0
      %2354 = vmatprep.subr.mxu0 0.0
      %2355 = vmatpush1.msra.mxu0 0.0
      %2356 = vmatprep.subr.mxu0 0.0
      %2357 = vmatpush1.msra.mxu0 0.0
      %2358 = vmatprep.subr.mxu0 0.0
      %2359 = vmatpush1.msra.mxu0 0.0
      %2360 = vmatprep.mubr.f32.mxu0 0.0
      %2361 = vmatmul.mubr.f32.gmra.mrb[0].mxu0 %v2294
      %v2362 = vpop.f32.mrb[0].mxu0
      %v2363 = vadd.f32 0.0, %v2362
      %v2364 = vpop.f32.mrb[0].mxu0
      %2365 = vdwg.mxu0
      %v2367 = vsel %vm327, %v514, 0
      %2369 = vmatprep.subr.mxu0 0.0
      %2370 = vmatpush1.msra.mxu0 %v720
      %2371 = vmatprep.subr.mxu0 0.0
      %2372 = vmatpush1.msra.mxu0 %v721
      %2373 = vmatprep.subr.mxu0 0.0
      %2374 = vmatpush1.msra.mxu0 0.0
      %2375 = vmatprep.subr.mxu0 0.0
      %2376 = vmatpush1.msra.mxu0 0.0
      %2377 = vmatprep.subr.mxu0 0.0
      %2378 = vmatpush1.msra.mxu0 0.0
      %2379 = vmatprep.subr.mxu0 0.0
      %2380 = vmatpush1.msra.mxu0 0.0
      %2381 = vmatprep.subr.mxu0 0.0
      %2382 = vmatpush1.msra.mxu0 0.0
      %2383 = vmatprep.subr.mxu0 0.0
      %2384 = vmatpush1.msra.mxu0 0.0
      %2385 = vmatprep.subr.mxu0 0.0
      %2386 = vmatpush1.msra.mxu0 0.0
      %2387 = vmatprep.subr.mxu0 0.0
      %2388 = vmatpush1.msra.mxu0 0.0
      %2389 = vmatprep.subr.mxu0 0.0
      %2390 = vmatpush1.msra.mxu0 0.0
      %2391 = vmatprep.subr.mxu0 0.0
      %2392 = vmatpush1.msra.mxu0 0.0
      %2393 = vmatprep.subr.mxu0 0.0
      %2394 = vmatpush1.msra.mxu0 0.0
      %2395 = vmatprep.subr.mxu0 0.0
      %2396 = vmatpush1.msra.mxu0 0.0
      %2397 = vmatprep.subr.mxu0 0.0
      %2398 = vmatpush1.msra.mxu0 0.0
      %2399 = vmatprep.subr.mxu0 0.0
      %2400 = vmatpush1.msra.mxu0 0.0
      %2401 = vmatprep.subr.mxu0 0.0
      %2402 = vmatpush1.msra.mxu0 0.0
      %2403 = vmatprep.subr.mxu0 0.0
      %2404 = vmatpush1.msra.mxu0 0.0
      %2405 = vmatprep.subr.mxu0 0.0
      %2406 = vmatpush1.msra.mxu0 0.0
      %2407 = vmatprep.subr.mxu0 0.0
      %2408 = vmatpush1.msra.mxu0 0.0
      %2409 = vmatprep.subr.mxu0 0.0
      %2410 = vmatpush1.msra.mxu0 0.0
      %2411 = vmatprep.subr.mxu0 0.0
      %2412 = vmatpush1.msra.mxu0 0.0
      %2413 = vmatprep.subr.mxu0 0.0
      %2414 = vmatpush1.msra.mxu0 0.0
      %2415 = vmatprep.subr.mxu0 0.0
      %2416 = vmatpush1.msra.mxu0 0.0
      %2417 = vmatprep.subr.mxu0 0.0
      %2418 = vmatpush1.msra.mxu0 0.0
      %2419 = vmatprep.subr.mxu0 0.0
      %2420 = vmatpush1.msra.mxu0 0.0
      %2421 = vmatprep.subr.mxu0 0.0
      %2422 = vmatpush1.msra.mxu0 0.0
      %2423 = vmatprep.subr.mxu0 0.0
      %2424 = vmatpush1.msra.mxu0 0.0
      %2425 = vmatprep.subr.mxu0 0.0
      %2426 = vmatpush1.msra.mxu0 0.0
      %2427 = vmatprep.subr.mxu0 0.0
      %2428 = vmatpush1.msra.mxu0 0.0
      %2429 = vmatprep.subr.mxu0 0.0
      %2430 = vmatpush1.msra.mxu0 0.0
      %2431 = vmatprep.subr.mxu0 0.0
      %2432 = vmatpush1.msra.mxu0 0.0
      %2433 = vmatprep.mubr.f32.mxu0 0.0
      %2434 = vmatmul.mubr.f32.gmra.mrb[0].mxu0 %v2367
      %v2435 = vpop.f32.mrb[0].mxu0
      %v2436 = vadd.f32 0.0, %v2435
      %v2437 = vpop.f32.mrb[0].mxu0
      %2438 = vdwg.mxu0
      %v2440 = vsel %vm327, %v517, 0
      %2442 = vmatprep.subr.mxu0 0.0
      %2443 = vmatpush1.msra.mxu0 %v722
      %2444 = vmatprep.subr.mxu0 0.0
      %2445 = vmatpush1.msra.mxu0 %v723
      %2446 = vmatprep.subr.mxu0 0.0
      %2447 = vmatpush1.msra.mxu0 0.0
      %2448 = vmatprep.subr.mxu0 0.0
      %2449 = vmatpush1.msra.mxu0 0.0
      %2450 = vmatprep.subr.mxu0 0.0
      %2451 = vmatpush1.msra.mxu0 0.0
      %2452 = vmatprep.subr.mxu0 0.0
      %2453 = vmatpush1.msra.mxu0 0.0
      %2454 = vmatprep.subr.mxu0 0.0
      %2455 = vmatpush1.msra.mxu0 0.0
      %2456 = vmatprep.subr.mxu0 0.0
      %2457 = vmatpush1.msra.mxu0 0.0
      %2458 = vmatprep.subr.mxu0 0.0
      %2459 = vmatpush1.msra.mxu0 0.0
      %2460 = vmatprep.subr.mxu0 0.0
      %2461 = vmatpush1.msra.mxu0 0.0
      %2462 = vmatprep.subr.mxu0 0.0
      %2463 = vmatpush1.msra.mxu0 0.0
      %2464 = vmatprep.subr.mxu0 0.0
      %2465 = vmatpush1.msra.mxu0 0.0
      %2466 = vmatprep.subr.mxu0 0.0
      %2467 = vmatpush1.msra.mxu0 0.0
      %2468 = vmatprep.subr.mxu0 0.0
      %2469 = vmatpush1.msra.mxu0 0.0
      %2470 = vmatprep.subr.mxu0 0.0
      %2471 = vmatpush1.msra.mxu0 0.0
      %2472 = vmatprep.subr.mxu0 0.0
      %2473 = vmatpush1.msra.mxu0 0.0
      %2474 = vmatprep.subr.mxu0 0.0
      %2475 = vmatpush1.msra.mxu0 0.0
      %2476 = vmatprep.subr.mxu0 0.0
      %2477 = vmatpush1.msra.mxu0 0.0
      %2478 = vmatprep.subr.mxu0 0.0
      %2479 = vmatpush1.msra.mxu0 0.0
      %2480 = vmatprep.subr.mxu0 0.0
      %2481 = vmatpush1.msra.mxu0 0.0
      %2482 = vmatprep.subr.mxu0 0.0
      %2483 = vmatpush1.msra.mxu0 0.0
      %2484 = vmatprep.subr.mxu0 0.0
      %2485 = vmatpush1.msra.mxu0 0.0
      %2486 = vmatprep.subr.mxu0 0.0
      %2487 = vmatpush1.msra.mxu0 0.0
      %2488 = vmatprep.subr.mxu0 0.0
      %2489 = vmatpush1.msra.mxu0 0.0
      %2490 = vmatprep.subr.mxu0 0.0
      %2491 = vmatpush1.msra.mxu0 0.0
      %2492 = vmatprep.subr.mxu0 0.0
      %2493 = vmatpush1.msra.mxu0 0.0
      %2494 = vmatprep.subr.mxu0 0.0
      %2495 = vmatpush1.msra.mxu0 0.0
      %2496 = vmatprep.subr.mxu0 0.0
      %2497 = vmatpush1.msra.mxu0 0.0
      %2498 = vmatprep.subr.mxu0 0.0
      %2499 = vmatpush1.msra.mxu0 0.0
      %2500 = vmatprep.subr.mxu0 0.0
      %2501 = vmatpush1.msra.mxu0 0.0
      %2502 = vmatprep.subr.mxu0 0.0
      %2503 = vmatpush1.msra.mxu0 0.0
      %2504 = vmatprep.subr.mxu0 0.0
      %2505 = vmatpush1.msra.mxu0 0.0
      %2506 = vmatprep.mubr.f32.mxu0 0.0
      %2507 = vmatmul.mubr.f32.gmra.mrb[0].mxu0 %v2440
      %v2508 = vpop.f32.mrb[0].mxu0
      %v2509 = vadd.f32 0.0, %v2508
      %v2510 = vpop.f32.mrb[0].mxu0
      %2511 = vdwg.mxu0
      %v2513 = vsel %vm327, %v522, 0
      %2515 = vmatprep.subr.mxu0 0.0
      %2516 = vmatpush1.msra.mxu0 %v724
      %2517 = vmatprep.subr.mxu0 0.0
      %2518 = vmatpush1.msra.mxu0 %v725
      %2519 = vmatprep.subr.mxu0 0.0
      %2520 = vmatpush1.msra.mxu0 0.0
      %2521 = vmatprep.subr.mxu0 0.0
      %2522 = vmatpush1.msra.mxu0 0.0
      %2523 = vmatprep.subr.mxu0 0.0
      %2524 = vmatpush1.msra.mxu0 0.0
      %2525 = vmatprep.subr.mxu0 0.0
      %2526 = vmatpush1.msra.mxu0 0.0
      %2527 = vmatprep.subr.mxu0 0.0
      %2528 = vmatpush1.msra.mxu0 0.0
      %2529 = vmatprep.subr.mxu0 0.0
      %2530 = vmatpush1.msra.mxu0 0.0
      %2531 = vmatprep.subr.mxu0 0.0
      %2532 = vmatpush1.msra.mxu0 0.0
      %2533 = vmatprep.subr.mxu0 0.0
      %2534 = vmatpush1.msra.mxu0 0.0
      %2535 = vmatprep.subr.mxu0 0.0
      %2536 = vmatpush1.msra.mxu0 0.0
      %2537 = vmatprep.subr.mxu0 0.0
      %2538 = vmatpush1.msra.mxu0 0.0
      %2539 = vmatprep.subr.mxu0 0.0
      %2540 = vmatpush1.msra.mxu0 0.0
      %2541 = vmatprep.subr.mxu0 0.0
      %2542 = vmatpush1.msra.mxu0 0.0
      %2543 = vmatprep.subr.mxu0 0.0
      %2544 = vmatpush1.msra.mxu0 0.0
      %2545 = vmatprep.subr.mxu0 0.0
      %2546 = vmatpush1.msra.mxu0 0.0
      %2547 = vmatprep.subr.mxu0 0.0
      %2548 = vmatpush1.msra.mxu0 0.0
      %2549 = vmatprep.subr.mxu0 0.0
      %2550 = vmatpush1.msra.mxu0 0.0
      %2551 = vmatprep.subr.mxu0 0.0
      %2552 = vmatpush1.msra.mxu0 0.0
      %2553 = vmatprep.subr.mxu0 0.0
      %2554 = vmatpush1.msra.mxu0 0.0
      %2555 = vmatprep.subr.mxu0 0.0
      %2556 = vmatpush1.msra.mxu0 0.0
      %2557 = vmatprep.subr.mxu0 0.0
      %2558 = vmatpush1.msra.mxu0 0.0
      %2559 = vmatprep.subr.mxu0 0.0
      %2560 = vmatpush1.msra.mxu0 0.0
      %2561 = vmatprep.subr.mxu0 0.0
      %2562 = vmatpush1.msra.mxu0 0.0
      %2563 = vmatprep.subr.mxu0 0.0
      %2564 = vmatpush1.msra.mxu0 0.0
      %2565 = vmatprep.subr.mxu0 0.0
      %2566 = vmatpush1.msra.mxu0 0.0
      %2567 = vmatprep.subr.mxu0 0.0
      %2568 = vmatpush1.msra.mxu0 0.0
      %2569 = vmatprep.subr.mxu0 0.0
      %2570 = vmatpush1.msra.mxu0 0.0
      %2571 = vmatprep.subr.mxu0 0.0
      %2572 = vmatpush1.msra.mxu0 0.0
      %2573 = vmatprep.subr.mxu0 0.0
      %2574 = vmatpush1.msra.mxu0 0.0
      %2575 = vmatprep.subr.mxu0 0.0
      %2576 = vmatpush1.msra.mxu0 0.0
      %2577 = vmatprep.subr.mxu0 0.0
      %2578 = vmatpush1.msra.mxu0 0.0
      %2579 = vmatprep.mubr.f32.mxu0 0.0
      %2580 = vmatmul.mubr.f32.gmra.mrb[0].mxu0 %v2513
      %v2581 = vpop.f32.mrb[0].mxu0
      %v2582 = vadd.f32 0.0, %v2581
      %v2583 = vpop.f32.mrb[0].mxu0
      %2584 = vdwg.mxu0
      %v2586 = vsel %vm327, %v525, 0
      %2588 = vmatprep.subr.mxu0 0.0
      %2589 = vmatpush1.msra.mxu0 %v726
      %2590 = vmatprep.subr.mxu0 0.0
      %2591 = vmatpush1.msra.mxu0 %v727
      %2592 = vmatprep.subr.mxu0 0.0
      %2593 = vmatpush1.msra.mxu0 0.0
      %2594 = vmatprep.subr.mxu0 0.0
      %2595 = vmatpush1.msra.mxu0 0.0
      %2596 = vmatprep.subr.mxu0 0.0
      %2597 = vmatpush1.msra.mxu0 0.0
      %2598 = vmatprep.subr.mxu0 0.0
      %2599 = vmatpush1.msra.mxu0 0.0
      %2600 = vmatprep.subr.mxu0 0.0
      %2601 = vmatpush1.msra.mxu0 0.0
      %2602 = vmatprep.subr.mxu0 0.0
      %2603 = vmatpush1.msra.mxu0 0.0
      %2604 = vmatprep.subr.mxu0 0.0
      %2605 = vmatpush1.msra.mxu0 0.0
      %2606 = vmatprep.subr.mxu0 0.0
      %2607 = vmatpush1.msra.mxu0 0.0
      %2608 = vmatprep.subr.mxu0 0.0
      %2609 = vmatpush1.msra.mxu0 0.0
      %2610 = vmatprep.subr.mxu0 0.0
      %2611 = vmatpush1.msra.mxu0 0.0
      %2612 = vmatprep.subr.mxu0 0.0
      %2613 = vmatpush1.msra.mxu0 0.0
      %2614 = vmatprep.subr.mxu0 0.0
      %2615 = vmatpush1.msra.mxu0 0.0
      %2616 = vmatprep.subr.mxu0 0.0
      %2617 = vmatpush1.msra.mxu0 0.0
      %2618 = vmatprep.subr.mxu0 0.0
      %2619 = vmatpush1.msra.mxu0 0.0
      %2620 = vmatprep.subr.mxu0 0.0
      %2621 = vmatpush1.msra.mxu0 0.0
      %2622 = vmatprep.subr.mxu0 0.0
      %2623 = vmatpush1.msra.mxu0 0.0
      %2624 = vmatprep.subr.mxu0 0.0
      %2625 = vmatpush1.msra.mxu0 0.0
      %2626 = vmatprep.subr.mxu0 0.0
      %2627 = vmatpush1.msra.mxu0 0.0
      %2628 = vmatprep.subr.mxu0 0.0
      %2629 = vmatpush1.msra.mxu0 0.0
      %2630 = vmatprep.subr.mxu0 0.0
      %2631 = vmatpush1.msra.mxu0 0.0
      %2632 = vmatprep.subr.mxu0 0.0
      %2633 = vmatpush1.msra.mxu0 0.0
      %2634 = vmatprep.subr.mxu0 0.0
      %2635 = vmatpush1.msra.mxu0 0.0
      %2636 = vmatprep.subr.mxu0 0.0
      %2637 = vmatpush1.msra.mxu0 0.0
      %2638 = vmatprep.subr.mxu0 0.0
      %2639 = vmatpush1.msra.mxu0 0.0
      %2640 = vmatprep.subr.mxu0 0.0
      %2641 = vmatpush1.msra.mxu0 0.0
      %2642 = vmatprep.subr.mxu0 0.0
      %2643 = vmatpush1.msra.mxu0 0.0
      %2644 = vmatprep.subr.mxu0 0.0
      %2645 = vmatpush1.msra.mxu0 0.0
      %2646 = vmatprep.subr.mxu0 0.0
      %2647 = vmatpush1.msra.mxu0 0.0
      %2648 = vmatprep.subr.mxu0 0.0
      %2649 = vmatpush1.msra.mxu0 0.0
      %2650 = vmatprep.subr.mxu0 0.0
      %2651 = vmatpush1.msra.mxu0 0.0
      %2652 = vmatprep.mubr.f32.mxu0 0.0
      %2653 = vmatmul.mubr.f32.gmra.mrb[0].mxu0 %v2586
      %v2654 = vpop.f32.mrb[0].mxu0
      %v2655 = vadd.f32 0.0, %v2654
      %v2656 = vpop.f32.mrb[0].mxu0
      %2657 = vdwg.mxu0
      %v2659 = vsel %vm327, %v530, 0
      %2661 = vmatprep.subr.mxu0 0.0
      %2662 = vmatpush1.msra.mxu0 %v728
      %2663 = vmatprep.subr.mxu0 0.0
      %2664 = vmatpush1.msra.mxu0 %v729
      %2665 = vmatprep.subr.mxu0 0.0
      %2666 = vmatpush1.msra.mxu0 0.0
      %2667 = vmatprep.subr.mxu0 0.0
      %2668 = vmatpush1.msra.mxu0 0.0
      %2669 = vmatprep.subr.mxu0 0.0
      %2670 = vmatpush1.msra.mxu0 0.0
      %2671 = vmatprep.subr.mxu0 0.0
      %2672 = vmatpush1.msra.mxu0 0.0
      %2673 = vmatprep.subr.mxu0 0.0
      %2674 = vmatpush1.msra.mxu0 0.0
      %2675 = vmatprep.subr.mxu0 0.0
      %2676 = vmatpush1.msra.mxu0 0.0
      %2677 = vmatprep.subr.mxu0 0.0
      %2678 = vmatpush1.msra.mxu0 0.0
      %2679 = vmatprep.subr.mxu0 0.0
      %2680 = vmatpush1.msra.mxu0 0.0
      %2681 = vmatprep.subr.mxu0 0.0
      %2682 = vmatpush1.msra.mxu0 0.0
      %2683 = vmatprep.subr.mxu0 0.0
      %2684 = vmatpush1.msra.mxu0 0.0
      %2685 = vmatprep.subr.mxu0 0.0
      %2686 = vmatpush1.msra.mxu0 0.0
      %2687 = vmatprep.subr.mxu0 0.0
      %2688 = vmatpush1.msra.mxu0 0.0
      %2689 = vmatprep.subr.mxu0 0.0
      %2690 = vmatpush1.msra.mxu0 0.0
      %2691 = vmatprep.subr.mxu0 0.0
      %2692 = vmatpush1.msra.mxu0 0.0
      %2693 = vmatprep.subr.mxu0 0.0
      %2694 = vmatpush1.msra.mxu0 0.0
      %2695 = vmatprep.subr.mxu0 0.0
      %2696 = vmatpush1.msra.mxu0 0.0
      %2697 = vmatprep.subr.mxu0 0.0
      %2698 = vmatpush1.msra.mxu0 0.0
      %2699 = vmatprep.subr.mxu0 0.0
      %2700 = vmatpush1.msra.mxu0 0.0
      %2701 = vmatprep.subr.mxu0 0.0
      %2702 = vmatpush1.msra.mxu0 0.0
      %2703 = vmatprep.subr.mxu0 0.0
      %2704 = vmatpush1.msra.mxu0 0.0
      %2705 = vmatprep.subr.mxu0 0.0
      %2706 = vmatpush1.msra.mxu0 0.0
      %2707 = vmatprep.subr.mxu0 0.0
      %2708 = vmatpush1.msra.mxu0 0.0
      %2709 = vmatprep.subr.mxu0 0.0
      %2710 = vmatpush1.msra.mxu0 0.0
      %2711 = vmatprep.subr.mxu0 0.0
      %2712 = vmatpush1.msra.mxu0 0.0
      %2713 = vmatprep.subr.mxu0 0.0
      %2714 = vmatpush1.msra.mxu0 0.0
      %2715 = vmatprep.subr.mxu0 0.0
      %2716 = vmatpush1.msra.mxu0 0.0
      %2717 = vmatprep.subr.mxu0 0.0
      %2718 = vmatpush1.msra.mxu0 0.0
      %2719 = vmatprep.subr.mxu0 0.0
      %2720 = vmatpush1.msra.mxu0 0.0
      %2721 = vmatprep.subr.mxu0 0.0
      %2722 = vmatpush1.msra.mxu0 0.0
      %2723 = vmatprep.subr.mxu0 0.0
      %2724 = vmatpush1.msra.mxu0 0.0
      %2725 = vmatprep.mubr.f32.mxu0 0.0
      %2726 = vmatmul.mubr.f32.gmra.mrb[0].mxu0 %v2659
      %v2727 = vpop.f32.mrb[0].mxu0
      %v2728 = vadd.f32 0.0, %v2727
      %v2729 = vpop.f32.mrb[0].mxu0
      %2730 = vdwg.mxu0
      %v2732 = vsel %vm327, %v533, 0
      %2734 = vmatprep.subr.mxu0 0.0
      %2735 = vmatpush1.msra.mxu0 %v730
      %2736 = vmatprep.subr.mxu0 0.0
      %2737 = vmatpush1.msra.mxu0 %v731
      %2738 = vmatprep.subr.mxu0 0.0
      %2739 = vmatpush1.msra.mxu0 0.0
      %2740 = vmatprep.subr.mxu0 0.0
      %2741 = vmatpush1.msra.mxu0 0.0
      %2742 = vmatprep.subr.mxu0 0.0
      %2743 = vmatpush1.msra.mxu0 0.0
      %2744 = vmatprep.subr.mxu0 0.0
      %2745 = vmatpush1.msra.mxu0 0.0
      %2746 = vmatprep.subr.mxu0 0.0
      %2747 = vmatpush1.msra.mxu0 0.0
      %2748 = vmatprep.subr.mxu0 0.0
      %2749 = vmatpush1.msra.mxu0 0.0
      %2750 = vmatprep.subr.mxu0 0.0
      %2751 = vmatpush1.msra.mxu0 0.0
      %2752 = vmatprep.subr.mxu0 0.0
      %2753 = vmatpush1.msra.mxu0 0.0
      %2754 = vmatprep.subr.mxu0 0.0
      %2755 = vmatpush1.msra.mxu0 0.0
      %2756 = vmatprep.subr.mxu0 0.0
      %2757 = vmatpush1.msra.mxu0 0.0
      %2758 = vmatprep.subr.mxu0 0.0
      %2759 = vmatpush1.msra.mxu0 0.0
      %2760 = vmatprep.subr.mxu0 0.0
      %2761 = vmatpush1.msra.mxu0 0.0
      %2762 = vmatprep.subr.mxu0 0.0
      %2763 = vmatpush1.msra.mxu0 0.0
      %2764 = vmatprep.subr.mxu0 0.0
      %2765 = vmatpush1.msra.mxu0 0.0
      %2766 = vmatprep.subr.mxu0 0.0
      %2767 = vmatpush1.msra.mxu0 0.0
      %2768 = vmatprep.subr.mxu0 0.0
      %2769 = vmatpush1.msra.mxu0 0.0
      %2770 = vmatprep.subr.mxu0 0.0
      %2771 = vmatpush1.msra.mxu0 0.0
      %2772 = vmatprep.subr.mxu0 0.0
      %2773 = vmatpush1.msra.mxu0 0.0
      %2774 = vmatprep.subr.mxu0 0.0
      %2775 = vmatpush1.msra.mxu0 0.0
      %2776 = vmatprep.subr.mxu0 0.0
      %2777 = vmatpush1.msra.mxu0 0.0
      %2778 = vmatprep.subr.mxu0 0.0
      %2779 = vmatpush1.msra.mxu0 0.0
      %2780 = vmatprep.subr.mxu0 0.0
      %2781 = vmatpush1.msra.mxu0 0.0
      %2782 = vmatprep.subr.mxu0 0.0
      %2783 = vmatpush1.msra.mxu0 0.0
      %2784 = vmatprep.subr.mxu0 0.0
      %2785 = vmatpush1.msra.mxu0 0.0
      %2786 = vmatprep.subr.mxu0 0.0
      %2787 = vmatpush1.msra.mxu0 0.0
      %2788 = vmatprep.subr.mxu0 0.0
      %2789 = vmatpush1.msra.mxu0 0.0
      %2790 = vmatprep.subr.mxu0 0.0
      %2791 = vmatpush1.msra.mxu0 0.0
      %2792 = vmatprep.subr.mxu0 0.0
      %2793 = vmatpush1.msra.mxu0 0.0
      %2794 = vmatprep.subr.mxu0 0.0
      %2795 = vmatpush1.msra.mxu0 0.0
      %2796 = vmatprep.subr.mxu0 0.0
      %2797 = vmatpush1.msra.mxu0 0.0
      %2798 = vmatprep.mubr.f32.mxu0 0.0
      %2799 = vmatmul.mubr.f32.gmra.mrb[0].mxu0 %v2732
      %v2800 = vpop.f32.mrb[0].mxu0
      %v2801 = vadd.f32 0.0, %v2800
      %v2802 = vpop.f32.mrb[0].mxu0
      %2803 = vdwg.mxu0
      %v2805 = vsel %vm327, %v538, 0
      %2807 = vmatprep.subr.mxu0 0.0
      %2808 = vmatpush1.msra.mxu0 %v732
      %2809 = vmatprep.subr.mxu0 0.0
      %2810 = vmatpush1.msra.mxu0 %v733
      %2811 = vmatprep.subr.mxu0 0.0
      %2812 = vmatpush1.msra.mxu0 0.0
      %2813 = vmatprep.subr.mxu0 0.0
      %2814 = vmatpush1.msra.mxu0 0.0
      %2815 = vmatprep.subr.mxu0 0.0
      %2816 = vmatpush1.msra.mxu0 0.0
      %2817 = vmatprep.subr.mxu0 0.0
      %2818 = vmatpush1.msra.mxu0 0.0
      %2819 = vmatprep.subr.mxu0 0.0
      %2820 = vmatpush1.msra.mxu0 0.0
      %2821 = vmatprep.subr.mxu0 0.0
      %2822 = vmatpush1.msra.mxu0 0.0
      %2823 = vmatprep.subr.mxu0 0.0
      %2824 = vmatpush1.msra.mxu0 0.0
      %2825 = vmatprep.subr.mxu0 0.0
      %2826 = vmatpush1.msra.mxu0 0.0
      %2827 = vmatprep.subr.mxu0 0.0
      %2828 = vmatpush1.msra.mxu0 0.0
      %2829 = vmatprep.subr.mxu0 0.0
      %2830 = vmatpush1.msra.mxu0 0.0
      %2831 = vmatprep.subr.mxu0 0.0
      %2832 = vmatpush1.msra.mxu0 0.0
      %2833 = vmatprep.subr.mxu0 0.0
      %2834 = vmatpush1.msra.mxu0 0.0
      %2835 = vmatprep.subr.mxu0 0.0
      %2836 = vmatpush1.msra.mxu0 0.0
      %2837 = vmatprep.subr.mxu0 0.0
      %2838 = vmatpush1.msra.mxu0 0.0
      %2839 = vmatprep.subr.mxu0 0.0
      %2840 = vmatpush1.msra.mxu0 0.0
      %2841 = vmatprep.subr.mxu0 0.0
      %2842 = vmatpush1.msra.mxu0 0.0
      %2843 = vmatprep.subr.mxu0 0.0
      %2844 = vmatpush1.msra.mxu0 0.0
      %2845 = vmatprep.subr.mxu0 0.0
      %2846 = vmatpush1.msra.mxu0 0.0
      %2847 = vmatprep.subr.mxu0 0.0
      %2848 = vmatpush1.msra.mxu0 0.0
      %2849 = vmatprep.subr.mxu0 0.0
      %2850 = vmatpush1.msra.mxu0 0.0
      %2851 = vmatprep.subr.mxu0 0.0
      %2852 = vmatpush1.msra.mxu0 0.0
      %2853 = vmatprep.subr.mxu0 0.0
      %2854 = vmatpush1.msra.mxu0 0.0
      %2855 = vmatprep.subr.mxu0 0.0
      %2856 = vmatpush1.msra.mxu0 0.0
      %2857 = vmatprep.subr.mxu0 0.0
      %2858 = vmatpush1.msra.mxu0 0.0
      %2859 = vmatprep.subr.mxu0 0.0
      %2860 = vmatpush1.msra.mxu0 0.0
      %2861 = vmatprep.subr.mxu0 0.0
      %2862 = vmatpush1.msra.mxu0 0.0
      %2863 = vmatprep.subr.mxu0 0.0
      %2864 = vmatpush1.msra.mxu0 0.0
      %2865 = vmatprep.subr.mxu0 0.0
      %2866 = vmatpush1.msra.mxu0 0.0
      %2867 = vmatprep.subr.mxu0 0.0
      %2868 = vmatpush1.msra.mxu0 0.0
      %2869 = vmatprep.subr.mxu0 0.0
      %2870 = vmatpush1.msra.mxu0 0.0
      %2871 = vmatprep.mubr.f32.mxu0 0.0
      %2872 = vmatmul.mubr.f32.gmra.mrb[0].mxu0 %v2805
      %v2873 = vpop.f32.mrb[0].mxu0
      %v2874 = vadd.f32 0.0, %v2873
      %v2875 = vpop.f32.mrb[0].mxu0
      %2876 = vdwg.mxu0
      %v2878 = vsel %vm327, %v541, 0
      %2880 = vmatprep.subr.mxu0 0.0
      %2881 = vmatpush1.msra.mxu0 %v734
      %2882 = vmatprep.subr.mxu0 0.0
      %2883 = vmatpush1.msra.mxu0 %v735
      %2884 = vmatprep.subr.mxu0 0.0
      %2885 = vmatpush1.msra.mxu0 0.0
      %2886 = vmatprep.subr.mxu0 0.0
      %2887 = vmatpush1.msra.mxu0 0.0
      %2888 = vmatprep.subr.mxu0 0.0
      %2889 = vmatpush1.msra.mxu0 0.0
      %2890 = vmatprep.subr.mxu0 0.0
      %2891 = vmatpush1.msra.mxu0 0.0
      %2892 = vmatprep.subr.mxu0 0.0
      %2893 = vmatpush1.msra.mxu0 0.0
      %2894 = vmatprep.subr.mxu0 0.0
      %2895 = vmatpush1.msra.mxu0 0.0
      %2896 = vmatprep.subr.mxu0 0.0
      %2897 = vmatpush1.msra.mxu0 0.0
      %2898 = vmatprep.subr.mxu0 0.0
      %2899 = vmatpush1.msra.mxu0 0.0
      %2900 = vmatprep.subr.mxu0 0.0
      %2901 = vmatpush1.msra.mxu0 0.0
      %2902 = vmatprep.subr.mxu0 0.0
      %2903 = vmatpush1.msra.mxu0 0.0
      %2904 = vmatprep.subr.mxu0 0.0
      %2905 = vmatpush1.msra.mxu0 0.0
      %2906 = vmatprep.subr.mxu0 0.0
      %2907 = vmatpush1.msra.mxu0 0.0
      %2908 = vmatprep.subr.mxu0 0.0
      %2909 = vmatpush1.msra.mxu0 0.0
      %2910 = vmatprep.subr.mxu0 0.0
      %2911 = vmatpush1.msra.mxu0 0.0
      %2912 = vmatprep.subr.mxu0 0.0
      %2913 = vmatpush1.msra.mxu0 0.0
      %2914 = vmatprep.subr.mxu0 0.0
      %2915 = vmatpush1.msra.mxu0 0.0
      %2916 = vmatprep.subr.mxu0 0.0
      %2917 = vmatpush1.msra.mxu0 0.0
      %2918 = vmatprep.subr.mxu0 0.0
      %2919 = vmatpush1.msra.mxu0 0.0
      %2920 = vmatprep.subr.mxu0 0.0
      %2921 = vmatpush1.msra.mxu0 0.0
      %2922 = vmatprep.subr.mxu0 0.0
      %2923 = vmatpush1.msra.mxu0 0.0
      %2924 = vmatprep.subr.mxu0 0.0
      %2925 = vmatpush1.msra.mxu0 0.0
      %2926 = vmatprep.subr.mxu0 0.0
      %2927 = vmatpush1.msra.mxu0 0.0
      %2928 = vmatprep.subr.mxu0 0.0
      %2929 = vmatpush1.msra.mxu0 0.0
      %2930 = vmatprep.subr.mxu0 0.0
      %2931 = vmatpush1.msra.mxu0 0.0
      %2932 = vmatprep.subr.mxu0 0.0
      %2933 = vmatpush1.msra.mxu0 0.0
      %2934 = vmatprep.subr.mxu0 0.0
      %2935 = vmatpush1.msra.mxu0 0.0
      %2936 = vmatprep.subr.mxu0 0.0
      %2937 = vmatpush1.msra.mxu0 0.0
      %2938 = vmatprep.subr.mxu0 0.0
      %2939 = vmatpush1.msra.mxu0 0.0
      %2940 = vmatprep.subr.mxu0 0.0
      %2941 = vmatpush1.msra.mxu0 0.0
      %2942 = vmatprep.subr.mxu0 0.0
      %2943 = vmatpush1.msra.mxu0 0.0
      %2944 = vmatprep.mubr.f32.mxu0 0.0
      %2945 = vmatmul.mubr.f32.gmra.mrb[0].mxu0 %v2878
      %v2946 = vpop.f32.mrb[0].mxu0
      %v2947 = vadd.f32 0.0, %v2946
      %v2948 = vpop.f32.mrb[0].mxu0
      %2949 = vdwg.mxu0
      %v2951 = vsel %vm327, %v546, 0
      %2953 = vmatprep.subr.mxu0 0.0
      %2954 = vmatpush1.msra.mxu0 %v736
      %2955 = vmatprep.subr.mxu0 0.0
      %2956 = vmatpush1.msra.mxu0 %v737
      %2957 = vmatprep.subr.mxu0 0.0
      %2958 = vmatpush1.msra.mxu0 0.0
      %2959 = vmatprep.subr.mxu0 0.0
      %2960 = vmatpush1.msra.mxu0 0.0
      %2961 = vmatprep.subr.mxu0 0.0
      %2962 = vmatpush1.msra.mxu0 0.0
      %2963 = vmatprep.subr.mxu0 0.0
      %2964 = vmatpush1.msra.mxu0 0.0
      %2965 = vmatprep.subr.mxu0 0.0
      %2966 = vmatpush1.msra.mxu0 0.0
      %2967 = vmatprep.subr.mxu0 0.0
      %2968 = vmatpush1.msra.mxu0 0.0
      %2969 = vmatprep.subr.mxu0 0.0
      %2970 = vmatpush1.msra.mxu0 0.0
      %2971 = vmatprep.subr.mxu0 0.0
      %2972 = vmatpush1.msra.mxu0 0.0
      %2973 = vmatprep.subr.mxu0 0.0
      %2974 = vmatpush1.msra.mxu0 0.0
      %2975 = vmatprep.subr.mxu0 0.0
      %2976 = vmatpush1.msra.mxu0 0.0
      %2977 = vmatprep.subr.mxu0 0.0
      %2978 = vmatpush1.msra.mxu0 0.0
      %2979 = vmatprep.subr.mxu0 0.0
      %2980 = vmatpush1.msra.mxu0 0.0
      %2981 = vmatprep.subr.mxu0 0.0
      %2982 = vmatpush1.msra.mxu0 0.0
      %2983 = vmatprep.subr.mxu0 0.0
      %2984 = vmatpush1.msra.mxu0 0.0
      %2985 = vmatprep.subr.mxu0 0.0
      %2986 = vmatpush1.msra.mxu0 0.0
      %2987 = vmatprep.subr.mxu0 0.0
      %2988 = vmatpush1.msra.mxu0 0.0
      %2989 = vmatprep.subr.mxu0 0.0
      %2990 = vmatpush1.msra.mxu0 0.0
      %2991 = vmatprep.subr.mxu0 0.0
      %2992 = vmatpush1.msra.mxu0 0.0
      %2993 = vmatprep.subr.mxu0 0.0
      %2994 = vmatpush1.msra.mxu0 0.0
      %2995 = vmatprep.subr.mxu0 0.0
      %2996 = vmatpush1.msra.mxu0 0.0
      %2997 = vmatprep.subr.mxu0 0.0
      %2998 = vmatpush1.msra.mxu0 0.0
      %2999 = vmatprep.subr.mxu0 0.0
      %3000 = vmatpush1.msra.mxu0 0.0
      %3001 = vmatprep.subr.mxu0 0.0
      %3002 = vmatpush1.msra.mxu0 0.0
      %3003 = vmatprep.subr.mxu0 0.0
      %3004 = vmatpush1.msra.mxu0 0.0
      %3005 = vmatprep.subr.mxu0 0.0
      %3006 = vmatpush1.msra.mxu0 0.0
      %3007 = vmatprep.subr.mxu0 0.0
      %3008 = vmatpush1.msra.mxu0 0.0
      %3009 = vmatprep.subr.mxu0 0.0
      %3010 = vmatpush1.msra.mxu0 0.0
      %3011 = vmatprep.subr.mxu0 0.0
      %3012 = vmatpush1.msra.mxu0 0.0
      %3013 = vmatprep.subr.mxu0 0.0
      %3014 = vmatpush1.msra.mxu0 0.0
      %3015 = vmatprep.subr.mxu0 0.0
      %3016 = vmatpush1.msra.mxu0 0.0
      %3017 = vmatprep.mubr.f32.mxu0 0.0
      %3018 = vmatmul.mubr.f32.gmra.mrb[0].mxu0 %v2951
      %v3019 = vpop.f32.mrb[0].mxu0
      %v3020 = vadd.f32 0.0, %v3019
      %v3021 = vpop.f32.mrb[0].mxu0
      %3022 = vdwg.mxu0
      %v3024 = vsel %vm327, %v549, 0
      %3026 = vmatprep.subr.mxu0 0.0
      %3027 = vmatpush1.msra.mxu0 %v738
      %3028 = vmatprep.subr.mxu0 0.0
      %3029 = vmatpush1.msra.mxu0 %v739
      %3030 = vmatprep.subr.mxu0 0.0
      %3031 = vmatpush1.msra.mxu0 0.0
      %3032 = vmatprep.subr.mxu0 0.0
      %3033 = vmatpush1.msra.mxu0 0.0
      %3034 = vmatprep.subr.mxu0 0.0
      %3035 = vmatpush1.msra.mxu0 0.0
      %3036 = vmatprep.subr.mxu0 0.0
      %3037 = vmatpush1.msra.mxu0 0.0
      %3038 = vmatprep.subr.mxu0 0.0
      %3039 = vmatpush1.msra.mxu0 0.0
      %3040 = vmatprep.subr.mxu0 0.0
      %3041 = vmatpush1.msra.mxu0 0.0
      %3042 = vmatprep.subr.mxu0 0.0
      %3043 = vmatpush1.msra.mxu0 0.0
      %3044 = vmatprep.subr.mxu0 0.0
      %3045 = vmatpush1.msra.mxu0 0.0
      %3046 = vmatprep.subr.mxu0 0.0
      %3047 = vmatpush1.msra.mxu0 0.0
      %3048 = vmatprep.subr.mxu0 0.0
      %3049 = vmatpush1.msra.mxu0 0.0
      %3050 = vmatprep.subr.mxu0 0.0
      %3051 = vmatpush1.msra.mxu0 0.0
      %3052 = vmatprep.subr.mxu0 0.0
      %3053 = vmatpush1.msra.mxu0 0.0
      %3054 = vmatprep.subr.mxu0 0.0
      %3055 = vmatpush1.msra.mxu0 0.0
      %3056 = vmatprep.subr.mxu0 0.0
      %3057 = vmatpush1.msra.mxu0 0.0
      %3058 = vmatprep.subr.mxu0 0.0
      %3059 = vmatpush1.msra.mxu0 0.0
      %3060 = vmatprep.subr.mxu0 0.0
      %3061 = vmatpush1.msra.mxu0 0.0
      %3062 = vmatprep.subr.mxu0 0.0
      %3063 = vmatpush1.msra.mxu0 0.0
      %3064 = vmatprep.subr.mxu0 0.0
      %3065 = vmatpush1.msra.mxu0 0.0
      %3066 = vmatprep.subr.mxu0 0.0
      %3067 = vmatpush1.msra.mxu0 0.0
      %3068 = vmatprep.subr.mxu0 0.0
      %3069 = vmatpush1.msra.mxu0 0.0
      %3070 = vmatprep.subr.mxu0 0.0
      %3071 = vmatpush1.msra.mxu0 0.0
      %3072 = vmatprep.subr.mxu0 0.0
      %3073 = vmatpush1.msra.mxu0 0.0
      %3074 = vmatprep.subr.mxu0 0.0
      %3075 = vmatpush1.msra.mxu0 0.0
      %3076 = vmatprep.subr.mxu0 0.0
      %3077 = vmatpush1.msra.mxu0 0.0
      %3078 = vmatprep.subr.mxu0 0.0
      %3079 = vmatpush1.msra.mxu0 0.0
      %3080 = vmatprep.subr.mxu0 0.0
      %3081 = vmatpush1.msra.mxu0 0.0
      %3082 = vmatprep.subr.mxu0 0.0
      %3083 = vmatpush1.msra.mxu0 0.0
      %3084 = vmatprep.subr.mxu0 0.0
      %3085 = vmatpush1.msra.mxu0 0.0
      %3086 = vmatprep.subr.mxu0 0.0
      %3087 = vmatpush1.msra.mxu0 0.0
      %3088 = vmatprep.subr.mxu0 0.0
      %3089 = vmatpush1.msra.mxu0 0.0
      %3090 = vmatprep.mubr.f32.mxu0 0.0
      %3091 = vmatmul.mubr.f32.gmra.mrb[0].mxu0 %v3024
      %v3092 = vpop.f32.mrb[0].mxu0
      %v3093 = vadd.f32 0.0, %v3092
      %v3094 = vpop.f32.mrb[0].mxu0
      %3095 = vdwg.mxu0
      %v3097 = vsel %vm327, %v554, 0
      %3099 = vmatprep.subr.mxu0 0.0
      %3100 = vmatpush1.msra.mxu0 %v740
      %3101 = vmatprep.subr.mxu0 0.0
      %3102 = vmatpush1.msra.mxu0 %v741
      %3103 = vmatprep.subr.mxu0 0.0
      %3104 = vmatpush1.msra.mxu0 0.0
      %3105 = vmatprep.subr.mxu0 0.0
      %3106 = vmatpush1.msra.mxu0 0.0
      %3107 = vmatprep.subr.mxu0 0.0
      %3108 = vmatpush1.msra.mxu0 0.0
      %3109 = vmatprep.subr.mxu0 0.0
      %3110 = vmatpush1.msra.mxu0 0.0
      %3111 = vmatprep.subr.mxu0 0.0
      %3112 = vmatpush1.msra.mxu0 0.0
      %3113 = vmatprep.subr.mxu0 0.0
      %3114 = vmatpush1.msra.mxu0 0.0
      %3115 = vmatprep.subr.mxu0 0.0
      %3116 = vmatpush1.msra.mxu0 0.0
      %3117 = vmatprep.subr.mxu0 0.0
      %3118 = vmatpush1.msra.mxu0 0.0
      %3119 = vmatprep.subr.mxu0 0.0
      %3120 = vmatpush1.msra.mxu0 0.0
      %3121 = vmatprep.subr.mxu0 0.0
      %3122 = vmatpush1.msra.mxu0 0.0
      %3123 = vmatprep.subr.mxu0 0.0
      %3124 = vmatpush1.msra.mxu0 0.0
      %3125 = vmatprep.subr.mxu0 0.0
      %3126 = vmatpush1.msra.mxu0 0.0
      %3127 = vmatprep.subr.mxu0 0.0
      %3128 = vmatpush1.msra.mxu0 0.0
      %3129 = vmatprep.subr.mxu0 0.0
      %3130 = vmatpush1.msra.mxu0 0.0
      %3131 = vmatprep.subr.mxu0 0.0
      %3132 = vmatpush1.msra.mxu0 0.0
      %3133 = vmatprep.subr.mxu0 0.0
      %3134 = vmatpush1.msra.mxu0 0.0
      %3135 = vmatprep.subr.mxu0 0.0
      %3136 = vmatpush1.msra.mxu0 0.0
      %3137 = vmatprep.subr.mxu0 0.0
      %3138 = vmatpush1.msra.mxu0 0.0
      %3139 = vmatprep.subr.mxu0 0.0
      %3140 = vmatpush1.msra.mxu0 0.0
      %3141 = vmatprep.subr.mxu0 0.0
      %3142 = vmatpush1.msra.mxu0 0.0
      %3143 = vmatprep.subr.mxu0 0.0
      %3144 = vmatpush1.msra.mxu0 0.0
      %3145 = vmatprep.subr.mxu0 0.0
      %3146 = vmatpush1.msra.mxu0 0.0
      %3147 = vmatprep.subr.mxu0 0.0
      %3148 = vmatpush1.msra.mxu0 0.0
      %3149 = vmatprep.subr.mxu0 0.0
      %3150 = vmatpush1.msra.mxu0 0.0
      %3151 = vmatprep.subr.mxu0 0.0
      %3152 = vmatpush1.msra.mxu0 0.0
      %3153 = vmatprep.subr.mxu0 0.0
      %3154 = vmatpush1.msra.mxu0 0.0
      %3155 = vmatprep.subr.mxu0 0.0
      %3156 = vmatpush1.msra.mxu0 0.0
      %3157 = vmatprep.subr.mxu0 0.0
      %3158 = vmatpush1.msra.mxu0 0.0
      %3159 = vmatprep.subr.mxu0 0.0
      %3160 = vmatpush1.msra.mxu0 0.0
      %3161 = vmatprep.subr.mxu0 0.0
      %3162 = vmatpush1.msra.mxu0 0.0
      %3163 = vmatprep.mubr.f32.mxu0 0.0
      %3164 = vmatmul.mubr.f32.gmra.mrb[0].mxu0 %v3097
      %v3165 = vpop.f32.mrb[0].mxu0
      %v3166 = vadd.f32 0.0, %v3165
      %v3167 = vpop.f32.mrb[0].mxu0
      %3168 = vdwg.mxu0
      %v3170 = vsel %vm327, %v557, 0
      %3172 = vmatprep.subr.mxu0 0.0
      %3173 = vmatpush1.msra.mxu0 %v742
      %3174 = vmatprep.subr.mxu0 0.0
      %3175 = vmatpush1.msra.mxu0 %v743
      %3176 = vmatprep.subr.mxu0 0.0
      %3177 = vmatpush1.msra.mxu0 0.0
      %3178 = vmatprep.subr.mxu0 0.0
      %3179 = vmatpush1.msra.mxu0 0.0
      %3180 = vmatprep.subr.mxu0 0.0
      %3181 = vmatpush1.msra.mxu0 0.0
      %3182 = vmatprep.subr.mxu0 0.0
      %3183 = vmatpush1.msra.mxu0 0.0
      %3184 = vmatprep.subr.mxu0 0.0
      %3185 = vmatpush1.msra.mxu0 0.0
      %3186 = vmatprep.subr.mxu0 0.0
      %3187 = vmatpush1.msra.mxu0 0.0
      %3188 = vmatprep.subr.mxu0 0.0
      %3189 = vmatpush1.msra.mxu0 0.0
      %3190 = vmatprep.subr.mxu0 0.0
      %3191 = vmatpush1.msra.mxu0 0.0
      %3192 = vmatprep.subr.mxu0 0.0
      %3193 = vmatpush1.msra.mxu0 0.0
      %3194 = vmatprep.subr.mxu0 0.0
      %3195 = vmatpush1.msra.mxu0 0.0
      %3196 = vmatprep.subr.mxu0 0.0
      %3197 = vmatpush1.msra.mxu0 0.0
      %3198 = vmatprep.subr.mxu0 0.0
      %3199 = vmatpush1.msra.mxu0 0.0
      %3200 = vmatprep.subr.mxu0 0.0
      %3201 = vmatpush1.msra.mxu0 0.0
      %3202 = vmatprep.subr.mxu0 0.0
      %3203 = vmatpush1.msra.mxu0 0.0
      %3204 = vmatprep.subr.mxu0 0.0
      %3205 = vmatpush1.msra.mxu0 0.0
      %3206 = vmatprep.subr.mxu0 0.0
      %3207 = vmatpush1.msra.mxu0 0.0
      %3208 = vmatprep.subr.mxu0 0.0
      %3209 = vmatpush1.msra.mxu0 0.0
      %3210 = vmatprep.subr.mxu0 0.0
      %3211 = vmatpush1.msra.mxu0 0.0
      %3212 = vmatprep.subr.mxu0 0.0
      %3213 = vmatpush1.msra.mxu0 0.0
      %3214 = vmatprep.subr.mxu0 0.0
      %3215 = vmatpush1.msra.mxu0 0.0
      %3216 = vmatprep.subr.mxu0 0.0
      %3217 = vmatpush1.msra.mxu0 0.0
      %3218 = vmatprep.subr.mxu0 0.0
      %3219 = vmatpush1.msra.mxu0 0.0
      %3220 = vmatprep.subr.mxu0 0.0
      %3221 = vmatpush1.msra.mxu0 0.0
      %3222 = vmatprep.subr.mxu0 0.0
      %3223 = vmatpush1.msra.mxu0 0.0
      %3224 = vmatprep.subr.mxu0 0.0
      %3225 = vmatpush1.msra.mxu0 0.0
      %3226 = vmatprep.subr.mxu0 0.0
      %3227 = vmatpush1.msra.mxu0 0.0
      %3228 = vmatprep.subr.mxu0 0.0
      %3229 = vmatpush1.msra.mxu0 0.0
      %3230 = vmatprep.subr.mxu0 0.0
      %3231 = vmatpush1.msra.mxu0 0.0
      %3232 = vmatprep.subr.mxu0 0.0
      %3233 = vmatpush1.msra.mxu0 0.0
      %3234 = vmatprep.subr.mxu0 0.0
      %3235 = vmatpush1.msra.mxu0 0.0
      %3236 = vmatprep.mubr.f32.mxu0 0.0
      %3237 = vmatmul.mubr.f32.gmra.mrb[0].mxu0 %v3170
      %v3238 = vpop.f32.mrb[0].mxu0
      %v3239 = vadd.f32 0.0, %v3238
      %v3240 = vpop.f32.mrb[0].mxu0
      %3241 = vdwg.mxu0
      %v3243 = vsel %vm327, %v562, 0
      %3245 = vmatprep.subr.mxu0 0.0
      %3246 = vmatpush1.msra.mxu0 %v744
      %3247 = vmatprep.subr.mxu0 0.0
      %3248 = vmatpush1.msra.mxu0 %v745
      %3249 = vmatprep.subr.mxu0 0.0
      %3250 = vmatpush1.msra.mxu0 0.0
      %3251 = vmatprep.subr.mxu0 0.0
      %3252 = vmatpush1.msra.mxu0 0.0
      %3253 = vmatprep.subr.mxu0 0.0
      %3254 = vmatpush1.msra.mxu0 0.0
      %3255 = vmatprep.subr.mxu0 0.0
      %3256 = vmatpush1.msra.mxu0 0.0
      %3257 = vmatprep.subr.mxu0 0.0
      %3258 = vmatpush1.msra.mxu0 0.0
      %3259 = vmatprep.subr.mxu0 0.0
      %3260 = vmatpush1.msra.mxu0 0.0
      %3261 = vmatprep.subr.mxu0 0.0
      %3262 = vmatpush1.msra.mxu0 0.0
      %3263 = vmatprep.subr.mxu0 0.0
      %3264 = vmatpush1.msra.mxu0 0.0
      %3265 = vmatprep.subr.mxu0 0.0
      %3266 = vmatpush1.msra.mxu0 0.0
      %3267 = vmatprep.subr.mxu0 0.0
      %3268 = vmatpush1.msra.mxu0 0.0
      %3269 = vmatprep.subr.mxu0 0.0
      %3270 = vmatpush1.msra.mxu0 0.0
      %3271 = vmatprep.subr.mxu0 0.0
      %3272 = vmatpush1.msra.mxu0 0.0
      %3273 = vmatprep.subr.mxu0 0.0
      %3274 = vmatpush1.msra.mxu0 0.0
      %3275 = vmatprep.subr.mxu0 0.0
      %3276 = vmatpush1.msra.mxu0 0.0
      %3277 = vmatprep.subr.mxu0 0.0
      %3278 = vmatpush1.msra.mxu0 0.0
      %3279 = vmatprep.subr.mxu0 0.0
      %3280 = vmatpush1.msra.mxu0 0.0
      %3281 = vmatprep.subr.mxu0 0.0
      %3282 = vmatpush1.msra.mxu0 0.0
      %3283 = vmatprep.subr.mxu0 0.0
      %3284 = vmatpush1.msra.mxu0 0.0
      %3285 = vmatprep.subr.mxu0 0.0
      %3286 = vmatpush1.msra.mxu0 0.0
      %3287 = vmatprep.subr.mxu0 0.0
      %3288 = vmatpush1.msra.mxu0 0.0
      %3289 = vmatprep.subr.mxu0 0.0
      %3290 = vmatpush1.msra.mxu0 0.0
      %3291 = vmatprep.subr.mxu0 0.0
      %3292 = vmatpush1.msra.mxu0 0.0
      %3293 = vmatprep.subr.mxu0 0.0
      %3294 = vmatpush1.msra.mxu0 0.0
      %3295 = vmatprep.subr.mxu0 0.0
      %3296 = vmatpush1.msra.mxu0 0.0
      %3297 = vmatprep.subr.mxu0 0.0
      %3298 = vmatpush1.msra.mxu0 0.0
      %3299 = vmatprep.subr.mxu0 0.0
      %3300 = vmatpush1.msra.mxu0 0.0
      %3301 = vmatprep.subr.mxu0 0.0
      %3302 = vmatpush1.msra.mxu0 0.0
      %3303 = vmatprep.subr.mxu0 0.0
      %3304 = vmatpush1.msra.mxu0 0.0
      %3305 = vmatprep.subr.mxu0 0.0
      %3306 = vmatpush1.msra.mxu0 0.0
      %3307 = vmatprep.subr.mxu0 0.0
      %3308 = vmatpush1.msra.mxu0 0.0
      %3309 = vmatprep.mubr.f32.mxu0 0.0
      %3310 = vmatmul.mubr.f32.gmra.mrb[0].mxu0 %v3243
      %v3311 = vpop.f32.mrb[0].mxu0
      %v3312 = vadd.f32 0.0, %v3311
      %v3313 = vpop.f32.mrb[0].mxu0
      %3314 = vdwg.mxu0
      %v3316 = vsel %vm327, %v565, 0
      %3318 = vmatprep.subr.mxu0 0.0
      %3319 = vmatpush1.msra.mxu0 %v746
      %3320 = vmatprep.subr.mxu0 0.0
      %3321 = vmatpush1.msra.mxu0 %v747
      %3322 = vmatprep.subr.mxu0 0.0
      %3323 = vmatpush1.msra.mxu0 0.0
      %3324 = vmatprep.subr.mxu0 0.0
      %3325 = vmatpush1.msra.mxu0 0.0
      %3326 = vmatprep.subr.mxu0 0.0
      %3327 = vmatpush1.msra.mxu0 0.0
      %3328 = vmatprep.subr.mxu0 0.0
      %3329 = vmatpush1.msra.mxu0 0.0
      %3330 = vmatprep.subr.mxu0 0.0
      %3331 = vmatpush1.msra.mxu0 0.0
      %3332 = vmatprep.subr.mxu0 0.0
      %3333 = vmatpush1.msra.mxu0 0.0
      %3334 = vmatprep.subr.mxu0 0.0
      %3335 = vmatpush1.msra.mxu0 0.0
      %3336 = vmatprep.subr.mxu0 0.0
      %3337 = vmatpush1.msra.mxu0 0.0
      %3338 = vmatprep.subr.mxu0 0.0
      %3339 = vmatpush1.msra.mxu0 0.0
      %3340 = vmatprep.subr.mxu0 0.0
      %3341 = vmatpush1.msra.mxu0 0.0
      %3342 = vmatprep.subr.mxu0 0.0
      %3343 = vmatpush1.msra.mxu0 0.0
      %3344 = vmatprep.subr.mxu0 0.0
      %3345 = vmatpush1.msra.mxu0 0.0
      %3346 = vmatprep.subr.mxu0 0.0
      %3347 = vmatpush1.msra.mxu0 0.0
      %3348 = vmatprep.subr.mxu0 0.0
      %3349 = vmatpush1.msra.mxu0 0.0
      %3350 = vmatprep.subr.mxu0 0.0
      %3351 = vmatpush1.msra.mxu0 0.0
      %3352 = vmatprep.subr.mxu0 0.0
      %3353 = vmatpush1.msra.mxu0 0.0
      %3354 = vmatprep.subr.mxu0 0.0
      %3355 = vmatpush1.msra.mxu0 0.0
      %3356 = vmatprep.subr.mxu0 0.0
      %3357 = vmatpush1.msra.mxu0 0.0
      %3358 = vmatprep.subr.mxu0 0.0
      %3359 = vmatpush1.msra.mxu0 0.0
      %3360 = vmatprep.subr.mxu0 0.0
      %3361 = vmatpush1.msra.mxu0 0.0
      %3362 = vmatprep.subr.mxu0 0.0
      %3363 = vmatpush1.msra.mxu0 0.0
      %3364 = vmatprep.subr.mxu0 0.0
      %3365 = vmatpush1.msra.mxu0 0.0
      %3366 = vmatprep.subr.mxu0 0.0
      %3367 = vmatpush1.msra.mxu0 0.0
      %3368 = vmatprep.subr.mxu0 0.0
      %3369 = vmatpush1.msra.mxu0 0.0
      %3370 = vmatprep.subr.mxu0 0.0
      %3371 = vmatpush1.msra.mxu0 0.0
      %3372 = vmatprep.subr.mxu0 0.0
      %3373 = vmatpush1.msra.mxu0 0.0
      %3374 = vmatprep.subr.mxu0 0.0
      %3375 = vmatpush1.msra.mxu0 0.0
      %3376 = vmatprep.subr.mxu0 0.0
      %3377 = vmatpush1.msra.mxu0 0.0
      %3378 = vmatprep.subr.mxu0 0.0
      %3379 = vmatpush1.msra.mxu0 0.0
      %3380 = vmatprep.subr.mxu0 0.0
      %3381 = vmatpush1.msra.mxu0 0.0
      %3382 = vmatprep.mubr.f32.mxu0 0.0
      %3383 = vmatmul.mubr.f32.gmra.mrb[0].mxu0 %v3316
      %v3384 = vpop.f32.mrb[0].mxu0
      %v3385 = vadd.f32 0.0, %v3384
      %v3386 = vpop.f32.mrb[0].mxu0
      %3387 = vdwg.mxu0
      %v3389 = vsel %vm327, %v570, 0
      %3391 = vmatprep.subr.mxu0 0.0
      %3392 = vmatpush1.msra.mxu0 %v748
      %3393 = vmatprep.subr.mxu0 0.0
      %3394 = vmatpush1.msra.mxu0 %v749
      %3395 = vmatprep.subr.mxu0 0.0
      %3396 = vmatpush1.msra.mxu0 0.0
      %3397 = vmatprep.subr.mxu0 0.0
      %3398 = vmatpush1.msra.mxu0 0.0
      %3399 = vmatprep.subr.mxu0 0.0
      %3400 = vmatpush1.msra.mxu0 0.0
      %3401 = vmatprep.subr.mxu0 0.0
      %3402 = vmatpush1.msra.mxu0 0.0
      %3403 = vmatprep.subr.mxu0 0.0
      %3404 = vmatpush1.msra.mxu0 0.0
      %3405 = vmatprep.subr.mxu0 0.0
      %3406 = vmatpush1.msra.mxu0 0.0
      %3407 = vmatprep.subr.mxu0 0.0
      %3408 = vmatpush1.msra.mxu0 0.0
      %3409 = vmatprep.subr.mxu0 0.0
      %3410 = vmatpush1.msra.mxu0 0.0
      %3411 = vmatprep.subr.mxu0 0.0
      %3412 = vmatpush1.msra.mxu0 0.0
      %3413 = vmatprep.subr.mxu0 0.0
      %3414 = vmatpush1.msra.mxu0 0.0
      %3415 = vmatprep.subr.mxu0 0.0
      %3416 = vmatpush1.msra.mxu0 0.0
      %3417 = vmatprep.subr.mxu0 0.0
      %3418 = vmatpush1.msra.mxu0 0.0
      %3419 = vmatprep.subr.mxu0 0.0
      %3420 = vmatpush1.msra.mxu0 0.0
      %3421 = vmatprep.subr.mxu0 0.0
      %3422 = vmatpush1.msra.mxu0 0.0
      %3423 = vmatprep.subr.mxu0 0.0
      %3424 = vmatpush1.msra.mxu0 0.0
      %3425 = vmatprep.subr.mxu0 0.0
      %3426 = vmatpush1.msra.mxu0 0.0
      %3427 = vmatprep.subr.mxu0 0.0
      %3428 = vmatpush1.msra.mxu0 0.0
      %3429 = vmatprep.subr.mxu0 0.0
      %3430 = vmatpush1.msra.mxu0 0.0
      %3431 = vmatprep.subr.mxu0 0.0
      %3432 = vmatpush1.msra.mxu0 0.0
      %3433 = vmatprep.subr.mxu0 0.0
      %3434 = vmatpush1.msra.mxu0 0.0
      %3435 = vmatprep.subr.mxu0 0.0
      %3436 = vmatpush1.msra.mxu0 0.0
      %3437 = vmatprep.subr.mxu0 0.0
      %3438 = vmatpush1.msra.mxu0 0.0
      %3439 = vmatprep.subr.mxu0 0.0
      %3440 = vmatpush1.msra.mxu0 0.0
      %3441 = vmatprep.subr.mxu0 0.0
      %3442 = vmatpush1.msra.mxu0 0.0
      %3443 = vmatprep.subr.mxu0 0.0
      %3444 = vmatpush1.msra.mxu0 0.0
      %3445 = vmatprep.subr.mxu0 0.0
      %3446 = vmatpush1.msra.mxu0 0.0
      %3447 = vmatprep.subr.mxu0 0.0
      %3448 = vmatpush1.msra.mxu0 0.0
      %3449 = vmatprep.subr.mxu0 0.0
      %3450 = vmatpush1.msra.mxu0 0.0
      %3451 = vmatprep.subr.mxu0 0.0
      %3452 = vmatpush1.msra.mxu0 0.0
      %3453 = vmatprep.subr.mxu0 0.0
      %3454 = vmatpush1.msra.mxu0 0.0
      %3455 = vmatprep.mubr.f32.mxu0 0.0
      %3456 = vmatmul.mubr.f32.gmra.mrb[0].mxu0 %v3389
      %v3457 = vpop.f32.mrb[0].mxu0
      %v3458 = vadd.f32 0.0, %v3457
      %v3459 = vpop.f32.mrb[0].mxu0
      %3460 = vdwg.mxu0
      %v3462 = vsel %vm327, %v573, 0
      %3464 = vmatprep.subr.mxu0 0.0
      %3465 = vmatpush1.msra.mxu0 %v750
      %3466 = vmatprep.subr.mxu0 0.0
      %3467 = vmatpush1.msra.mxu0 %v751
      %3468 = vmatprep.subr.mxu0 0.0
      %3469 = vmatpush1.msra.mxu0 0.0
      %3470 = vmatprep.subr.mxu0 0.0
      %3471 = vmatpush1.msra.mxu0 0.0
      %3472 = vmatprep.subr.mxu0 0.0
      %3473 = vmatpush1.msra.mxu0 0.0
      %3474 = vmatprep.subr.mxu0 0.0
      %3475 = vmatpush1.msra.mxu0 0.0
      %3476 = vmatprep.subr.mxu0 0.0
      %3477 = vmatpush1.msra.mxu0 0.0
      %3478 = vmatprep.subr.mxu0 0.0
      %3479 = vmatpush1.msra.mxu0 0.0
      %3480 = vmatprep.subr.mxu0 0.0
      %3481 = vmatpush1.msra.mxu0 0.0
      %3482 = vmatprep.subr.mxu0 0.0
      %3483 = vmatpush1.msra.mxu0 0.0
      %3484 = vmatprep.subr.mxu0 0.0
      %3485 = vmatpush1.msra.mxu0 0.0
      %3486 = vmatprep.subr.mxu0 0.0
      %3487 = vmatpush1.msra.mxu0 0.0
      %3488 = vmatprep.subr.mxu0 0.0
      %3489 = vmatpush1.msra.mxu0 0.0
      %3490 = vmatprep.subr.mxu0 0.0
      %3491 = vmatpush1.msra.mxu0 0.0
      %3492 = vmatprep.subr.mxu0 0.0
      %3493 = vmatpush1.msra.mxu0 0.0
      %3494 = vmatprep.subr.mxu0 0.0
      %3495 = vmatpush1.msra.mxu0 0.0
      %3496 = vmatprep.subr.mxu0 0.0
      %3497 = vmatpush1.msra.mxu0 0.0
      %3498 = vmatprep.subr.mxu0 0.0
      %3499 = vmatpush1.msra.mxu0 0.0
      %3500 = vmatprep.subr.mxu0 0.0
      %3501 = vmatpush1.msra.mxu0 0.0
      %3502 = vmatprep.subr.mxu0 0.0
      %3503 = vmatpush1.msra.mxu0 0.0
      %3504 = vmatprep.subr.mxu0 0.0
      %3505 = vmatpush1.msra.mxu0 0.0
      %3506 = vmatprep.subr.mxu0 0.0
      %3507 = vmatpush1.msra.mxu0 0.0
      %3508 = vmatprep.subr.mxu0 0.0
      %3509 = vmatpush1.msra.mxu0 0.0
      %3510 = vmatprep.subr.mxu0 0.0
      %3511 = vmatpush1.msra.mxu0 0.0
      %3512 = vmatprep.subr.mxu0 0.0
      %3513 = vmatpush1.msra.mxu0 0.0
      %3514 = vmatprep.subr.mxu0 0.0
      %3515 = vmatpush1.msra.mxu0 0.0
      %3516 = vmatprep.subr.mxu0 0.0
      %3517 = vmatpush1.msra.mxu0 0.0
      %3518 = vmatprep.subr.mxu0 0.0
      %3519 = vmatpush1.msra.mxu0 0.0
      %3520 = vmatprep.subr.mxu0 0.0
      %3521 = vmatpush1.msra.mxu0 0.0
      %3522 = vmatprep.subr.mxu0 0.0
      %3523 = vmatpush1.msra.mxu0 0.0
      %3524 = vmatprep.subr.mxu0 0.0
      %3525 = vmatpush1.msra.mxu0 0.0
      %3526 = vmatprep.subr.mxu0 0.0
      %3527 = vmatpush1.msra.mxu0 0.0
      %3528 = vmatprep.mubr.f32.mxu0 0.0
      %3529 = vmatmul.mubr.f32.gmra.mrb[0].mxu0 %v3462
      %v3530 = vpop.f32.mrb[0].mxu0
      %v3531 = vadd.f32 0.0, %v3530
      %v3532 = vpop.f32.mrb[0].mxu0
      %3533 = vdwg.mxu0
      %v3535 = vsel %vm327, %v578, 0
      %3537 = vmatprep.subr.mxu0 0.0
      %3538 = vmatpush1.msra.mxu0 %v752
      %3539 = vmatprep.subr.mxu0 0.0
      %3540 = vmatpush1.msra.mxu0 %v753
      %3541 = vmatprep.subr.mxu0 0.0
      %3542 = vmatpush1.msra.mxu0 0.0
      %3543 = vmatprep.subr.mxu0 0.0
      %3544 = vmatpush1.msra.mxu0 0.0
      %3545 = vmatprep.subr.mxu0 0.0
      %3546 = vmatpush1.msra.mxu0 0.0
      %3547 = vmatprep.subr.mxu0 0.0
      %3548 = vmatpush1.msra.mxu0 0.0
      %3549 = vmatprep.subr.mxu0 0.0
      %3550 = vmatpush1.msra.mxu0 0.0
      %3551 = vmatprep.subr.mxu0 0.0
      %3552 = vmatpush1.msra.mxu0 0.0
      %3553 = vmatprep.subr.mxu0 0.0
      %3554 = vmatpush1.msra.mxu0 0.0
      %3555 = vmatprep.subr.mxu0 0.0
      %3556 = vmatpush1.msra.mxu0 0.0
      %3557 = vmatprep.subr.mxu0 0.0
      %3558 = vmatpush1.msra.mxu0 0.0
      %3559 = vmatprep.subr.mxu0 0.0
      %3560 = vmatpush1.msra.mxu0 0.0
      %3561 = vmatprep.subr.mxu0 0.0
      %3562 = vmatpush1.msra.mxu0 0.0
      %3563 = vmatprep.subr.mxu0 0.0
      %3564 = vmatpush1.msra.mxu0 0.0
      %3565 = vmatprep.subr.mxu0 0.0
      %3566 = vmatpush1.msra.mxu0 0.0
      %3567 = vmatprep.subr.mxu0 0.0
      %3568 = vmatpush1.msra.mxu0 0.0
      %3569 = vmatprep.subr.mxu0 0.0
      %3570 = vmatpush1.msra.mxu0 0.0
      %3571 = vmatprep.subr.mxu0 0.0
      %3572 = vmatpush1.msra.mxu0 0.0
      %3573 = vmatprep.subr.mxu0 0.0
      %3574 = vmatpush1.msra.mxu0 0.0
      %3575 = vmatprep.subr.mxu0 0.0
      %3576 = vmatpush1.msra.mxu0 0.0
      %3577 = vmatprep.subr.mxu0 0.0
      %3578 = vmatpush1.msra.mxu0 0.0
      %3579 = vmatprep.subr.mxu0 0.0
      %3580 = vmatpush1.msra.mxu0 0.0
      %3581 = vmatprep.subr.mxu0 0.0
      %3582 = vmatpush1.msra.mxu0 0.0
      %3583 = vmatprep.subr.mxu0 0.0
      %3584 = vmatpush1.msra.mxu0 0.0
      %3585 = vmatprep.subr.mxu0 0.0
      %3586 = vmatpush1.msra.mxu0 0.0
      %3587 = vmatprep.subr.mxu0 0.0
      %3588 = vmatpush1.msra.mxu0 0.0
      %3589 = vmatprep.subr.mxu0 0.0
      %3590 = vmatpush1.msra.mxu0 0.0
      %3591 = vmatprep.subr.mxu0 0.0
      %3592 = vmatpush1.msra.mxu0 0.0
      %3593 = vmatprep.subr.mxu0 0.0
      %3594 = vmatpush1.msra.mxu0 0.0
      %3595 = vmatprep.subr.mxu0 0.0
      %3596 = vmatpush1.msra.mxu0 0.0
      %3597 = vmatprep.subr.mxu0 0.0
      %3598 = vmatpush1.msra.mxu0 0.0
      %3599 = vmatprep.subr.mxu0 0.0
      %3600 = vmatpush1.msra.mxu0 0.0
      %3601 = vmatprep.mubr.f32.mxu0 0.0
      %3602 = vmatmul.mubr.f32.gmra.mrb[0].mxu0 %v3535
      %v3603 = vpop.f32.mrb[0].mxu0
      %v3604 = vadd.f32 0.0, %v3603
      %v3605 = vpop.f32.mrb[0].mxu0
      %3606 = vdwg.mxu0
      %v3608 = vsel %vm327, %v581, 0
      %3610 = vmatprep.subr.mxu0 0.0
      %3611 = vmatpush1.msra.mxu0 %v754
      %3612 = vmatprep.subr.mxu0 0.0
      %3613 = vmatpush1.msra.mxu0 %v755
      %3614 = vmatprep.subr.mxu0 0.0
      %3615 = vmatpush1.msra.mxu0 0.0
      %3616 = vmatprep.subr.mxu0 0.0
      %3617 = vmatpush1.msra.mxu0 0.0
      %3618 = vmatprep.subr.mxu0 0.0
      %3619 = vmatpush1.msra.mxu0 0.0
      %3620 = vmatprep.subr.mxu0 0.0
      %3621 = vmatpush1.msra.mxu0 0.0
      %3622 = vmatprep.subr.mxu0 0.0
      %3623 = vmatpush1.msra.mxu0 0.0
      %3624 = vmatprep.subr.mxu0 0.0
      %3625 = vmatpush1.msra.mxu0 0.0
      %3626 = vmatprep.subr.mxu0 0.0
      %3627 = vmatpush1.msra.mxu0 0.0
      %3628 = vmatprep.subr.mxu0 0.0
      %3629 = vmatpush1.msra.mxu0 0.0
      %3630 = vmatprep.subr.mxu0 0.0
      %3631 = vmatpush1.msra.mxu0 0.0
      %3632 = vmatprep.subr.mxu0 0.0
      %3633 = vmatpush1.msra.mxu0 0.0
      %3634 = vmatprep.subr.mxu0 0.0
      %3635 = vmatpush1.msra.mxu0 0.0
      %3636 = vmatprep.subr.mxu0 0.0
      %3637 = vmatpush1.msra.mxu0 0.0
      %3638 = vmatprep.subr.mxu0 0.0
      %3639 = vmatpush1.msra.mxu0 0.0
      %3640 = vmatprep.subr.mxu0 0.0
      %3641 = vmatpush1.msra.mxu0 0.0
      %3642 = vmatprep.subr.mxu0 0.0
      %3643 = vmatpush1.msra.mxu0 0.0
      %3644 = vmatprep.subr.mxu0 0.0
      %3645 = vmatpush1.msra.mxu0 0.0
      %3646 = vmatprep.subr.mxu0 0.0
      %3647 = vmatpush1.msra.mxu0 0.0
      %3648 = vmatprep.subr.mxu0 0.0
      %3649 = vmatpush1.msra.mxu0 0.0
      %3650 = vmatprep.subr.mxu0 0.0
      %3651 = vmatpush1.msra.mxu0 0.0
      %3652 = vmatprep.subr.mxu0 0.0
      %3653 = vmatpush1.msra.mxu0 0.0
      %3654 = vmatprep.subr.mxu0 0.0
      %3655 = vmatpush1.msra.mxu0 0.0
      %3656 = vmatprep.subr.mxu0 0.0
      %3657 = vmatpush1.msra.mxu0 0.0
      %3658 = vmatprep.subr.mxu0 0.0
      %3659 = vmatpush1.msra.mxu0 0.0
      %3660 = vmatprep.subr.mxu0 0.0
      %3661 = vmatpush1.msra.mxu0 0.0
      %3662 = vmatprep.subr.mxu0 0.0
      %3663 = vmatpush1.msra.mxu0 0.0
      %3664 = vmatprep.subr.mxu0 0.0
      %3665 = vmatpush1.msra.mxu0 0.0
      %3666 = vmatprep.subr.mxu0 0.0
      %3667 = vmatpush1.msra.mxu0 0.0
      %3668 = vmatprep.subr.mxu0 0.0
      %3669 = vmatpush1.msra.mxu0 0.0
      %3670 = vmatprep.subr.mxu0 0.0
      %3671 = vmatpush1.msra.mxu0 0.0
      %3672 = vmatprep.subr.mxu0 0.0
      %3673 = vmatpush1.msra.mxu0 0.0
      %3674 = vmatprep.mubr.f32.mxu0 0.0
      %3675 = vmatmul.mubr.f32.gmra.mrb[0].mxu0 %v3608
      %v3676 = vpop.f32.mrb[0].mxu0
      %v3677 = vadd.f32 0.0, %v3676
      %v3678 = vpop.f32.mrb[0].mxu0
      %3679 = vdwg.mxu0
      %v3681 = vsel %vm327, %v586, 0
      %3683 = vmatprep.subr.mxu0 0.0
      %3684 = vmatpush1.msra.mxu0 %v756
      %3685 = vmatprep.subr.mxu0 0.0
      %3686 = vmatpush1.msra.mxu0 %v757
      %3687 = vmatprep.subr.mxu0 0.0
      %3688 = vmatpush1.msra.mxu0 0.0
      %3689 = vmatprep.subr.mxu0 0.0
      %3690 = vmatpush1.msra.mxu0 0.0
      %3691 = vmatprep.subr.mxu0 0.0
      %3692 = vmatpush1.msra.mxu0 0.0
      %3693 = vmatprep.subr.mxu0 0.0
      %3694 = vmatpush1.msra.mxu0 0.0
      %3695 = vmatprep.subr.mxu0 0.0
      %3696 = vmatpush1.msra.mxu0 0.0
      %3697 = vmatprep.subr.mxu0 0.0
      %3698 = vmatpush1.msra.mxu0 0.0
      %3699 = vmatprep.subr.mxu0 0.0
      %3700 = vmatpush1.msra.mxu0 0.0
      %3701 = vmatprep.subr.mxu0 0.0
      %3702 = vmatpush1.msra.mxu0 0.0
      %3703 = vmatprep.subr.mxu0 0.0
      %3704 = vmatpush1.msra.mxu0 0.0
      %3705 = vmatprep.subr.mxu0 0.0
      %3706 = vmatpush1.msra.mxu0 0.0
      %3707 = vmatprep.subr.mxu0 0.0
      %3708 = vmatpush1.msra.mxu0 0.0
      %3709 = vmatprep.subr.mxu0 0.0
      %3710 = vmatpush1.msra.mxu0 0.0
      %3711 = vmatprep.subr.mxu0 0.0
      %3712 = vmatpush1.msra.mxu0 0.0
      %3713 = vmatprep.subr.mxu0 0.0
      %3714 = vmatpush1.msra.mxu0 0.0
      %3715 = vmatprep.subr.mxu0 0.0
      %3716 = vmatpush1.msra.mxu0 0.0
      %3717 = vmatprep.subr.mxu0 0.0
      %3718 = vmatpush1.msra.mxu0 0.0
      %3719 = vmatprep.subr.mxu0 0.0
      %3720 = vmatpush1.msra.mxu0 0.0
      %3721 = vmatprep.subr.mxu0 0.0
      %3722 = vmatpush1.msra.mxu0 0.0
      %3723 = vmatprep.subr.mxu0 0.0
      %3724 = vmatpush1.msra.mxu0 0.0
      %3725 = vmatprep.subr.mxu0 0.0
      %3726 = vmatpush1.msra.mxu0 0.0
      %3727 = vmatprep.subr.mxu0 0.0
      %3728 = vmatpush1.msra.mxu0 0.0
      %3729 = vmatprep.subr.mxu0 0.0
      %3730 = vmatpush1.msra.mxu0 0.0
      %3731 = vmatprep.subr.mxu0 0.0
      %3732 = vmatpush1.msra.mxu0 0.0
      %3733 = vmatprep.subr.mxu0 0.0
      %3734 = vmatpush1.msra.mxu0 0.0
      %3735 = vmatprep.subr.mxu0 0.0
      %3736 = vmatpush1.msra.mxu0 0.0
      %3737 = vmatprep.subr.mxu0 0.0
      %3738 = vmatpush1.msra.mxu0 0.0
      %3739 = vmatprep.subr.mxu0 0.0
      %3740 = vmatpush1.msra.mxu0 0.0
      %3741 = vmatprep.subr.mxu0 0.0
      %3742 = vmatpush1.msra.mxu0 0.0
      %3743 = vmatprep.subr.mxu0 0.0
      %3744 = vmatpush1.msra.mxu0 0.0
      %3745 = vmatprep.subr.mxu0 0.0
      %3746 = vmatpush1.msra.mxu0 0.0
      %3747 = vmatprep.mubr.f32.mxu0 0.0
      %3748 = vmatmul.mubr.f32.gmra.mrb[0].mxu0 %v3681
      %v3749 = vpop.f32.mrb[0].mxu0
      %v3750 = vadd.f32 0.0, %v3749
      %v3751 = vpop.f32.mrb[0].mxu0
      %3752 = vdwg.mxu0
      %v3754 = vsel %vm327, %v589, 0
      %3756 = vmatprep.subr.mxu0 0.0
      %3757 = vmatpush1.msra.mxu0 %v758
      %3758 = vmatprep.subr.mxu0 0.0
      %3759 = vmatpush1.msra.mxu0 %v759
      %3760 = vmatprep.subr.mxu0 0.0
      %3761 = vmatpush1.msra.mxu0 0.0
      %3762 = vmatprep.subr.mxu0 0.0
      %3763 = vmatpush1.msra.mxu0 0.0
      %3764 = vmatprep.subr.mxu0 0.0
      %3765 = vmatpush1.msra.mxu0 0.0
      %3766 = vmatprep.subr.mxu0 0.0
      %3767 = vmatpush1.msra.mxu0 0.0
      %3768 = vmatprep.subr.mxu0 0.0
      %3769 = vmatpush1.msra.mxu0 0.0
      %3770 = vmatprep.subr.mxu0 0.0
      %3771 = vmatpush1.msra.mxu0 0.0
      %3772 = vmatprep.subr.mxu0 0.0
      %3773 = vmatpush1.msra.mxu0 0.0
      %3774 = vmatprep.subr.mxu0 0.0
      %3775 = vmatpush1.msra.mxu0 0.0
      %3776 = vmatprep.subr.mxu0 0.0
      %3777 = vmatpush1.msra.mxu0 0.0
      %3778 = vmatprep.subr.mxu0 0.0
      %3779 = vmatpush1.msra.mxu0 0.0
      %3780 = vmatprep.subr.mxu0 0.0
      %3781 = vmatpush1.msra.mxu0 0.0
      %3782 = vmatprep.subr.mxu0 0.0
      %3783 = vmatpush1.msra.mxu0 0.0
      %3784 = vmatprep.subr.mxu0 0.0
      %3785 = vmatpush1.msra.mxu0 0.0
      %3786 = vmatprep.subr.mxu0 0.0
      %3787 = vmatpush1.msra.mxu0 0.0
      %3788 = vmatprep.subr.mxu0 0.0
      %3789 = vmatpush1.msra.mxu0 0.0
      %3790 = vmatprep.subr.mxu0 0.0
      %3791 = vmatpush1.msra.mxu0 0.0
      %3792 = vmatprep.subr.mxu0 0.0
      %3793 = vmatpush1.msra.mxu0 0.0
      %3794 = vmatprep.subr.mxu0 0.0
      %3795 = vmatpush1.msra.mxu0 0.0
      %3796 = vmatprep.subr.mxu0 0.0
      %3797 = vmatpush1.msra.mxu0 0.0
      %3798 = vmatprep.subr.mxu0 0.0
      %3799 = vmatpush1.msra.mxu0 0.0
      %3800 = vmatprep.subr.mxu0 0.0
      %3801 = vmatpush1.msra.mxu0 0.0
      %3802 = vmatprep.subr.mxu0 0.0
      %3803 = vmatpush1.msra.mxu0 0.0
      %3804 = vmatprep.subr.mxu0 0.0
      %3805 = vmatpush1.msra.mxu0 0.0
      %3806 = vmatprep.subr.mxu0 0.0
      %3807 = vmatpush1.msra.mxu0 0.0
      %3808 = vmatprep.subr.mxu0 0.0
      %3809 = vmatpush1.msra.mxu0 0.0
      %3810 = vmatprep.subr.mxu0 0.0
      %3811 = vmatpush1.msra.mxu0 0.0
      %3812 = vmatprep.subr.mxu0 0.0
      %3813 = vmatpush1.msra.mxu0 0.0
      %3814 = vmatprep.subr.mxu0 0.0
      %3815 = vmatpush1.msra.mxu0 0.0
      %3816 = vmatprep.subr.mxu0 0.0
      %3817 = vmatpush1.msra.mxu0 0.0
      %3818 = vmatprep.subr.mxu0 0.0
      %3819 = vmatpush1.msra.mxu0 0.0
      %3820 = vmatprep.mubr.f32.mxu0 0.0
      %3821 = vmatmul.mubr.f32.gmra.mrb[0].mxu0 %v3754
      %v3822 = vpop.f32.mrb[0].mxu0
      %v3823 = vadd.f32 0.0, %v3822
      %v3824 = vpop.f32.mrb[0].mxu0
      %3825 = vdwg.mxu0
      %vm3826 = vcmask 64512
      %3827 = vst.msk [vmem:[%s170] sm:$0xff] %vm3826, %v830
      %3828 = vst.msk [vmem:[%s170 + $0x8] sm:$0xff] %vm3826, %v903
      %3829 = vst.msk [vmem:[%s170 + $0x10] sm:$0xff] %vm3826, %v976
      %3830 = vst.msk [vmem:[%s170 + $0x18] sm:$0xff] %vm3826, %v1049
      %3831 = vst.msk [vmem:[%s170 + $0x20] sm:$0xff] %vm3826, %v1122
      %3832 = vst.msk [vmem:[%s170 + $0x28] sm:$0xff] %vm3826, %v1195
      %3833 = vst.msk [vmem:[%s170 + $0x30] sm:$0xff] %vm3826, %v1268
      %3834 = vst.msk [vmem:[%s170 + $0x38] sm:$0xff] %vm3826, %v1341
      %3835 = vst.msk [vmem:[%s170 + $0x40] sm:$0xff] %vm3826, %v1414
      %3836 = vst.msk [vmem:[%s170 + $0x48] sm:$0xff] %vm3826, %v1487
      %3837 = vst.msk [vmem:[%s170 + $0x50] sm:$0xff] %vm3826, %v1560
      %3838 = vst.msk [vmem:[%s170 + $0x58] sm:$0xff] %vm3826, %v1633
      %3839 = vst.msk [vmem:[%s170 + $0x60] sm:$0xff] %vm3826, %v1706
      %3840 = vst.msk [vmem:[%s170 + $0x68] sm:$0xff] %vm3826, %v1779
      %3841 = vst.msk [vmem:[%s170 + $0x70] sm:$0xff] %vm3826, %v1852
      %3842 = vst.msk [vmem:[%s170 + $0x78] sm:$0xff] %vm3826, %v1925
      %3843 = vst.msk [vmem:[%s170 + $0x80] sm:$0xff] %vm3826, %v1998
      %3844 = vst.msk [vmem:[%s170 + $0x88] sm:$0xff] %vm3826, %v2071
      %3845 = vst.msk [vmem:[%s170 + $0x90] sm:$0xff] %vm3826, %v2144
      %3846 = vst.msk [vmem:[%s170 + $0x98] sm:$0xff] %vm3826, %v2217
      %3847 = vst.msk [vmem:[%s170 + $0xa0] sm:$0xff] %vm3826, %v2290
      %3848 = vst.msk [vmem:[%s170 + $0xa8] sm:$0xff] %vm3826, %v2363
      %3849 = vst.msk [vmem:[%s170 + $0xb0] sm:$0xff] %vm3826, %v2436
      %3850 = vst.msk [vmem:[%s170 + $0xb8] sm:$0xff] %vm3826, %v2509
      %3851 = vst.msk [vmem:[%s170 + $0xc0] sm:$0xff] %vm3826, %v2582
      %3852 = vst.msk [vmem:[%s170 + $0xc8] sm:$0xff] %vm3826, %v2655
      %3853 = vst.msk [vmem:[%s170 + $0xd0] sm:$0xff] %vm3826, %v2728
      %3854 = vst.msk [vmem:[%s170 + $0xd8] sm:$0xff] %vm3826, %v2801
      %3855 = vst.msk [vmem:[%s170 + $0xe0] sm:$0xff] %vm3826, %v2874
      %3856 = vst.msk [vmem:[%s170 + $0xe8] sm:$0xff] %vm3826, %v2947
      %3857 = vst.msk [vmem:[%s170 + $0xf0] sm:$0xff] %vm3826, %v3020
      %3858 = vst.msk [vmem:[%s170 + $0xf8] sm:$0xff] %vm3826, %v3093
      %3859 = vst.msk [vmem:[%s170 + $0x100] sm:$0xff] %vm3826, %v3166
      %3860 = vst.msk [vmem:[%s170 + $0x108] sm:$0xff] %vm3826, %v3239
      %3861 = vst.msk [vmem:[%s170 + $0x110] sm:$0xff] %vm3826, %v3312
      %3862 = vst.msk [vmem:[%s170 + $0x118] sm:$0xff] %vm3826, %v3385
      %3863 = vst.msk [vmem:[%s170 + $0x120] sm:$0xff] %vm3826, %v3458
      %3864 = vst.msk [vmem:[%s170 + $0x128] sm:$0xff] %vm3826, %v3531
      %3865 = vst.msk [vmem:[%s170 + $0x130] sm:$0xff] %vm3826, %v3604
      %3866 = vst.msk [vmem:[%s170 + $0x138] sm:$0xff] %vm3826, %v3677
      %3867 = vst.msk [vmem:[%s170 + $0x140] sm:$0xff] %vm3826, %v3750
      %3868 = vst.msk [vmem:[%s170 + $0x148] sm:$0xff] %vm3826, %v3823
      %p3869 = scmp.lt.s32.totalorder %s14, 7
      %s3870 = scalar_select %p3869, %s14, 7
      %s3871 = smul.addr %s3870, 42
      %s3872 = smul.addr %s3871, 8
      %s3873 = scalar_lea.vmem %s3, %s3872
      // Predicated region
      $region33: #{make_cutouts.3} parent=31 // pred_check
        %p3874 = pneg %p100
      $region34: #{make_cutouts.3} parent=31 // pred_check_branch
        %3876 = sbr.rel (%p3874) target = $region36
      $region35: #{make_cutouts.3} parent=31 // pred_region
        _
      $region36: #{make_cutouts.3} parent=31 // pred_fallthru
        _
    $region32: #{make_cutouts.3} parent=5 // pred_fallthru
      _
    %p3877 = scmp.le.s32.totalorder 2, %s9
    // Predicated region
    $region37: #{make_cutouts.3} parent=5 // pred_check
      %p3878 = pneg %p3877
    $region38: #{make_cutouts.3} parent=5 // pred_check_branch
      %3880 = sbr.rel (%p3878) target = $region40
    $region39: #{make_cutouts.3} parent=5 // pred_region
      %s3881 = ssub.s32 %s9, 2
      // Predicated region
      $region41: #{make_cutouts.3} parent=39 // pred_check
        %p3882 = pneg %p106
      $region42: #{make_cutouts.3} parent=39 // pred_check_branch
        %3884 = sbr.rel (%p3882) target = $region44
      $region43: #{make_cutouts.3} parent=39 // pred_region
        %p3885 = scmp.lt.s32.totalorder %s15, 7
        %s3886 = scalar_select %p3885, %s15, 7
        %s3887 = smul.addr %s3886, 42
        %s3888 = smul.addr %s3887, 8
        %s3889 = scalar_lea.vmem %s3, %s3888
      $region44: #{make_cutouts.3} parent=39 // pred_fallthru
        _
    $region40: #{make_cutouts.3} parent=5 // pred_fallthru
      _
  $region6: #{make_cutouts.3} parent=0 // loop_footer
    %s13 = sadd.s32 1, %s9
  $region7: #{make_cutouts.3} parent=0 // loop_footer_branch
    %8 = sbr.rel target = $region3
  $region8: #{make_cutouts.3} parent=0 // loop_exit
    _

</llo_original>
